<compile_context>
chip_gen: v7x
topology: tpu7x:2x2x1
jax: 0.10.0
libtpu: 0.0.40
codegen_flags: <defaults>
</compile_context>

<pallas_src>
import jax
import jax.numpy as jnp
from jax.experimental import pallas as pl
from jax.experimental.pallas import tpu as pltpu

# Small-but-faithful dimensions (module defaults: emb=768, heads=8, expansion=4, depth=4;
# we shrink emb to 128 keeping heads/expansion/depth).
B, S, E = 2, 16, 128
H = 8
D = E // H            # 16
EXP = 4
HID = EXP * E         # 512
DEPTH = 4
HS = H * S            # 128 flat attention rows per batch element
LN_EPS = 1e-5
INV_SQRT2 = 0.7071067811865476

# Weight streaming dtype (halves the dominant per-layer weight DMA; f32 MXU accumulation).
MATMUL_WEIGHT_DTYPE = jnp.bfloat16

# Packed vector-slab lane offsets (all multiples of 128 -> aligned in-kernel lane slices).
_OFF_LN1W, _OFF_LN1B = 0, 128
_OFF_LN2W, _OFF_LN2B = 256, 384
_OFF_BPROJ, _OFF_BFC2 = 512, 640
_OFF_BQKV = 768            # width 3*E = 384
_OFF_BFC1 = 1152           # width HID = 512
VEC_LEN = 1664             # = 13 * 128


# ----------------------------- in-kernel math -------------------------------

def _erf(x):
    # Abramowitz & Stegun 7.1.26 (|err| <= 1.5e-7): exact-GELU semantics of torch.nn.GELU()
    # using only exp / elementwise ops.  Divide replaced by EUP approx reciprocal.
    a1, a2, a3, a4, a5 = 0.254829592, -0.284496736, 1.421413741, -1.453152027, 1.061405429
    p = 0.3275911
    s = jnp.where(x >= 0.0, 1.0, -1.0)
    ax = jnp.abs(x)
    t = pl.reciprocal(1.0 + p * ax, approx=True)
    poly = ((((a5 * t + a4) * t + a3) * t + a2) * t + a1) * t
    return s * (1.0 - poly * jnp.exp(-ax * ax))


def _gelu(x):
    return 0.5 * x * (1.0 + _erf(x * INV_SQRT2))


def _layernorm(x, w, b):
    # Two-pass variance (robust), eps=1e-5, as torch.nn.LayerNorm.
    mu = jnp.mean(x, axis=-1, keepdims=True)
    d = x - mu
    var = jnp.mean(d * d, axis=-1, keepdims=True)
    return d * jax.lax.rsqrt(var + LN_EPS) * w + b


# ------------------------------- fused kernel --------------------------------

def encoder_stack_kernel(x_ref, mask_ref, fold_ref, wbig_ref, wfc2_ref, vec_ref, o_ref):
    layer = pl.program_id(0)

    # Residual stream is carried in the output block (constant out index_map => the block
    # stays VMEM-resident across the layer axis and is written back to HBM once).
    @pl.when(layer == 0)
    def _():
        o_ref[...] = x_ref[...]

    x = o_ref[...]                                            # (B*S, E) f32

    def vec(lo, width):                                       # aligned lane slice of bias slab
        return vec_ref[0, :, lo:lo + width]                   # (1, width) f32

    # ---- LayerNorm1 + fused QKV projection over the whole (B*S, E) slab ----
    xn = _layernorm(x, vec(_OFF_LN1W, E), vec(_OFF_LN1B, E))
    qkv = jnp.dot(xn.astype(MATMUL_WEIGHT_DTYPE), wbig_ref[0, :, 0:3 * E],
                  preferred_element_type=jnp.float32) + vec(_OFF_BQKV, 3 * E)   # (B*S, 3E)

    # ---- Multi-head attention, faithful to the raw `.view(b, H, S, D)` split ----
    # Chunk-major flattening: row r = c*S + s of the (H*S, D) matrix holds
    # q2d[s, c*D:(c+1)*D]; its head is (s // 2) (since S*D = 2*E).  Same-head pairs form
    # the valid attention set; `mask_ref` (0/1) and `fold_ref` (constant selection matrix
    # folding the 16 valid columns of each row into a compact (HS, S) slab) are
    # precomputed on the host and DMA'd once.
    outs = []
    for b in range(B):                                        # B=2, static unroll
        rows = slice(b * S, (b + 1) * S)

        def _flat(base):
            # (S, E) rows -> (H*S, D), built from static lane slices + sublane concat
            # (no lane-crossing reshape, which Mosaic may reject).
            return jnp.concatenate(
                [qkv[rows, base + c * D: base + (c + 1) * D] for c in range(H)],
                axis=0)

        q_f = _flat(0)                                        # (HS, D) = (128, 16)
        k_f = _flat(E)

        energy = jnp.einsum('qd,kd->qk', q_f, k_f,
                            preferred_element_type=jnp.float32)             # (128, 128)

        # Compact softmax: gather the 16 valid energies per row, softmax on (128, 16).
        valid = jnp.dot(energy * mask_ref[...], fold_ref[...],
                        preferred_element_type=jnp.float32)                  # (128, 16)
        mx = jnp.max(valid, axis=-1, keepdims=True)
        p = jnp.exp(valid - mx)
        inv_l = pl.reciprocal(jnp.sum(p, axis=-1, keepdims=True), approx=True)
        attn_c = p * inv_l        # NOTE: post-softmax 1/sqrt(E) is folded into w_proj.

        # Scatter compact weights back to the (128, 128) block structure.
        attn = jnp.einsum('rm,um->ru', attn_c, fold_ref[...],
                          preferred_element_type=jnp.float32) * mask_ref[...]

        v_f = _flat(2 * E)        # built only after the softmax to limit live vregs
        out_f = jnp.dot(attn, v_f, preferred_element_type=jnp.float32)       # (128, 16)
        # Back to the lane-dense (S, E) layout (== torch `.view(b, seq, H*D)`).
        outs.append(jnp.concatenate(
            [out_f[c * S:(c + 1) * S, :] for c in range(H)], axis=1))        # (16, 128)

    heads = jnp.concatenate(outs, axis=0)                     # (B*S, E), lane-dense

    # ---- attention output projection (1/sqrt(E) pre-folded) + residual ----
    x_att = x + jnp.dot(heads.astype(MATMUL_WEIGHT_DTYPE), wbig_ref[0, :, 3 * E:4 * E],
                        preferred_element_type=jnp.float32) + vec(_OFF_BPROJ, E)

    # ---- LayerNorm2 + MLP + residual ----
    xn2 = _layernorm(x_att, vec(_OFF_LN2W, E), vec(_OFF_LN2B, E))
    hid = _gelu(jnp.dot(xn2.astype(MATMUL_WEIGHT_DTYPE), wbig_ref[0, :, 4 * E:4 * E + HID],
                        preferred_element_type=jnp.float32) + vec(_OFF_BFC1, HID))
    y = jnp.dot(hid.astype(MATMUL_WEIGHT_DTYPE), wfc2_ref[0],
                preferred_element_type=jnp.float32) + vec(_OFF_BFC2, E)

    o_ref[...] = x_att + y       # carry to next layer; HBM writeback happens once at end


# ------------------------------ wrapper ---------------------------------------

def _const2d(shape):
    return pl.BlockSpec(shape, lambda l: (0, 0))


@jax.jit
def transformer_encoder(x, sp, mask01, fold):
    x2 = x.reshape(B * S, E)
    out = pl.pallas_call(
        encoder_stack_kernel,
        out_shape=jax.ShapeDtypeStruct((B * S, E), jnp.float32),
        grid_spec=pltpu.PrefetchScalarGridSpec(
            num_scalar_prefetch=0,
            grid=(DEPTH,),
            in_specs=[
                _const2d((B * S, E)),                                    # x (DMA'd once)
                _const2d((HS, HS)),                                      # 0/1 same-head mask (once)
                _const2d((HS, S)),                                       # fold selection matrix (once)
                pl.BlockSpec((1, E, 4 * E + HID), lambda l: (l, 0, 0)),  # w_qkv|w_proj|w_fc1 (bf16)
                pl.BlockSpec((1, HID, E), lambda l: (l, 0, 0)),          # w_fc2 (bf16)
                pl.BlockSpec((1, 1, VEC_LEN), lambda l: (l, 0, 0)),      # LN params + biases (f32)
            ],
            out_specs=_const2d((B * S, E)),
        ),
        compiler_params=pltpu.CompilerParams(
            dimension_semantics=("arbitrary",)),   # layer axis carries the residual
    )(x2, mask01, fold, sp['w_big'], sp['w_fc2'], sp['vecs'])
    return out.reshape(B, S, E)


def build_attention_constants():
    """Static 0/1 same-head mask and the fold (column-compaction) selection matrix."""
    r = jnp.arange(HS)
    head = (r % S) // 2                     # head of flat row r (r = c*S + s -> head = s//2)
    mask01 = (head[:, None] == head[None, :]).astype(jnp.float32)          # (128, 128)
    m_of = 2 * (r // S) + (r % 2)           # compact column index of flat column u
    fold = (m_of[:, None] == jnp.arange(S)[None, :]).astype(jnp.float32)   # (128, 16)
    return mask01, fold


def stack_params(params):
    """Stack per-layer params along DEPTH; fold 1/sqrt(E) into w_proj; pack/concatenate."""
    w_big, w_fc2, vecs = [], [], []
    for p in params:
        w_proj_scaled = p['w_proj'] * (E ** -0.5)   # exact linear fold; bias left unscaled
        w_big.append(jnp.concatenate([p['w_qkv'], w_proj_scaled, p['w_fc1']], axis=1))
        w_fc2.append(p['w_fc2'])
        vecs.append(jnp.concatenate(
            [p['ln1_w'], p['ln1_b'], p['ln2_w'], p['ln2_b'],
             p['b_proj'], p['b_fc2'], p['b_qkv'], p['b_fc1']], axis=1))
    return dict(
        w_big=jnp.stack(w_big, axis=0).astype(MATMUL_WEIGHT_DTYPE),   # (DEPTH, 128, 1024)
        w_fc2=jnp.stack(w_fc2, axis=0).astype(MATMUL_WEIGHT_DTYPE),   # (DEPTH, 512, 128)
        vecs=jnp.stack(vecs, axis=0),                                 # (DEPTH, 1, 1664) f32
    )


# ----------------------- deterministic parameter init -------------------------

def init_params(key):
    params = []
    for layer in range(DEPTH):
        ks = jax.random.split(jax.random.fold_in(key, layer), 8)

        def lin(k, fan_in, fan_out):
            # weights stored as (in, out) so kernels do x @ W (== torch x @ W.T)
            return jax.random.normal(k, (fan_in, fan_out), jnp.float32) * 0.02

        params.append(dict(
            ln1_w=jnp.ones((1, E), jnp.float32),
            ln1_b=jnp.zeros((1, E), jnp.float32),
            w_qkv=jnp.concatenate(
                [lin(ks[0], E, E), lin(ks[1], E, E), lin(ks[2], E, E)], axis=1),
            b_qkv=jnp.zeros((1, 3 * E), jnp.float32),
            w_proj=lin(ks[3], E, E),
            b_proj=jax.random.normal(ks[4], (1, E), jnp.float32) * 0.02,
            ln2_w=jnp.ones((1, E), jnp.float32),
            ln2_b=jnp.zeros((1, E), jnp.float32),
            w_fc1=lin(ks[5], E, HID),
            b_fc1=jnp.zeros((1, HID), jnp.float32),
            w_fc2=lin(ks[6], HID, E),
            b_fc2=jax.random.normal(ks[7], (1, E), jnp.float32) * 0.02,
        ))
    return params


# --------------------------- pure-JAX reference --------------------------------
# Mirrors the PyTorch module exactly (f32, exact softmax divide, post-softmax 1/sqrt(E),
# raw .view head split, erf-GELU, p=0 dropouts = identity, mask=None).

def reference_block(x, p):
    def ln(x, w, b):
        mu = x.mean(-1, keepdims=True)
        var = ((x - mu) ** 2).mean(-1, keepdims=True)
        return (x - mu) / jnp.sqrt(var + LN_EPS) * w[0] + b[0]

    xn = ln(x, p['ln1_w'], p['ln1_b'])
    qkv = xn @ p['w_qkv'] + p['b_qkv'][0]
    q, k, v = jnp.split(qkv, 3, axis=-1)
    q = q.reshape(B, H, S, D)
    k = k.reshape(B, H, S, D)
    v = v.reshape(B, H, S, D)
    energy = jnp.einsum('bhqd,bhkd->bhqk', q, k)
    attn = jax.nn.softmax(energy, axis=-1) / (E ** 0.5)
    out = jnp.einsum('bhqk,bhkd->bhqd', attn, v).reshape(B, S, E)
    x_att = x + (out @ p['w_proj'] + p['b_proj'][0])
    xn2 = ln(x_att, p['ln2_w'], p['ln2_b'])
    h = jax.nn.gelu(xn2 @ p['w_fc1'] + p['b_fc1'][0], approximate=False)
    y = h @ p['w_fc2'] + p['b_fc2'][0]
    return x_att + y


# --------------------------------- main ----------------------------------------

if __name__ == "__main__":
    key = jax.random.PRNGKey(0)
    xkey, pkey = jax.random.split(key)
    x = jax.random.normal(xkey, (B, S, E), jnp.float32)
    params = init_params(pkey)
    stacked = stack_params(params)
    mask01, fold = build_attention_constants()

    y = transformer_encoder(x, stacked, mask01, fold)
    y = jax.block_until_ready(y)

    y_ref = x
    for p in params:
        y_ref = reference_block(y_ref, p)

    # Tolerance loosened vs. the pure-f32 reference to accommodate bf16 weight/activation
    # rounding at the matmul inputs (plus the erf poly / approx-reciprocal approximations);
    # real structural bugs produce O(1) errors and are still caught.
    max_err = float(jnp.max(jnp.abs(y - y_ref)))
    assert jnp.allclose(y, y_ref, atol=2e-2, rtol=2e-2), f"max abs err = {max_err}"

    print("KERNEL_OK")
</pallas_src>

<mosaic_0001>
module attributes {stable_mosaic.version = 11 : i64} {
  func.func @encoder_stack_kernel(%arg0: i32, %arg1: memref<32x128xf32, #tpu.memory_space<vmem>>, %arg2: memref<128x128xf32, #tpu.memory_space<vmem>>, %arg3: memref<128x16xf32, #tpu.memory_space<vmem>>, %arg4: memref<1x128x1024xbf16, #tpu.memory_space<vmem>>, %arg5: memref<1x512x128xbf16, #tpu.memory_space<vmem>>, %arg6: memref<1x1x1664xf32, #tpu.memory_space<vmem>>, %arg7: memref<32x128xf32, #tpu.memory_space<vmem>>) attributes {dimension_semantics = [#tpu.dimension_semantics<arbitrary>], iteration_bounds = array<i64: 4>, scalar_prefetch = 0 : i64, scratch_operands = 0 : i64, tpu.core_type = #tpu.core_type<tc>, window_params = [{pipeline_mode = #tpu.pipeline_mode<synchronous>, transform_indices = @transform_0, window_bounds = array<i64: 32, 128>}, {pipeline_mode = #tpu.pipeline_mode<synchronous>, transform_indices = @transform_1, window_bounds = array<i64: 128, 128>}, {pipeline_mode = #tpu.pipeline_mode<synchronous>, transform_indices = @transform_2, window_bounds = array<i64: 128, 16>}, {transform_indices = @transform_3, window_bounds = array<i64: 1, 128, 1024>}, {transform_indices = @transform_4, window_bounds = array<i64: 1, 512, 128>}, {transform_indices = @transform_5, window_bounds = array<i64: 1, 1, 1664>}, {pipeline_mode = #tpu.pipeline_mode<synchronous>, transform_indices = @transform_6, window_bounds = array<i64: 32, 128>}]} {
    %c0_i32 = arith.constant 0 : i32
    %0 = arith.cmpi eq, %arg0, %c0_i32 : i32
    %1 = arith.extui %0 : i1 to i32
    %c0_i32_0 = arith.constant 0 : i32
    %2 = arith.cmpi ne, %1, %c0_i32_0 : i32
    scf.if %2 {
      %c0_89 = arith.constant 0 : index
      %c0_90 = arith.constant 0 : index
      %240 = vector.load %arg1[%c0_89, %c0_90] : memref<32x128xf32, #tpu.memory_space<vmem>>, vector<32x128xf32>
      %c0_91 = arith.constant 0 : index
      %c0_92 = arith.constant 0 : index
      %241 = vector.load %arg7[%c0_91, %c0_92] : memref<32x128xf32, #tpu.memory_space<vmem>>, vector<32x128xf32>
      tpu.vector_store %arg7[%c0_91, %c0_92], %240 {strides = array<i32>} : memref<32x128xf32, #tpu.memory_space<vmem>>, vector<32x128xf32>,
    } else {
    }
    %c0 = arith.constant 0 : index
    %c0_1 = arith.constant 0 : index
    %3 = vector.load %arg7[%c0, %c0_1] : memref<32x128xf32, #tpu.memory_space<vmem>>, vector<32x128xf32>
    %c0_2 = arith.constant 0 : index
    %c0_3 = arith.constant 0 : index
    %c0_4 = arith.constant 0 : index
    %4 = vector.load %arg6[%c0_2, %c0_3, %c0_4] : memref<1x1x1664xf32, #tpu.memory_space<vmem>>, vector<1x1x128xf32>
    %5 = vector.shape_cast %4 : vector<1x1x128xf32> to vector<1x128xf32>
    %c0_5 = arith.constant 0 : index
    %c0_6 = arith.constant 0 : index
    %c128 = arith.constant 128 : index
    %6 = vector.load %arg6[%c0_5, %c0_6, %c128] : memref<1x1x1664xf32, #tpu.memory_space<vmem>>, vector<1x1x128xf32>
    %7 = vector.shape_cast %6 : vector<1x1x128xf32> to vector<1x128xf32>
    %cst = arith.constant dense<0.000000e+00> : vector<32xf32>
    %8 = vector.multi_reduction <add>, %3, %cst [1] : vector<32x128xf32> to vector<32xf32>
    %9 = vector.shape_cast %8 : vector<32xf32> to vector<32x1xf32>
    %cst_7 = arith.constant 1.280000e+02 : f32
    %10 = vector.broadcast %cst_7 : f32 to vector<32x1xf32>
    %11 = arith.divf %9, %10 : vector<32x1xf32>
    %12 = vector.broadcast %11 : vector<32x1xf32> to vector<32x128xf32>
    %13 = arith.subf %3, %12 : vector<32x128xf32>
    %14 = arith.mulf %13, %13 : vector<32x128xf32>
    %cst_8 = arith.constant dense<0.000000e+00> : vector<32xf32>
    %15 = vector.multi_reduction <add>, %14, %cst_8 [1] : vector<32x128xf32> to vector<32xf32>
    %16 = vector.shape_cast %15 : vector<32xf32> to vector<32x1xf32>
    %cst_9 = arith.constant 1.280000e+02 : f32
    %17 = vector.broadcast %cst_9 : f32 to vector<32x1xf32>
    %18 = arith.divf %16, %17 : vector<32x1xf32>
    %cst_10 = arith.constant 9.99999974E-6 : f32
    %19 = vector.broadcast %cst_10 : f32 to vector<32x1xf32>
    %20 = arith.addf %18, %19 : vector<32x1xf32>
    %21 = math.rsqrt %20 : vector<32x1xf32>
    %22 = vector.broadcast %21 : vector<32x1xf32> to vector<32x128xf32>
    %23 = arith.mulf %13, %22 : vector<32x128xf32>
    %24 = vector.broadcast %5 : vector<1x128xf32> to vector<32x128xf32>
    %25 = arith.mulf %23, %24 : vector<32x128xf32>
    %26 = vector.broadcast %7 : vector<1x128xf32> to vector<32x128xf32>
    %27 = arith.addf %25, %26 : vector<32x128xf32>
    %28 = arith.truncf %27 : vector<32x128xf32> to vector<32x128xbf16>
    %c0_11 = arith.constant 0 : index
    %c0_12 = arith.constant 0 : index
    %c0_13 = arith.constant 0 : index
    %29 = vector.load %arg4[%c0_11, %c0_12, %c0_13] : memref<1x128x1024xbf16, #tpu.memory_space<vmem>>, vector<1x128x384xbf16>
    %30 = vector.shape_cast %29 : vector<1x128x384xbf16> to vector<128x384xbf16>
    %cst_14 = arith.constant dense<0.000000e+00> : vector<32x384xf32>
    %31 = tpu.matmul %28, %30, %cst_14 {dimension_numbers = #tpu.dot_dimension_numbers<[1], [0], [0], [1], [0, 0, 1, 1], [], []>} : vector<32x128xbf16>, vector<128x384xbf16>, vector<32x384xf32> -> vector<32x384xf32>
    %c0_15 = arith.constant 0 : index
    %c0_16 = arith.constant 0 : index
    %c768 = arith.constant 768 : index
    %32 = vector.load %arg6[%c0_15, %c0_16, %c768] : memref<1x1x1664xf32, #tpu.memory_space<vmem>>, vector<1x1x384xf32>
    %33 = vector.shape_cast %32 : vector<1x1x384xf32> to vector<1x384xf32>
    %34 = vector.broadcast %33 : vector<1x384xf32> to vector<32x384xf32>
    %35 = arith.addf %31, %34 : vector<32x384xf32>
    %36 = vector.extract_strided_slice %35 {offsets = [0, 0], sizes = [16, 16], strides = [1, 1]} : vector<32x384xf32> to vector<16x16xf32>
    %37 = vector.extract_strided_slice %35 {offsets = [0, 16], sizes = [16, 16], strides = [1, 1]} : vector<32x384xf32> to vector<16x16xf32>
    %38 = vector.extract_strided_slice %35 {offsets = [0, 32], sizes = [16, 16], strides = [1, 1]} : vector<32x384xf32> to vector<16x16xf32>
    %39 = vector.extract_strided_slice %35 {offsets = [0, 48], sizes = [16, 16], strides = [1, 1]} : vector<32x384xf32> to vector<16x16xf32>
    %40 = vector.extract_strided_slice %35 {offsets = [0, 64], sizes = [16, 16], strides = [1, 1]} : vector<32x384xf32> to vector<16x16xf32>
    %41 = vector.extract_strided_slice %35 {offsets = [0, 80], sizes = [16, 16], strides = [1, 1]} : vector<32x384xf32> to vector<16x16xf32>
    %42 = vector.extract_strided_slice %35 {offsets = [0, 96], sizes = [16, 16], strides = [1, 1]} : vector<32x384xf32> to vector<16x16xf32>
    %43 = vector.extract_strided_slice %35 {offsets = [0, 112], sizes = [16, 16], strides = [1, 1]} : vector<32x384xf32> to vector<16x16xf32>
    %44 = tpu.concatenate %36, %37, %38, %39, %40, %41, %42, %43 in 0 : vector<16x16xf32>, vector<16x16xf32>, vector<16x16xf32>, vector<16x16xf32>, vector<16x16xf32>, vector<16x16xf32>, vector<16x16xf32>, vector<16x16xf32> -> vector<128x16xf32>
    %45 = vector.extract_strided_slice %35 {offsets = [0, 128], sizes = [16, 16], strides = [1, 1]} : vector<32x384xf32> to vector<16x16xf32>
    %46 = vector.extract_strided_slice %35 {offsets = [0, 144], sizes = [16, 16], strides = [1, 1]} : vector<32x384xf32> to vector<16x16xf32>
    %47 = vector.extract_strided_slice %35 {offsets = [0, 160], sizes = [16, 16], strides = [1, 1]} : vector<32x384xf32> to vector<16x16xf32>
    %48 = vector.extract_strided_slice %35 {offsets = [0, 176], sizes = [16, 16], strides = [1, 1]} : vector<32x384xf32> to vector<16x16xf32>
    %49 = vector.extract_strided_slice %35 {offsets = [0, 192], sizes = [16, 16], strides = [1, 1]} : vector<32x384xf32> to vector<16x16xf32>
    %50 = vector.extract_strided_slice %35 {offsets = [0, 208], sizes = [16, 16], strides = [1, 1]} : vector<32x384xf32> to vector<16x16xf32>
    %51 = vector.extract_strided_slice %35 {offsets = [0, 224], sizes = [16, 16], strides = [1, 1]} : vector<32x384xf32> to vector<16x16xf32>
    %52 = vector.extract_strided_slice %35 {offsets = [0, 240], sizes = [16, 16], strides = [1, 1]} : vector<32x384xf32> to vector<16x16xf32>
    %53 = tpu.concatenate %45, %46, %47, %48, %49, %50, %51, %52 in 0 : vector<16x16xf32>, vector<16x16xf32>, vector<16x16xf32>, vector<16x16xf32>, vector<16x16xf32>, vector<16x16xf32>, vector<16x16xf32>, vector<16x16xf32> -> vector<128x16xf32>
    "tpu.trace_start"() <{level = 10 : i32, message = "qd,kd->qk"}> : () -> ()
    %cst_17 = arith.constant dense<0.000000e+00> : vector<128x128xf32>
    %54 = tpu.matmul %44, %53, %cst_17 {dimension_numbers = #tpu.dot_dimension_numbers<[1], [1], [0], [0], [0, 0, 1, 0], [], []>} : vector<128x16xf32>, vector<128x16xf32>, vector<128x128xf32> -> vector<128x128xf32>
    "tpu.trace_stop"() : () -> ()
    %c0_18 = arith.constant 0 : index
    %c0_19 = arith.constant 0 : index
    %55 = vector.load %arg2[%c0_18, %c0_19] : memref<128x128xf32, #tpu.memory_space<vmem>>, vector<128x128xf32>
    %56 = arith.mulf %54, %55 : vector<128x128xf32>
    %c0_20 = arith.constant 0 : index
    %c0_21 = arith.constant 0 : index
    %57 = vector.load %arg3[%c0_20, %c0_21] : memref<128x16xf32, #tpu.memory_space<vmem>>, vector<128x16xf32>
    %cst_22 = arith.constant dense<0.000000e+00> : vector<128x16xf32>
    %58 = tpu.matmul %56, %57, %cst_22 {dimension_numbers = #tpu.dot_dimension_numbers<[1], [0], [0], [1], [0, 0, 1, 1], [], []>} : vector<128x128xf32>, vector<128x16xf32>, vector<128x16xf32> -> vector<128x16xf32>
    %cst_23 = arith.constant dense<0xFF800000> : vector<128xf32>
    %59 = vector.multi_reduction <maximumf>, %58, %cst_23 [1] : vector<128x16xf32> to vector<128xf32>
    %60 = vector.shape_cast %59 : vector<128xf32> to vector<128x1xf32>
    %61 = vector.broadcast %60 : vector<128x1xf32> to vector<128x16xf32>
    %62 = arith.subf %58, %61 : vector<128x16xf32>
    %63 = math.exp %62 : vector<128x16xf32>
    %cst_24 = arith.constant dense<0.000000e+00> : vector<128xf32>
    %64 = vector.multi_reduction <add>, %63, %cst_24 [1] : vector<128x16xf32> to vector<128xf32>
    %65 = vector.shape_cast %64 : vector<128xf32> to vector<128x1xf32>
    %66 = tpu.reciprocal %65 {approx = true} : vector<128x1xf32> -> vector<128x1xf32>
    %67 = vector.broadcast %66 : vector<128x1xf32> to vector<128x16xf32>
    %68 = arith.mulf %63, %67 : vector<128x16xf32>
    %c0_25 = arith.constant 0 : index
    %c0_26 = arith.constant 0 : index
    %69 = vector.load %arg3[%c0_25, %c0_26] : memref<128x16xf32, #tpu.memory_space<vmem>>, vector<128x16xf32>
    "tpu.trace_start"() <{level = 10 : i32, message = "rm,um->ru"}> : () -> ()
    %cst_27 = arith.constant dense<0.000000e+00> : vector<128x128xf32>
    %70 = tpu.matmul %68, %69, %cst_27 {dimension_numbers = #tpu.dot_dimension_numbers<[1], [1], [0], [0], [0, 0, 1, 0], [], []>} : vector<128x16xf32>, vector<128x16xf32>, vector<128x128xf32> -> vector<128x128xf32>
    "tpu.trace_stop"() : () -> ()
    %c0_28 = arith.constant 0 : index
    %c0_29 = arith.constant 0 : index
    %71 = vector.load %arg2[%c0_28, %c0_29] : memref<128x128xf32, #tpu.memory_space<vmem>>, vector<128x128xf32>
    %72 = arith.mulf %70, %71 : vector<128x128xf32>
    %73 = vector.extract_strided_slice %35 {offsets = [0, 256], sizes = [16, 16], strides = [1, 1]} : vector<32x384xf32> to vector<16x16xf32>
    %74 = vector.extract_strided_slice %35 {offsets = [0, 272], sizes = [16, 16], strides = [1, 1]} : vector<32x384xf32> to vector<16x16xf32>
    %75 = vector.extract_strided_slice %35 {offsets = [0, 288], sizes = [16, 16], strides = [1, 1]} : vector<32x384xf32> to vector<16x16xf32>
    %76 = vector.extract_strided_slice %35 {offsets = [0, 304], sizes = [16, 16], strides = [1, 1]} : vector<32x384xf32> to vector<16x16xf32>
    %77 = vector.extract_strided_slice %35 {offsets = [0, 320], sizes = [16, 16], strides = [1, 1]} : vector<32x384xf32> to vector<16x16xf32>
    %78 = vector.extract_strided_slice %35 {offsets = [0, 336], sizes = [16, 16], strides = [1, 1]} : vector<32x384xf32> to vector<16x16xf32>
    %79 = vector.extract_strided_slice %35 {offsets = [0, 352], sizes = [16, 16], strides = [1, 1]} : vector<32x384xf32> to vector<16x16xf32>
    %80 = vector.extract_strided_slice %35 {offsets = [0, 368], sizes = [16, 16], strides = [1, 1]} : vector<32x384xf32> to vector<16x16xf32>
    %81 = tpu.concatenate %73, %74, %75, %76, %77, %78, %79, %80 in 0 : vector<16x16xf32>, vector<16x16xf32>, vector<16x16xf32>, vector<16x16xf32>, vector<16x16xf32>, vector<16x16xf32>, vector<16x16xf32>, vector<16x16xf32> -> vector<128x16xf32>
    %cst_30 = arith.constant dense<0.000000e+00> : vector<128x16xf32>
    %82 = tpu.matmul %72, %81, %cst_30 {dimension_numbers = #tpu.dot_dimension_numbers<[1], [0], [0], [1], [0, 0, 1, 1], [], []>} : vector<128x128xf32>, vector<128x16xf32>, vector<128x16xf32> -> vector<128x16xf32>
    %83 = vector.extract_strided_slice %82 {offsets = [0, 0], sizes = [16, 16], strides = [1, 1]} : vector<128x16xf32> to vector<16x16xf32>
    %84 = vector.extract_strided_slice %82 {offsets = [16, 0], sizes = [16, 16], strides = [1, 1]} : vector<128x16xf32> to vector<16x16xf32>
    %85 = vector.extract_strided_slice %82 {offsets = [32, 0], sizes = [16, 16], strides = [1, 1]} : vector<128x16xf32> to vector<16x16xf32>
    %86 = vector.extract_strided_slice %82 {offsets = [48, 0], sizes = [16, 16], strides = [1, 1]} : vector<128x16xf32> to vector<16x16xf32>
    %87 = vector.extract_strided_slice %82 {offsets = [64, 0], sizes = [16, 16], strides = [1, 1]} : vector<128x16xf32> to vector<16x16xf32>
    %88 = vector.extract_strided_slice %82 {offsets = [80, 0], sizes = [16, 16], strides = [1, 1]} : vector<128x16xf32> to vector<16x16xf32>
    %89 = vector.extract_strided_slice %82 {offsets = [96, 0], sizes = [16, 16], strides = [1, 1]} : vector<128x16xf32> to vector<16x16xf32>
    %90 = vector.extract_strided_slice %82 {offsets = [112, 0], sizes = [16, 16], strides = [1, 1]} : vector<128x16xf32> to vector<16x16xf32>
    %91 = tpu.concatenate %83, %84, %85, %86, %87, %88, %89, %90 in 1 : vector<16x16xf32>, vector<16x16xf32>, vector<16x16xf32>, vector<16x16xf32>, vector<16x16xf32>, vector<16x16xf32>, vector<16x16xf32>, vector<16x16xf32> -> vector<16x128xf32>
    %92 = vector.extract_strided_slice %35 {offsets = [16, 0], sizes = [16, 16], strides = [1, 1]} : vector<32x384xf32> to vector<16x16xf32>
    %93 = vector.extract_strided_slice %35 {offsets = [16, 16], sizes = [16, 16], strides = [1, 1]} : vector<32x384xf32> to vector<16x16xf32>
    %94 = vector.extract_strided_slice %35 {offsets = [16, 32], sizes = [16, 16], strides = [1, 1]} : vector<32x384xf32> to vector<16x16xf32>
    %95 = vector.extract_strided_slice %35 {offsets = [16, 48], sizes = [16, 16], strides = [1, 1]} : vector<32x384xf32> to vector<16x16xf32>
    %96 = vector.extract_strided_slice %35 {offsets = [16, 64], sizes = [16, 16], strides = [1, 1]} : vector<32x384xf32> to vector<16x16xf32>
    %97 = vector.extract_strided_slice %35 {offsets = [16, 80], sizes = [16, 16], strides = [1, 1]} : vector<32x384xf32> to vector<16x16xf32>
    %98 = vector.extract_strided_slice %35 {offsets = [16, 96], sizes = [16, 16], strides = [1, 1]} : vector<32x384xf32> to vector<16x16xf32>
    %99 = vector.extract_strided_slice %35 {offsets = [16, 112], sizes = [16, 16], strides = [1, 1]} : vector<32x384xf32> to vector<16x16xf32>
    %100 = tpu.concatenate %92, %93, %94, %95, %96, %97, %98, %99 in 0 : vector<16x16xf32>, vector<16x16xf32>, vector<16x16xf32>, vector<16x16xf32>, vector<16x16xf32>, vector<16x16xf32>, vector<16x16xf32>, vector<16x16xf32> -> vector<128x16xf32>
    %101 = vector.extract_strided_slice %35 {offsets = [16, 128], sizes = [16, 16], strides = [1, 1]} : vector<32x384xf32> to vector<16x16xf32>
    %102 = vector.extract_strided_slice %35 {offsets = [16, 144], sizes = [16, 16], strides = [1, 1]} : vector<32x384xf32> to vector<16x16xf32>
    %103 = vector.extract_strided_slice %35 {offsets = [16, 160], sizes = [16, 16], strides = [1, 1]} : vector<32x384xf32> to vector<16x16xf32>
    %104 = vector.extract_strided_slice %35 {offsets = [16, 176], sizes = [16, 16], strides = [1, 1]} : vector<32x384xf32> to vector<16x16xf32>
    %105 = vector.extract_strided_slice %35 {offsets = [16, 192], sizes = [16, 16], strides = [1, 1]} : vector<32x384xf32> to vector<16x16xf32>
    %106 = vector.extract_strided_slice %35 {offsets = [16, 208], sizes = [16, 16], strides = [1, 1]} : vector<32x384xf32> to vector<16x16xf32>
    %107 = vector.extract_strided_slice %35 {offsets = [16, 224], sizes = [16, 16], strides = [1, 1]} : vector<32x384xf32> to vector<16x16xf32>
    %108 = vector.extract_strided_slice %35 {offsets = [16, 240], sizes = [16, 16], strides = [1, 1]} : vector<32x384xf32> to vector<16x16xf32>
    %109 = tpu.concatenate %101, %102, %103, %104, %105, %106, %107, %108 in 0 : vector<16x16xf32>, vector<16x16xf32>, vector<16x16xf32>, vector<16x16xf32>, vector<16x16xf32>, vector<16x16xf32>, vector<16x16xf32>, vector<16x16xf32> -> vector<128x16xf32>
    "tpu.trace_start"() <{level = 10 : i32, message = "qd,kd->qk"}> : () -> ()
    %cst_31 = arith.constant dense<0.000000e+00> : vector<128x128xf32>
    %110 = tpu.matmul %100, %109, %cst_31 {dimension_numbers = #tpu.dot_dimension_numbers<[1], [1], [0], [0], [0, 0, 1, 0], [], []>} : vector<128x16xf32>, vector<128x16xf32>, vector<128x128xf32> -> vector<128x128xf32>
    "tpu.trace_stop"() : () -> ()
    %c0_32 = arith.constant 0 : index
    %c0_33 = arith.constant 0 : index
    %111 = vector.load %arg2[%c0_32, %c0_33] : memref<128x128xf32, #tpu.memory_space<vmem>>, vector<128x128xf32>
    %112 = arith.mulf %110, %111 : vector<128x128xf32>
    %c0_34 = arith.constant 0 : index
    %c0_35 = arith.constant 0 : index
    %113 = vector.load %arg3[%c0_34, %c0_35] : memref<128x16xf32, #tpu.memory_space<vmem>>, vector<128x16xf32>
    %cst_36 = arith.constant dense<0.000000e+00> : vector<128x16xf32>
    %114 = tpu.matmul %112, %113, %cst_36 {dimension_numbers = #tpu.dot_dimension_numbers<[1], [0], [0], [1], [0, 0, 1, 1], [], []>} : vector<128x128xf32>, vector<128x16xf32>, vector<128x16xf32> -> vector<128x16xf32>
    %cst_37 = arith.constant dense<0xFF800000> : vector<128xf32>
    %115 = vector.multi_reduction <maximumf>, %114, %cst_37 [1] : vector<128x16xf32> to vector<128xf32>
    %116 = vector.shape_cast %115 : vector<128xf32> to vector<128x1xf32>
    %117 = vector.broadcast %116 : vector<128x1xf32> to vector<128x16xf32>
    %118 = arith.subf %114, %117 : vector<128x16xf32>
    %119 = math.exp %118 : vector<128x16xf32>
    %cst_38 = arith.constant dense<0.000000e+00> : vector<128xf32>
    %120 = vector.multi_reduction <add>, %119, %cst_38 [1] : vector<128x16xf32> to vector<128xf32>
    %121 = vector.shape_cast %120 : vector<128xf32> to vector<128x1xf32>
    %122 = tpu.reciprocal %121 {approx = true} : vector<128x1xf32> -> vector<128x1xf32>
    %123 = vector.broadcast %122 : vector<128x1xf32> to vector<128x16xf32>
    %124 = arith.mulf %119, %123 : vector<128x16xf32>
    %c0_39 = arith.constant 0 : index
    %c0_40 = arith.constant 0 : index
    %125 = vector.load %arg3[%c0_39, %c0_40] : memref<128x16xf32, #tpu.memory_space<vmem>>, vector<128x16xf32>
    "tpu.trace_start"() <{level = 10 : i32, message = "rm,um->ru"}> : () -> ()
    %cst_41 = arith.constant dense<0.000000e+00> : vector<128x128xf32>
    %126 = tpu.matmul %124, %125, %cst_41 {dimension_numbers = #tpu.dot_dimension_numbers<[1], [1], [0], [0], [0, 0, 1, 0], [], []>} : vector<128x16xf32>, vector<128x16xf32>, vector<128x128xf32> -> vector<128x128xf32>
    "tpu.trace_stop"() : () -> ()
    %c0_42 = arith.constant 0 : index
    %c0_43 = arith.constant 0 : index
    %127 = vector.load %arg2[%c0_42, %c0_43] : memref<128x128xf32, #tpu.memory_space<vmem>>, vector<128x128xf32>
    %128 = arith.mulf %126, %127 : vector<128x128xf32>
    %129 = vector.extract_strided_slice %35 {offsets = [16, 256], sizes = [16, 16], strides = [1, 1]} : vector<32x384xf32> to vector<16x16xf32>
    %130 = vector.extract_strided_slice %35 {offsets = [16, 272], sizes = [16, 16], strides = [1, 1]} : vector<32x384xf32> to vector<16x16xf32>
    %131 = vector.extract_strided_slice %35 {offsets = [16, 288], sizes = [16, 16], strides = [1, 1]} : vector<32x384xf32> to vector<16x16xf32>
    %132 = vector.extract_strided_slice %35 {offsets = [16, 304], sizes = [16, 16], strides = [1, 1]} : vector<32x384xf32> to vector<16x16xf32>
    %133 = vector.extract_strided_slice %35 {offsets = [16, 320], sizes = [16, 16], strides = [1, 1]} : vector<32x384xf32> to vector<16x16xf32>
    %134 = vector.extract_strided_slice %35 {offsets = [16, 336], sizes = [16, 16], strides = [1, 1]} : vector<32x384xf32> to vector<16x16xf32>
    %135 = vector.extract_strided_slice %35 {offsets = [16, 352], sizes = [16, 16], strides = [1, 1]} : vector<32x384xf32> to vector<16x16xf32>
    %136 = vector.extract_strided_slice %35 {offsets = [16, 368], sizes = [16, 16], strides = [1, 1]} : vector<32x384xf32> to vector<16x16xf32>
    %137 = tpu.concatenate %129, %130, %131, %132, %133, %134, %135, %136 in 0 : vector<16x16xf32>, vector<16x16xf32>, vector<16x16xf32>, vector<16x16xf32>, vector<16x16xf32>, vector<16x16xf32>, vector<16x16xf32>, vector<16x16xf32> -> vector<128x16xf32>
    %cst_44 = arith.constant dense<0.000000e+00> : vector<128x16xf32>
    %138 = tpu.matmul %128, %137, %cst_44 {dimension_numbers = #tpu.dot_dimension_numbers<[1], [0], [0], [1], [0, 0, 1, 1], [], []>} : vector<128x128xf32>, vector<128x16xf32>, vector<128x16xf32> -> vector<128x16xf32>
    %139 = vector.extract_strided_slice %138 {offsets = [0, 0], sizes = [16, 16], strides = [1, 1]} : vector<128x16xf32> to vector<16x16xf32>
    %140 = vector.extract_strided_slice %138 {offsets = [16, 0], sizes = [16, 16], strides = [1, 1]} : vector<128x16xf32> to vector<16x16xf32>
    %141 = vector.extract_strided_slice %138 {offsets = [32, 0], sizes = [16, 16], strides = [1, 1]} : vector<128x16xf32> to vector<16x16xf32>
    %142 = vector.extract_strided_slice %138 {offsets = [48, 0], sizes = [16, 16], strides = [1, 1]} : vector<128x16xf32> to vector<16x16xf32>
    %143 = vector.extract_strided_slice %138 {offsets = [64, 0], sizes = [16, 16], strides = [1, 1]} : vector<128x16xf32> to vector<16x16xf32>
    %144 = vector.extract_strided_slice %138 {offsets = [80, 0], sizes = [16, 16], strides = [1, 1]} : vector<128x16xf32> to vector<16x16xf32>
    %145 = vector.extract_strided_slice %138 {offsets = [96, 0], sizes = [16, 16], strides = [1, 1]} : vector<128x16xf32> to vector<16x16xf32>
    %146 = vector.extract_strided_slice %138 {offsets = [112, 0], sizes = [16, 16], strides = [1, 1]} : vector<128x16xf32> to vector<16x16xf32>
    %147 = tpu.concatenate %139, %140, %141, %142, %143, %144, %145, %146 in 1 : vector<16x16xf32>, vector<16x16xf32>, vector<16x16xf32>, vector<16x16xf32>, vector<16x16xf32>, vector<16x16xf32>, vector<16x16xf32>, vector<16x16xf32> -> vector<16x128xf32>
    %148 = tpu.concatenate %91, %147 in 0 : vector<16x128xf32>, vector<16x128xf32> -> vector<32x128xf32>
    %149 = arith.truncf %148 : vector<32x128xf32> to vector<32x128xbf16>
    %c0_45 = arith.constant 0 : index
    %c0_46 = arith.constant 0 : index
    %c384 = arith.constant 384 : index
    %150 = vector.load %arg4[%c0_45, %c0_46, %c384] : memref<1x128x1024xbf16, #tpu.memory_space<vmem>>, vector<1x128x128xbf16>
    %151 = vector.shape_cast %150 : vector<1x128x128xbf16> to vector<128x128xbf16>
    %cst_47 = arith.constant dense<0.000000e+00> : vector<32x128xf32>
    %152 = tpu.matmul %149, %151, %cst_47 {dimension_numbers = #tpu.dot_dimension_numbers<[1], [0], [0], [1], [0, 0, 1, 1], [], []>} : vector<32x128xbf16>, vector<128x128xbf16>, vector<32x128xf32> -> vector<32x128xf32>
    %153 = arith.addf %3, %152 : vector<32x128xf32>
    %c0_48 = arith.constant 0 : index
    %c0_49 = arith.constant 0 : index
    %c512 = arith.constant 512 : index
    %154 = vector.load %arg6[%c0_48, %c0_49, %c512] : memref<1x1x1664xf32, #tpu.memory_space<vmem>>, vector<1x1x128xf32>
    %155 = vector.shape_cast %154 : vector<1x1x128xf32> to vector<1x128xf32>
    %156 = vector.broadcast %155 : vector<1x128xf32> to vector<32x128xf32>
    %157 = arith.addf %153, %156 : vector<32x128xf32>
    %c0_50 = arith.constant 0 : index
    %c0_51 = arith.constant 0 : index
    %c256 = arith.constant 256 : index
    %158 = vector.load %arg6[%c0_50, %c0_51, %c256] : memref<1x1x1664xf32, #tpu.memory_space<vmem>>, vector<1x1x128xf32>
    %159 = vector.shape_cast %158 : vector<1x1x128xf32> to vector<1x128xf32>
    %c0_52 = arith.constant 0 : index
    %c0_53 = arith.constant 0 : index
    %c384_54 = arith.constant 384 : index
    %160 = vector.load %arg6[%c0_52, %c0_53, %c384_54] : memref<1x1x1664xf32, #tpu.memory_space<vmem>>, vector<1x1x128xf32>
    %161 = vector.shape_cast %160 : vector<1x1x128xf32> to vector<1x128xf32>
    %cst_55 = arith.constant dense<0.000000e+00> : vector<32xf32>
    %162 = vector.multi_reduction <add>, %157, %cst_55 [1] : vector<32x128xf32> to vector<32xf32>
    %163 = vector.shape_cast %162 : vector<32xf32> to vector<32x1xf32>
    %cst_56 = arith.constant 1.280000e+02 : f32
    %164 = vector.broadcast %cst_56 : f32 to vector<32x1xf32>
    %165 = arith.divf %163, %164 : vector<32x1xf32>
    %166 = vector.broadcast %165 : vector<32x1xf32> to vector<32x128xf32>
    %167 = arith.subf %157, %166 : vector<32x128xf32>
    %168 = arith.mulf %167, %167 : vector<32x128xf32>
    %cst_57 = arith.constant dense<0.000000e+00> : vector<32xf32>
    %169 = vector.multi_reduction <add>, %168, %cst_57 [1] : vector<32x128xf32> to vector<32xf32>
    %170 = vector.shape_cast %169 : vector<32xf32> to vector<32x1xf32>
    %cst_58 = arith.constant 1.280000e+02 : f32
    %171 = vector.broadcast %cst_58 : f32 to vector<32x1xf32>
    %172 = arith.divf %170, %171 : vector<32x1xf32>
    %cst_59 = arith.constant 9.99999974E-6 : f32
    %173 = vector.broadcast %cst_59 : f32 to vector<32x1xf32>
    %174 = arith.addf %172, %173 : vector<32x1xf32>
    %175 = math.rsqrt %174 : vector<32x1xf32>
    %176 = vector.broadcast %175 : vector<32x1xf32> to vector<32x128xf32>
    %177 = arith.mulf %167, %176 : vector<32x128xf32>
    %178 = vector.broadcast %159 : vector<1x128xf32> to vector<32x128xf32>
    %179 = arith.mulf %177, %178 : vector<32x128xf32>
    %180 = vector.broadcast %161 : vector<1x128xf32> to vector<32x128xf32>
    %181 = arith.addf %179, %180 : vector<32x128xf32>
    %182 = arith.truncf %181 : vector<32x128xf32> to vector<32x128xbf16>
    %c0_60 = arith.constant 0 : index
    %c0_61 = arith.constant 0 : index
    %c512_62 = arith.constant 512 : index
    %183 = vector.load %arg4[%c0_60, %c0_61, %c512_62] : memref<1x128x1024xbf16, #tpu.memory_space<vmem>>, vector<1x128x512xbf16>
    %184 = vector.shape_cast %183 : vector<1x128x512xbf16> to vector<128x512xbf16>
    %cst_63 = arith.constant dense<0.000000e+00> : vector<32x512xf32>
    %185 = tpu.matmul %182, %184, %cst_63 {dimension_numbers = #tpu.dot_dimension_numbers<[1], [0], [0], [1], [0, 0, 1, 1], [], []>} : vector<32x128xbf16>, vector<128x512xbf16>, vector<32x512xf32> -> vector<32x512xf32>
    %c0_64 = arith.constant 0 : index
    %c0_65 = arith.constant 0 : index
    %c1152 = arith.constant 1152 : index
    %186 = vector.load %arg6[%c0_64, %c0_65, %c1152] : memref<1x1x1664xf32, #tpu.memory_space<vmem>>, vector<1x1x512xf32>
    %187 = vector.shape_cast %186 : vector<1x1x512xf32> to vector<1x512xf32>
    %188 = vector.broadcast %187 : vector<1x512xf32> to vector<32x512xf32>
    %189 = arith.addf %185, %188 : vector<32x512xf32>
    %cst_66 = arith.constant 5.000000e-01 : f32
    %190 = vector.broadcast %cst_66 : f32 to vector<32x512xf32>
    %191 = arith.mulf %190, %189 : vector<32x512xf32>
    %cst_67 = arith.constant 0.707106769 : f32
    %192 = vector.broadcast %cst_67 : f32 to vector<32x512xf32>
    %193 = arith.mulf %189, %192 : vector<32x512xf32>
    %cst_68 = arith.constant 0.000000e+00 : f32
    %194 = vector.broadcast %cst_68 : f32 to vector<32x512xf32>
    %195 = arith.cmpf oge, %193, %194 : vector<32x512xf32>
    %cst_69 = arith.constant 1.000000e+00 : f32
    %cst_70 = arith.constant -1.000000e+00 : f32
    %196 = vector.broadcast %cst_69 : f32 to vector<32x512xf32>
    %197 = vector.broadcast %cst_70 : f32 to vector<32x512xf32>
    %198 = arith.select %195, %196, %197 : vector<32x512xi1>, vector<32x512xf32>
    %199 = math.absf %193 : vector<32x512xf32>
    %cst_71 = arith.constant 0.327591091 : f32
    %200 = vector.broadcast %cst_71 : f32 to vector<32x512xf32>
    %201 = arith.mulf %200, %199 : vector<32x512xf32>
    %cst_72 = arith.constant 1.000000e+00 : f32
    %202 = vector.broadcast %cst_72 : f32 to vector<32x512xf32>
    %203 = arith.addf %202, %201 : vector<32x512xf32>
    %204 = tpu.reciprocal %203 {approx = true} : vector<32x512xf32> -> vector<32x512xf32>
    %cst_73 = arith.constant 1.06140542 : f32
    %205 = vector.broadcast %cst_73 : f32 to vector<32x512xf32>
    %206 = arith.mulf %205, %204 : vector<32x512xf32>
    %cst_74 = arith.constant -1.45315206 : f32
    %207 = vector.broadcast %cst_74 : f32 to vector<32x512xf32>
    %208 = arith.addf %206, %207 : vector<32x512xf32>
    %209 = arith.mulf %208, %204 : vector<32x512xf32>
    %cst_75 = arith.constant 1.42141378 : f32
    %210 = vector.broadcast %cst_75 : f32 to vector<32x512xf32>
    %211 = arith.addf %209, %210 : vector<32x512xf32>
    %212 = arith.mulf %211, %204 : vector<32x512xf32>
    %cst_76 = arith.constant -0.284496725 : f32
    %213 = vector.broadcast %cst_76 : f32 to vector<32x512xf32>
    %214 = arith.addf %212, %213 : vector<32x512xf32>
    %215 = arith.mulf %214, %204 : vector<32x512xf32>
    %cst_77 = arith.constant 0.254829586 : f32
    %216 = vector.broadcast %cst_77 : f32 to vector<32x512xf32>
    %217 = arith.addf %215, %216 : vector<32x512xf32>
    %218 = arith.mulf %217, %204 : vector<32x512xf32>
    %cst_78 = arith.constant 0.000000e+00 : f32
    %219 = vector.broadcast %cst_78 : f32 to vector<32x512xf32>
    %220 = arith.subf %219, %199 : vector<32x512xf32>
    %221 = arith.mulf %220, %199 : vector<32x512xf32>
    %222 = math.exp %221 : vector<32x512xf32>
    %223 = arith.mulf %218, %222 : vector<32x512xf32>
    %cst_79 = arith.constant 1.000000e+00 : f32
    %224 = vector.broadcast %cst_79 : f32 to vector<32x512xf32>
    %225 = arith.subf %224, %223 : vector<32x512xf32>
    %226 = arith.mulf %198, %225 : vector<32x512xf32>
    %cst_80 = arith.constant 1.000000e+00 : f32
    %227 = vector.broadcast %cst_80 : f32 to vector<32x512xf32>
    %228 = arith.addf %227, %226 : vector<32x512xf32>
    %229 = arith.mulf %191, %228 : vector<32x512xf32>
    %230 = arith.truncf %229 : vector<32x512xf32> to vector<32x512xbf16>
    %c0_81 = arith.constant 0 : index
    %c0_82 = arith.constant 0 : index
    %c0_83 = arith.constant 0 : index
    %231 = vector.load %arg5[%c0_81, %c0_82, %c0_83] : memref<1x512x128xbf16, #tpu.memory_space<vmem>>, vector<1x512x128xbf16>
    %232 = vector.shape_cast %231 : vector<1x512x128xbf16> to vector<512x128xbf16>
    %cst_84 = arith.constant dense<0.000000e+00> : vector<32x128xf32>
    %233 = tpu.matmul %230, %232, %cst_84 {dimension_numbers = #tpu.dot_dimension_numbers<[1], [0], [0], [1], [0, 0, 1, 1], [], []>} : vector<32x512xbf16>, vector<512x128xbf16>, vector<32x128xf32> -> vector<32x128xf32>
    %c0_85 = arith.constant 0 : index
    %c0_86 = arith.constant 0 : index
    %c640 = arith.constant 640 : index
    %234 = vector.load %arg6[%c0_85, %c0_86, %c640] : memref<1x1x1664xf32, #tpu.memory_space<vmem>>, vector<1x1x128xf32>
    %235 = vector.shape_cast %234 : vector<1x1x128xf32> to vector<1x128xf32>
    %236 = vector.broadcast %235 : vector<1x128xf32> to vector<32x128xf32>
    %237 = arith.addf %233, %236 : vector<32x128xf32>
    %238 = arith.addf %157, %237 : vector<32x128xf32>
    %c0_87 = arith.constant 0 : index
    %c0_88 = arith.constant 0 : index
    %239 = vector.load %arg7[%c0_87, %c0_88] : memref<32x128xf32, #tpu.memory_space<vmem>>, vector<32x128xf32>
    tpu.vector_store %arg7[%c0_87, %c0_88], %238 {strides = array<i32>} : memref<32x128xf32, #tpu.memory_space<vmem>>, vector<32x128xf32>,
    return
  }
  func.func @transform_0(%arg0: i32) -> (i32, i32) {
    %c0_i32 = arith.constant 0 : i32
    %c0_i32_0 = arith.constant 0 : i32
    %c0_i32_1 = arith.constant 0 : i32
    return %c0_i32, %c0_i32_0 : i32, i32
  }
  func.func @transform_1(%arg0: i32) -> (i32, i32) {
    %c0_i32 = arith.constant 0 : i32
    %c0_i32_0 = arith.constant 0 : i32
    %c0_i32_1 = arith.constant 0 : i32
    return %c0_i32, %c0_i32_0 : i32, i32
  }
  func.func @transform_2(%arg0: i32) -> (i32, i32) {
    %c0_i32 = arith.constant 0 : i32
    %c0_i32_0 = arith.constant 0 : i32
    %c0_i32_1 = arith.constant 0 : i32
    return %c0_i32, %c0_i32_0 : i32, i32
  }
  func.func @transform_3(%arg0: i32) -> (i32, i32, i32) {
    %c0_i32 = arith.constant 0 : i32
    %c0_i32_0 = arith.constant 0 : i32
    %c0_i32_1 = arith.constant 0 : i32
    return %arg0, %c0_i32, %c0_i32_0 : i32, i32, i32
  }
  func.func @transform_4(%arg0: i32) -> (i32, i32, i32) {
    %c0_i32 = arith.constant 0 : i32
    %c0_i32_0 = arith.constant 0 : i32
    %c0_i32_1 = arith.constant 0 : i32
    return %arg0, %c0_i32, %c0_i32_0 : i32, i32, i32
  }
  func.func @transform_5(%arg0: i32) -> (i32, i32, i32) {
    %c0_i32 = arith.constant 0 : i32
    %c0_i32_0 = arith.constant 0 : i32
    %c0_i32_1 = arith.constant 0 : i32
    return %arg0, %c0_i32, %c0_i32_0 : i32, i32, i32
  }
  func.func @transform_6(%arg0: i32) -> (i32, i32) {
    %c0_i32 = arith.constant 0 : i32
    %c0_i32_0 = arith.constant 0 : i32
    %c0_i32_1 = arith.constant 0 : i32
    return %c0_i32, %c0_i32_0 : i32, i32
  }
}

</mosaic_0001>

<llo_original>
// kernel: transformer_encoder.1
$region0: #{transformer_encoder.1}
  #allocation0 [shape = 'u32[]', space=smem, size = 0x4, offset = 0x4, fixed_abs, tag = 'smem constant byte address 0x4 - core index']
  #allocation1 [shape = 'u32[144,128]{1,0:T(1,128)}', space=vmem, size = 0x12000, scoped, tag = 'internal scratch']
  %s0 = inlined_call_operand.vmem [shape: f32[32,128], index: 0, kind: input, shape index: {}]
  %s1 = inlined_call_operand.vmem [shape: f32[128,128], index: 1, kind: input, shape index: {}]
  %s2 = inlined_call_operand.vmem [shape: f32[128,16], index: 2, kind: input, shape index: {}]
  %s3 = inlined_call_operand.hbm [shape: bf16[4,128,1024], index: 3, kind: input, shape index: {}]
  %s4 = inlined_call_operand.hbm [shape: bf16[4,512,128], index: 4, kind: input, shape index: {}]
  %s5 = inlined_call_operand.hbm [shape: f32[4,1,1664], index: 5, kind: input, shape index: {}]
  %s6 = inlined_call_operand.hbm [shape: f32[32,128], index: 6, kind: output, shape index: {}]
  %s7 = sld [smem:[#allocation0]]
  $region73: #{transformer_encoder.1} parent=0
    _
  %s9 = ssub.s32 1, %s7
  %s10 = scalar_select 0, %s9, %s7
  $region1: #{transformer_encoder.1} parent=0
    #allocation2 [shape = 'u8[524288]{0}', space=vmem, size = 0x80000, scoped, tag = 'input window, operand 3']
    #allocation3 [shape = 's32[2]{0}', space=sflag, size = 0x8, scoped, tag = 'scoped memory for transformer_encoder.1']
    #allocation4 [shape = 's32[2]{0}', space=sflag, size = 0x8, scoped, tag = 'scoped memory for transformer_encoder.1']
    #allocation5 [shape = 'u8[262144]{0}', space=vmem, size = 0x40000, scoped, tag = 'input window, operand 4']
    #allocation6 [shape = 's32[2]{0}', space=sflag, size = 0x8, scoped, tag = 'scoped memory for transformer_encoder.1']
    #allocation7 [shape = 'u8[13312]{0}', space=vmem, size = 0x3400, scoped, tag = 'input window, operand 5']
    #allocation8 [shape = 'u8[16384]{0}', space=vmem, size = 0x4000, scoped, tag = 'output window, operand 0, single buffered']
    %11 = vsyncpa [#allocation3], 0
    %s12 = scalar_lea.sflag [#allocation3], 1
    %13 = vsyncpa %s12, 0
    %14 = vsyncpa [#allocation6], 0
    %s15 = scalar_lea.sflag [#allocation6], 1
    %16 = vsyncpa %s15, 0
    %17 = vsyncpa [#allocation4], 0
    loop: start=0, step=1, limit=6
    $region2: #{transformer_encoder.1} parent=1 // loop_pre_header
      _
    $region3: #{transformer_encoder.1} parent=1 // loop_header
      %s19 = sphi 0, %s23
      %p20 = scmp.ge.s32.totalorder %s19, 6
      %s27 = sphi 0, %s27
      %s29 = sphi 0, %s27
      %s30 = sphi 0, %s29
      %s44 = sphi 0, %s30
      %s48 = sphi 0, %s48
      %s50 = sphi 0, %s48
      %s51 = sphi 0, %s50
      %s65 = sphi 0, %s51
      %s69 = sphi 0, %s69
      %s71 = sphi 0, %s69
      %s72 = sphi 0, %s71
      %s86 = sphi 0, %s72
      %s92 = sphi 0, %s94
      %s95 = sphi 0, %s92
      %s96 = sphi 0, %s95
      %s112 = sphi 0, %s96
      %s118 = sphi 0, %s120
      %s121 = sphi 0, %s118
      %s122 = sphi 0, %s121
      %s138 = sphi 0, %s122
      %s144 = sphi 0, %s146
      %s147 = sphi 0, %s144
      %s148 = sphi 0, %s147
      %s164 = sphi 0, %s148
      %s168 = sphi 0, %s168
      %s170 = sphi 0, %s168
      %s171 = sphi 0, %s170
      %s185 = sphi 0, %s171
    $region4: #{transformer_encoder.1} parent=1 // loop_header_branch
      %22 = sbr.rel (%p20) target = $region8
    $region5: #{transformer_encoder.1} parent=1 // loop_body
      %s24 = ssub.s32 %s19, 1
      %s25 = ssub.s32 %s19, 2
      %s26 = sadd.s32 %s19, 1
      %s28 = sadd.s32 %s27, 1
      %p31 = scmp.eq.s32.totalorder %s19, 3
      %p32 = scmp.ne.s32.totalorder %s27, %s29
      %p33 = scmp.eq.s32.totalorder %s19, 0
      %p34 = por %p32, %p33
      %p35 = scmp.ne.s32.totalorder %s27, %s29
      %p36 = scmp.eq.s32.totalorder %s24, 3
      %p37 = por %p35, %p36
      %p38 = scmp.ne.s32.totalorder %s29, %s30
      %p39 = scmp.eq.s32.totalorder %s24, 0
      %p40 = por %p38, %p39
      %p41 = scmp.ne.s32.totalorder %s29, %s30
      %p42 = scmp.eq.s32.totalorder %s25, 3
      %p43 = por %p41, %p42
      %p45 = scmp.ne.s32.totalorder %s30, %s44
      %p46 = scmp.eq.s32.totalorder %s25, 0
      %p47 = por %p45, %p46
      %s49 = sadd.s32 %s48, 1
      %p52 = scmp.eq.s32.totalorder %s19, 3
      %p53 = scmp.ne.s32.totalorder %s48, %s50
      %p54 = scmp.eq.s32.totalorder %s19, 0
      %p55 = por %p53, %p54
      %p56 = scmp.ne.s32.totalorder %s48, %s50
      %p57 = scmp.eq.s32.totalorder %s24, 3
      %p58 = por %p56, %p57
      %p59 = scmp.ne.s32.totalorder %s50, %s51
      %p60 = scmp.eq.s32.totalorder %s24, 0
      %p61 = por %p59, %p60
      %p62 = scmp.ne.s32.totalorder %s50, %s51
      %p63 = scmp.eq.s32.totalorder %s25, 3
      %p64 = por %p62, %p63
      %p66 = scmp.ne.s32.totalorder %s51, %s65
      %p67 = scmp.eq.s32.totalorder %s25, 0
      %p68 = por %p66, %p67
      %s70 = sadd.s32 %s69, 1
      %p73 = scmp.eq.s32.totalorder %s19, 3
      %p74 = scmp.ne.s32.totalorder %s69, %s71
      %p75 = scmp.eq.s32.totalorder %s19, 0
      %p76 = por %p74, %p75
      %p77 = scmp.ne.s32.totalorder %s69, %s71
      %p78 = scmp.eq.s32.totalorder %s24, 3
      %p79 = por %p77, %p78
      %p80 = scmp.ne.s32.totalorder %s71, %s72
      %p81 = scmp.eq.s32.totalorder %s24, 0
      %p82 = por %p80, %p81
      %p83 = scmp.ne.s32.totalorder %s71, %s72
      %p84 = scmp.eq.s32.totalorder %s25, 3
      %p85 = por %p83, %p84
      %p87 = scmp.ne.s32.totalorder %s72, %s86
      %p88 = scmp.eq.s32.totalorder %s25, 0
      %p89 = por %p87, %p88
      %s90 = ssub.s32 %s19, %s26
      %p91 = scmp.eq.s32.totalorder %s90, 0
      %s93 = sadd.s32 %s92, 1
      %s94 = scalar_select %p91, %s92, %s93
      %p97 = pneg %p91
      %p98 = scmp.eq.s32.totalorder %s19, 3
      %p99 = por %p97, %p98
      %p100 = scmp.ne.s32.totalorder %s92, %s95
      %p101 = scmp.eq.s32.totalorder %s19, 0
      %p102 = por %p100, %p101
      %p103 = scmp.ne.s32.totalorder %s92, %s95
      %p104 = scmp.eq.s32.totalorder %s24, 3
      %p105 = por %p103, %p104
      %p106 = scmp.ne.s32.totalorder %s95, %s96
      %p107 = scmp.eq.s32.totalorder %s24, 0
      %p108 = por %p106, %p107
      %p109 = scmp.ne.s32.totalorder %s95, %s96
      %p110 = scmp.eq.s32.totalorder %s25, 3
      %p111 = por %p109, %p110
      %p113 = scmp.ne.s32.totalorder %s96, %s112
      %p114 = scmp.eq.s32.totalorder %s25, 0
      %p115 = por %p113, %p114
      %s116 = ssub.s32 %s19, %s26
      %p117 = scmp.eq.s32.totalorder %s116, 0
      %s119 = sadd.s32 %s118, 1
      %s120 = scalar_select %p117, %s118, %s119
      %p123 = pneg %p117
      %p124 = scmp.eq.s32.totalorder %s19, 3
      %p125 = por %p123, %p124
      %p126 = scmp.ne.s32.totalorder %s118, %s121
      %p127 = scmp.eq.s32.totalorder %s19, 0
      %p128 = por %p126, %p127
      %p129 = scmp.ne.s32.totalorder %s118, %s121
      %p130 = scmp.eq.s32.totalorder %s24, 3
      %p131 = por %p129, %p130
      %p132 = scmp.ne.s32.totalorder %s121, %s122
      %p133 = scmp.eq.s32.totalorder %s24, 0
      %p134 = por %p132, %p133
      %p135 = scmp.ne.s32.totalorder %s121, %s122
      %p136 = scmp.eq.s32.totalorder %s25, 3
      %p137 = por %p135, %p136
      %p139 = scmp.ne.s32.totalorder %s122, %s138
      %p140 = scmp.eq.s32.totalorder %s25, 0
      %p141 = por %p139, %p140
      %s142 = ssub.s32 %s19, %s26
      %p143 = scmp.eq.s32.totalorder %s142, 0
      %s145 = sadd.s32 %s144, 1
      %s146 = scalar_select %p143, %s144, %s145
      %p149 = pneg %p143
      %p150 = scmp.eq.s32.totalorder %s19, 3
      %p151 = por %p149, %p150
      %p152 = scmp.ne.s32.totalorder %s144, %s147
      %p153 = scmp.eq.s32.totalorder %s19, 0
      %p154 = por %p152, %p153
      %p155 = scmp.ne.s32.totalorder %s144, %s147
      %p156 = scmp.eq.s32.totalorder %s24, 3
      %p157 = por %p155, %p156
      %p158 = scmp.ne.s32.totalorder %s147, %s148
      %p159 = scmp.eq.s32.totalorder %s24, 0
      %p160 = por %p158, %p159
      %p161 = scmp.ne.s32.totalorder %s147, %s148
      %p162 = scmp.eq.s32.totalorder %s25, 3
      %p163 = por %p161, %p162
      %p165 = scmp.ne.s32.totalorder %s148, %s164
      %p166 = scmp.eq.s32.totalorder %s25, 0
      %p167 = por %p165, %p166
      %s169 = sadd.s32 %s168, 1
      %p172 = scmp.eq.s32.totalorder %s19, 3
      %p173 = scmp.ne.s32.totalorder %s168, %s170
      %p174 = scmp.eq.s32.totalorder %s19, 0
      %p175 = por %p173, %p174
      %p176 = scmp.ne.s32.totalorder %s168, %s170
      %p177 = scmp.eq.s32.totalorder %s24, 3
      %p178 = por %p176, %p177
      %p179 = scmp.ne.s32.totalorder %s170, %s171
      %p180 = scmp.eq.s32.totalorder %s24, 0
      %p181 = por %p179, %p180
      %p182 = scmp.ne.s32.totalorder %s170, %s171
      %p183 = scmp.eq.s32.totalorder %s25, 3
      %p184 = por %p182, %p183
      %p186 = scmp.ne.s32.totalorder %s171, %s185
      %p187 = scmp.eq.s32.totalorder %s25, 0
      %p188 = por %p186, %p187
      %p189 = scmp.le.s32.totalorder 1, %s19
      %p190 = scmp.lt.s32.totalorder %s19, 5
      %p191 = pnand %p189, %p190
      %p192 = pneg %p191
      // Predicated region
      $region9: #{transformer_encoder.1} parent=5 // pred_check
        _
      $region10: #{transformer_encoder.1} parent=5 // pred_check_branch
        %194 = sbr.rel (%p191) target = $region12
      $region11: #{transformer_encoder.1} parent=5 // pred_region
        %s195 = ssub.s32 %s19, 1
        // Predicated region
        $region13: #{transformer_encoder.1} parent=11 // pred_check
          %p196 = pneg %p40
        $region14: #{transformer_encoder.1} parent=11 // pred_check_branch
          %198 = sbr.rel (%p196) target = $region16
        $region15: #{transformer_encoder.1} parent=11 // pred_region
          _
        $region16: #{transformer_encoder.1} parent=11 // pred_fallthru
          _
        // Predicated region
        $region17: #{transformer_encoder.1} parent=11 // pred_check
          %p199 = pneg %p61
        $region18: #{transformer_encoder.1} parent=11 // pred_check_branch
          %201 = sbr.rel (%p199) target = $region20
        $region19: #{transformer_encoder.1} parent=11 // pred_region
          _
        $region20: #{transformer_encoder.1} parent=11 // pred_fallthru
          _
        // Predicated region
        $region21: #{transformer_encoder.1} parent=11 // pred_check
          %p202 = pneg %p82
        $region22: #{transformer_encoder.1} parent=11 // pred_check_branch
          %204 = sbr.rel (%p202) target = $region24
        $region23: #{transformer_encoder.1} parent=11 // pred_region
          _
        $region24: #{transformer_encoder.1} parent=11 // pred_fallthru
          _
      $region12: #{transformer_encoder.1} parent=5 // pred_fallthru
        _
      %p205 = scmp.lt.s32.totalorder %s19, 4
      // Predicated region
      $region25: #{transformer_encoder.1} parent=5 // pred_check
        %p206 = pneg %p205
      $region26: #{transformer_encoder.1} parent=5 // pred_check_branch
        %208 = sbr.rel (%p206) target = $region28
      $region27: #{transformer_encoder.1} parent=5 // pred_region
        // Predicated region
        $region29: #{transformer_encoder.1} parent=27 // pred_check
          %p209 = pneg %p102
        $region30: #{transformer_encoder.1} parent=27 // pred_check_branch
          %211 = sbr.rel (%p209) target = $region32
        $region31: #{transformer_encoder.1} parent=27 // pred_region
          %s212 = sand.u32 %s92, 1
          %s213 = scalar_lea.sflag [#allocation3], %s212
          %s214 = sand.u32 %s92, 1
          %s215 = smul.addr %s214, 512
          %s216 = scalar_lea.vmem [#allocation2], %s215
          %s218 = ssub.s32 8192, 8192
          %219 = vsyncadd %s213, %s218
          %s220 = smul.addr %s19, 128
          %s221 = smul.addr %s220, 64
          %s222 = scalar_lea.hbm %s3, %s221
          %s223 = sshll.u32 %s216, 4
          %s224 = int_to_ptr.vmem [resolvable:$true] %s223
          %229 = dma.hbm_to_vmem [thread:$0]  %s222, 8192, %s224, %s213, 512, 512, 32
        $region32: #{transformer_encoder.1} parent=27 // pred_fallthru
          _
        // Predicated region
        $region33: #{transformer_encoder.1} parent=27 // pred_check
          %p230 = pneg %p128
        $region34: #{transformer_encoder.1} parent=27 // pred_check_branch
          %232 = sbr.rel (%p230) target = $region36
        $region35: #{transformer_encoder.1} parent=27 // pred_region
          %s233 = sand.u32 %s19, 1
          %s234 = scalar_lea.sflag [#allocation6], %s233
          %s235 = sand.u32 %s118, 1
          %s236 = smul.addr %s235, 256
          %s237 = scalar_lea.vmem [#allocation5], %s236
          %s239 = ssub.s32 4096, 4096
          %240 = vsyncadd %s234, %s239
          %s241 = smul.addr %s19, 64
          %s242 = smul.addr %s241, 64
          %s243 = scalar_lea.hbm %s4, %s242
          %s244 = sshll.u32 %s237, 4
          %s245 = int_to_ptr.vmem [resolvable:$true] %s244
          %250 = dma.hbm_to_vmem [thread:$0]  %s243, 4096, %s245, %s234, 64, 64, 4
        $region36: #{transformer_encoder.1} parent=27 // pred_fallthru
          _
        // Predicated region
        $region37: #{transformer_encoder.1} parent=27 // pred_check
          %p251 = pneg %p154
        $region38: #{transformer_encoder.1} parent=27 // pred_check_branch
          %253 = sbr.rel (%p251) target = $region40
        $region39: #{transformer_encoder.1} parent=27 // pred_region
          %s254 = sand.u32 %s19, 1
          %s255 = scalar_lea.sflag [#allocation6], %s254
          %s256 = sand.u32 %s144, 1
          %s257 = smul.addr %s256, 13
          %s258 = scalar_lea.vmem [#allocation7], %s257
          %s260 = ssub.s32 208, 208
          %261 = vsyncadd %s255, %s260
          %s262 = smul.addr %s19, 13
          %s263 = smul.addr %s262, 16
          %s264 = scalar_lea.hbm %s5, %s263
          %s266 = sshll.u32 %s258, 4
          %s267 = int_to_ptr.vmem [resolvable:$true] %s266
          %269 = dma.hbm_to_vmem [thread:$0]  %s264, 208, %s267, %s255
        $region40: #{transformer_encoder.1} parent=27 // pred_fallthru
          _
      $region28: #{transformer_encoder.1} parent=5 // pred_fallthru
        _
      %p270 = scmp.le.s32.totalorder 1, %s19
      %p271 = scmp.lt.s32.totalorder %s19, 5
      %p272 = pnand %p270, %p271
      %p273 = pneg %p272
      // Predicated region
      $region41: #{transformer_encoder.1} parent=5 // pred_check
        _
      $region42: #{transformer_encoder.1} parent=5 // pred_check_branch
        %275 = sbr.rel (%p272) target = $region44
      $region43: #{transformer_encoder.1} parent=5 // pred_region
        %s276 = ssub.s32 %s19, 1
        %s277 = sand.u32 %s95, 1
        %s278 = scalar_lea.sflag [#allocation3], %s277
        %s279 = sand.u32 %s95, 1
        %s280 = smul.addr %s279, 512
        %s281 = scalar_lea.vmem [#allocation2], %s280
        // Predicated region
        $region45: #{transformer_encoder.1} parent=43 // pred_check
          %p282 = pneg %p108
        $region46: #{transformer_encoder.1} parent=43 // pred_check_branch
          %284 = sbr.rel (%p282) target = $region48
        $region47: #{transformer_encoder.1} parent=43 // pred_region
          %285 = dma.done %s278, 8192
        $region48: #{transformer_encoder.1} parent=43 // pred_fallthru
          _
        %s286 = sand.u32 %s24, 1
        %s287 = scalar_lea.sflag [#allocation6], %s286
        %s288 = sand.u32 %s121, 1
        %s289 = smul.addr %s288, 256
        %s290 = scalar_lea.vmem [#allocation5], %s289
        // Predicated region
        $region49: #{transformer_encoder.1} parent=43 // pred_check
          %p291 = pneg %p134
        $region50: #{transformer_encoder.1} parent=43 // pred_check_branch
          %293 = sbr.rel (%p291) target = $region52
        $region51: #{transformer_encoder.1} parent=43 // pred_region
          %294 = dma.done %s287, 4096
        $region52: #{transformer_encoder.1} parent=43 // pred_fallthru
          _
        %s295 = sand.u32 %s24, 1
        %s296 = scalar_lea.sflag [#allocation6], %s295
        %s297 = sand.u32 %s147, 1
        %s298 = smul.addr %s297, 13
        %s299 = scalar_lea.vmem [#allocation7], %s298
        // Predicated region
        $region53: #{transformer_encoder.1} parent=43 // pred_check
          %p300 = pneg %p160
        $region54: #{transformer_encoder.1} parent=43 // pred_check_branch
          %302 = sbr.rel (%p300) target = $region56
        $region55: #{transformer_encoder.1} parent=43 // pred_region
          %303 = dma.done %s296, 208
        $region56: #{transformer_encoder.1} parent=43 // pred_fallthru
          _
        %p304 = pneg %p40
        %p305 = pneg %p37
        %p306 = pneg %p61
        %p307 = pneg %p58
        %p308 = pneg %p82
        %p309 = pneg %p79
        %s310 = sand.u32 %s95, 1
        %s311 = scalar_lea.sflag [#allocation3], %s310
        %s312 = sand.u32 %s95, 1
        %s313 = smul.addr %s312, 512
        %s314 = scalar_lea.vmem [#allocation2], %s313
        %p315 = pneg %p108
        %p316 = pneg %p105
        %s317 = sand.u32 %s24, 1
        %s318 = scalar_lea.sflag [#allocation6], %s317
        %s319 = sand.u32 %s121, 1
        %s320 = smul.addr %s319, 256
        %s321 = scalar_lea.vmem [#allocation5], %s320
        %p322 = pneg %p134
        %p323 = pneg %p131
        %s324 = sand.u32 %s24, 1
        %s325 = scalar_lea.sflag [#allocation6], %s324
        %s326 = sand.u32 %s147, 1
        %s327 = smul.addr %s326, 13
        %s328 = scalar_lea.vmem [#allocation7], %s327
        %p329 = pneg %p160
        %p330 = pneg %p157
        %p331 = pneg %p181
        %p332 = pneg %p178
        %p334 = scmp.eq.s32.totalorder %s24, 0
        // Predicated region
        $region57: #{transformer_encoder.1} parent=43 // pred_check
          %p335 = pneg %p334
        $region58: #{transformer_encoder.1} parent=43 // pred_check_branch
          %337 = sbr.rel (%p335) target = $region60
        $region59: #{transformer_encoder.1} parent=43 // pred_region
          %v338 = vld [vmem:[%s0] sm:$0xff]
          %v339 = vld [vmem:[%s0 + $0x8] sm:$0xff]
          %v340 = vld [vmem:[%s0 + $0x10] sm:$0xff]
          %v341 = vld [vmem:[%s0 + $0x18] sm:$0xff]
          %342 = vst [vmem:[#allocation8] sm:$0xff] %v338
          %343 = vst [vmem:[#allocation8 + $0x8] sm:$0xff] %v339
          %344 = vst [vmem:[#allocation8 + $0x10] sm:$0xff] %v340
          %345 = vst [vmem:[#allocation8 + $0x18] sm:$0xff] %v341
        $region60: #{transformer_encoder.1} parent=43 // pred_fallthru
          _
        %v346 = vld [vmem:[#allocation8] sm:$0xff]
        %v347 = vld [vmem:[#allocation8 + $0x8] sm:$0xff]
        %v348 = vld [vmem:[#allocation8 + $0x10] sm:$0xff]
        %v349 = vld [vmem:[#allocation8 + $0x18] sm:$0xff]
        %v350 = vld [vmem:[%s299] sm:$0x1]
        %v351 = vld [vmem:[%s299 + $0x1] sm:$0x1]
        %352 = vadd.xlane.f32.xlu0 %v346
        %v353 = vpop.xlane.xlu0 %352
        %354 = vadd.xlane.f32.xlu0 %v347
        %v355 = vpop.xlane.xlu0 %354
        %356 = vadd.xlane.f32.xlu0 %v348
        %v357 = vpop.xlane.xlu0 %356
        %358 = vadd.xlane.f32.xlu0 %v349
        %v359 = vpop.xlane.xlu0 %358
        %v360 = vrcp.pop 128.0
        %v361 = vmul.f32 %v353, %v360
        %v362 = vmul.f32 %v355, %v360
        %v363 = vmul.f32 %v357, %v360
        %v364 = vmul.f32 %v359, %v360
        %v365 = vsub.f32 %v346, %v361
        %v366 = vsub.f32 %v347, %v362
        %v367 = vsub.f32 %v348, %v363
        %v368 = vsub.f32 %v349, %v364
        %v369 = vmul.f32 %v365, %v365
        %v370 = vmul.f32 %v366, %v366
        %v371 = vmul.f32 %v367, %v367
        %v372 = vmul.f32 %v368, %v368
        %373 = vadd.xlane.f32.xlu0 %v369
        %v374 = vpop.xlane.xlu0 %373
        %375 = vadd.xlane.f32.xlu0 %v370
        %v376 = vpop.xlane.xlu0 %375
        %377 = vadd.xlane.f32.xlu0 %v371
        %v378 = vpop.xlane.xlu0 %377
        %379 = vadd.xlane.f32.xlu0 %v372
        %v380 = vpop.xlane.xlu0 %379
        %v381 = vmul.f32 %v374, %v360
        %v382 = vmul.f32 %v376, %v360
        %v383 = vmul.f32 %v378, %v360
        %v384 = vmul.f32 %v380, %v360
        %v385 = vadd.f32 %v381, 1e-05
        %v386 = vadd.f32 %v382, 1e-05
        %v387 = vadd.f32 %v383, 1e-05
        %v388 = vadd.f32 %v384, 1e-05
        %v389 = vrsqrt.pop %v385
        %v390 = vrsqrt.pop %v386
        %v391 = vrsqrt.pop %v387
        %v392 = vrsqrt.pop %v388
        %v393 = vmul.f32 %v365, %v389
        %v394 = vmul.f32 %v366, %v390
        %v395 = vmul.f32 %v367, %v391
        %v396 = vmul.f32 %v368, %v392
        %v398 = vlaneseq
        %v399 = vshrl.u32 %v398, 7
        %v400 = vsub.s32 0, %v399
        %v401 = vrot.slane %v350, %v400
        %v403 = vmul.f32 %v393, %v401
        %v404 = vmul.f32 %v394, %v401
        %v405 = vmul.f32 %v395, %v401
        %v406 = vmul.f32 %v396, %v401
        %v408 = vlaneseq
        %v409 = vshrl.u32 %v408, 7
        %v410 = vsub.s32 0, %v409
        %v411 = vrot.slane %v351, %v410
        %v413 = vadd.f32 %v403, %v411
        %v414 = vadd.f32 %v404, %v411
        %v415 = vadd.f32 %v405, %v411
        %v416 = vadd.f32 %v406, %v411
        %v417 = vpack.c.bf16 %v414, %v413
        %v418 = vpack.c.bf16 %v416, %v415
        %v419 = vld [vmem:[%s281] sm:$0xff]
        %v420 = vld [vmem:[%s281 + $0x8] sm:$0xf]
        %v421 = vld [vmem:[%s281 + $0x20] sm:$0xff]
        %v422 = vld [vmem:[%s281 + $0x28] sm:$0xf]
        %v423 = vld [vmem:[%s281 + $0x40] sm:$0xff]
        %v424 = vld [vmem:[%s281 + $0x48] sm:$0xf]
        %v425 = vld [vmem:[%s281 + $0x60] sm:$0xff]
        %v426 = vld [vmem:[%s281 + $0x68] sm:$0xf]
        %v427 = vld [vmem:[%s281 + $0x80] sm:$0xff]
        %v428 = vld [vmem:[%s281 + $0x88] sm:$0xf]
        %v429 = vld [vmem:[%s281 + $0xa0] sm:$0xff]
        %v430 = vld [vmem:[%s281 + $0xa8] sm:$0xf]
        %v431 = vld [vmem:[%s281 + $0xc0] sm:$0xff]
        %v432 = vld [vmem:[%s281 + $0xc8] sm:$0xf]
        %v433 = vld [vmem:[%s281 + $0xe0] sm:$0xff]
        %v434 = vld [vmem:[%s281 + $0xe8] sm:$0xf]
        %v435 = vld [vmem:[%s281 + $0x100] sm:$0xff]
        %v436 = vld [vmem:[%s281 + $0x108] sm:$0xf]
        %v437 = vld [vmem:[%s281 + $0x120] sm:$0xff]
        %v438 = vld [vmem:[%s281 + $0x128] sm:$0xf]
        %v439 = vld [vmem:[%s281 + $0x140] sm:$0xff]
        %v440 = vld [vmem:[%s281 + $0x148] sm:$0xf]
        %v441 = vld [vmem:[%s281 + $0x160] sm:$0xff]
        %v442 = vld [vmem:[%s281 + $0x168] sm:$0xf]
        %v443 = vld [vmem:[%s281 + $0x180] sm:$0xff]
        %v444 = vld [vmem:[%s281 + $0x188] sm:$0xf]
        %v445 = vld [vmem:[%s281 + $0x1a0] sm:$0xff]
        %v446 = vld [vmem:[%s281 + $0x1a8] sm:$0xf]
        %v447 = vld [vmem:[%s281 + $0x1c0] sm:$0xff]
        %v448 = vld [vmem:[%s281 + $0x1c8] sm:$0xf]
        %v449 = vld [vmem:[%s281 + $0x1e0] sm:$0xff]
        %v450 = vld [vmem:[%s281 + $0x1e8] sm:$0xf]
        %v451 = vld [vmem:[%s299 + $0x6] sm:$0x7]
        %v453 = vlaneseq
        %v454 = vshrl.u32 %v453, 7
        %v455 = vsub.s32 0, %v454
        %v456 = vrot.slane %v451, %v455
        %v457 = vlaneseq
        %v458 = vshrl.u32 %v457, 7
        %v459 = vsub.s32 1, %v458
        %v460 = vrot.slane %v451, %v459
        %v461 = vlaneseq
        %v462 = vshrl.u32 %v461, 7
        %v463 = vsub.s32 2, %v462
        %v464 = vrot.slane %v451, %v463
        %v500 = vunpack.c.l.b16 %v419
        %v501 = vunpack.c.h.b16 %v419
        %v502 = vunpack.c.l.b16 %v420
        %v503 = vunpack.c.l.b16 %v421
        %v504 = vunpack.c.h.b16 %v421
        %v505 = vunpack.c.l.b16 %v422
        %v506 = vunpack.c.l.b16 %v423
        %v507 = vunpack.c.h.b16 %v423
        %v508 = vunpack.c.l.b16 %v424
        %v509 = vunpack.c.l.b16 %v425
        %v510 = vunpack.c.h.b16 %v425
        %v511 = vunpack.c.l.b16 %v426
        %v512 = vunpack.c.l.b16 %v427
        %v513 = vunpack.c.h.b16 %v427
        %v514 = vunpack.c.l.b16 %v428
        %v515 = vunpack.c.l.b16 %v429
        %v516 = vunpack.c.h.b16 %v429
        %v517 = vunpack.c.l.b16 %v430
        %v518 = vunpack.c.l.b16 %v431
        %v519 = vunpack.c.h.b16 %v431
        %v520 = vunpack.c.l.b16 %v432
        %v521 = vunpack.c.l.b16 %v433
        %v522 = vunpack.c.h.b16 %v433
        %v523 = vunpack.c.l.b16 %v434
        %v524 = vunpack.c.l.b16 %v435
        %v525 = vunpack.c.h.b16 %v435
        %v526 = vunpack.c.l.b16 %v436
        %v527 = vunpack.c.l.b16 %v437
        %v528 = vunpack.c.h.b16 %v437
        %v529 = vunpack.c.l.b16 %v438
        %v530 = vunpack.c.l.b16 %v439
        %v531 = vunpack.c.h.b16 %v439
        %v532 = vunpack.c.l.b16 %v440
        %v533 = vunpack.c.l.b16 %v441
        %v534 = vunpack.c.h.b16 %v441
        %v535 = vunpack.c.l.b16 %v442
        %v536 = vunpack.c.l.b16 %v443
        %v537 = vunpack.c.h.b16 %v443
        %v538 = vunpack.c.l.b16 %v444
        %v539 = vunpack.c.l.b16 %v445
        %v540 = vunpack.c.h.b16 %v445
        %v541 = vunpack.c.l.b16 %v446
        %v542 = vunpack.c.l.b16 %v447
        %v543 = vunpack.c.h.b16 %v447
        %v544 = vunpack.c.l.b16 %v448
        %v545 = vunpack.c.l.b16 %v449
        %v546 = vunpack.c.h.b16 %v449
        %v547 = vunpack.c.l.b16 %v450
        %v548 = vpack.c.b16 %v503, %v500
        %v549 = vpack.c.b16 %v504, %v501
        %v550 = vpack.c.b16 %v505, %v502
        %v551 = vpack.c.b16 %v509, %v506
        %v552 = vpack.c.b16 %v510, %v507
        %v553 = vpack.c.b16 %v511, %v508
        %v554 = vpack.c.b16 %v515, %v512
        %v555 = vpack.c.b16 %v516, %v513
        %v556 = vpack.c.b16 %v517, %v514
        %v557 = vpack.c.b16 %v521, %v518
        %v558 = vpack.c.b16 %v522, %v519
        %v559 = vpack.c.b16 %v523, %v520
        %v560 = vpack.c.b16 %v527, %v524
        %v561 = vpack.c.b16 %v528, %v525
        %v562 = vpack.c.b16 %v529, %v526
        %v563 = vpack.c.b16 %v533, %v530
        %v564 = vpack.c.b16 %v534, %v531
        %v565 = vpack.c.b16 %v535, %v532
        %v566 = vpack.c.b16 %v539, %v536
        %v567 = vpack.c.b16 %v540, %v537
        %v568 = vpack.c.b16 %v541, %v538
        %v569 = vpack.c.b16 %v545, %v542
        %v570 = vpack.c.b16 %v546, %v543
        %v571 = vpack.c.b16 %v547, %v544
        %596 = vmatprep.subr.bf16.mxu0 %v549
        %597 = vmatpush1.bf16.msra.mxu0 %v548
        %598 = vmatprep.subr.bf16.mxu0 %v552
        %599 = vmatpush1.bf16.msra.mxu0 %v551
        %600 = vmatprep.subr.bf16.mxu0 %v555
        %601 = vmatpush1.bf16.msra.mxu0 %v554
        %602 = vmatprep.subr.bf16.mxu0 %v558
        %603 = vmatpush1.bf16.msra.mxu0 %v557
        %604 = vmatprep.subr.bf16.mxu0 %v561
        %605 = vmatpush1.bf16.msra.mxu0 %v560
        %606 = vmatprep.subr.bf16.mxu0 %v564
        %607 = vmatpush1.bf16.msra.mxu0 %v563
        %608 = vmatprep.subr.bf16.mxu0 %v567
        %609 = vmatpush1.bf16.msra.mxu0 %v566
        %610 = vmatprep.subr.bf16.mxu0 %v570
        %611 = vmatpush1.bf16.msra.mxu0 %v569
        %612 = vmatprep.subr.bf16.mxu0 0
        %613 = vmatpush1.bf16.msra.mxu0 0
        %614 = vmatprep.subr.bf16.mxu0 0
        %615 = vmatpush1.bf16.msra.mxu0 0
        %616 = vmatprep.subr.bf16.mxu0 0
        %617 = vmatpush1.bf16.msra.mxu0 0
        %618 = vmatprep.subr.bf16.mxu0 0
        %619 = vmatpush1.bf16.msra.mxu0 0
        %620 = vmatprep.subr.bf16.mxu0 0
        %621 = vmatpush1.bf16.msra.mxu0 0
        %622 = vmatprep.subr.bf16.mxu0 0
        %623 = vmatpush1.bf16.msra.mxu0 0
        %624 = vmatprep.subr.bf16.mxu0 0
        %625 = vmatpush1.bf16.msra.mxu0 0
        %626 = vmatprep.subr.bf16.mxu0 0
        %627 = vmatpush1.bf16.msra.mxu0 0
        %628 = vmatprep.mubr.bf16.mxu0 0
        %629 = vmatmul.mubr.bf16.gmra.mrb[0].mxu0 %v417
        %v630 = vpop.f32.mrb[0].mxu0
        %v631 = vadd.f32 %v456, %v630
        %v632 = vpop.f32.mrb[0].mxu0
        %v633 = vadd.f32 %v460, %v632
        %v634 = vpop.f32.mrb[0].mxu0
        %v635 = vadd.f32 %v456, %v634
        %v636 = vpop.f32.mrb[0].mxu0
        %v637 = vadd.f32 %v460, %v636
        %638 = vmatprep.mubr.bf16.mxu0 0
        %639 = vmatmul.mubr.bf16.gmra.mrb[0].mxu0 %v418
        %v640 = vpop.f32.mrb[0].mxu0
        %v641 = vadd.f32 %v456, %v640
        %v642 = vpop.f32.mrb[0].mxu0
        %v643 = vadd.f32 %v460, %v642
        %v644 = vpop.f32.mrb[0].mxu0
        %v645 = vadd.f32 %v456, %v644
        %v646 = vpop.f32.mrb[0].mxu0
        %v647 = vadd.f32 %v460, %v646
        %648 = vdwg.mxu0
        %649 = vmatprep.subr.bf16.mxu0 0
        %650 = vmatpush1.bf16.msra.mxu0 %v550
        %651 = vmatprep.subr.bf16.mxu0 0
        %652 = vmatpush1.bf16.msra.mxu0 %v553
        %653 = vmatprep.subr.bf16.mxu0 0
        %654 = vmatpush1.bf16.msra.mxu0 %v556
        %655 = vmatprep.subr.bf16.mxu0 0
        %656 = vmatpush1.bf16.msra.mxu0 %v559
        %657 = vmatprep.subr.bf16.mxu0 0
        %658 = vmatpush1.bf16.msra.mxu0 %v562
        %659 = vmatprep.subr.bf16.mxu0 0
        %660 = vmatpush1.bf16.msra.mxu0 %v565
        %661 = vmatprep.subr.bf16.mxu0 0
        %662 = vmatpush1.bf16.msra.mxu0 %v568
        %663 = vmatprep.subr.bf16.mxu0 0
        %664 = vmatpush1.bf16.msra.mxu0 %v571
        %665 = vmatprep.subr.bf16.mxu0 0
        %666 = vmatpush1.bf16.msra.mxu0 0
        %667 = vmatprep.subr.bf16.mxu0 0
        %668 = vmatpush1.bf16.msra.mxu0 0
        %669 = vmatprep.subr.bf16.mxu0 0
        %670 = vmatpush1.bf16.msra.mxu0 0
        %671 = vmatprep.subr.bf16.mxu0 0
        %672 = vmatpush1.bf16.msra.mxu0 0
        %673 = vmatprep.subr.bf16.mxu0 0
        %674 = vmatpush1.bf16.msra.mxu0 0
        %675 = vmatprep.subr.bf16.mxu0 0
        %676 = vmatpush1.bf16.msra.mxu0 0
        %677 = vmatprep.subr.bf16.mxu0 0
        %678 = vmatpush1.bf16.msra.mxu0 0
        %679 = vmatprep.subr.bf16.mxu0 0
        %680 = vmatpush1.bf16.msra.mxu0 0
        %681 = vmatprep.mubr.bf16.mxu0 0
        %682 = vmatmul.mubr.bf16.gmra.mrb[0].mxu0 %v417
        %v683 = vpop.f32.mrb[0].mxu0
        %v684 = vadd.f32 %v464, %v683
        %v685 = vpop.f32.mrb[0].mxu0
        %v686 = vpop.f32.mrb[0].mxu0
        %v687 = vadd.f32 %v464, %v686
        %v688 = vpop.f32.mrb[0].mxu0
        %689 = vmatprep.mubr.bf16.mxu0 0
        %690 = vmatmul.mubr.bf16.gmra.mrb[0].mxu0 %v418
        %v691 = vpop.f32.mrb[0].mxu0
        %v692 = vadd.f32 %v464, %v691
        %v693 = vpop.f32.mrb[0].mxu0
        %v694 = vpop.f32.mrb[0].mxu0
        %v695 = vadd.f32 %v464, %v694
        %v696 = vpop.f32.mrb[0].mxu0
        %697 = vdwg.mxu0
        %700 = vrot.lane.b32.xlu0 %v631, 112
        %v701 = vpop.permute.xlu0 %700
        %702 = vrot.lane.b32.xlu0 %v635, 112
        %v703 = vpop.permute.xlu0 %702
        %704 = vrot.lane.b32.xlu0 %v631, 96
        %v705 = vpop.permute.xlu0 %704
        %706 = vrot.lane.b32.xlu0 %v635, 96
        %v707 = vpop.permute.xlu0 %706
        %708 = vrot.lane.b32.xlu0 %v631, 80
        %v709 = vpop.permute.xlu0 %708
        %710 = vrot.lane.b32.xlu0 %v635, 80
        %v711 = vpop.permute.xlu0 %710
        %712 = vrot.lane.b32.xlu0 %v631, 64
        %v713 = vpop.permute.xlu0 %712
        %714 = vrot.lane.b32.xlu0 %v635, 64
        %v715 = vpop.permute.xlu0 %714
        %716 = vrot.lane.b32.xlu0 %v631, 48
        %v717 = vpop.permute.xlu0 %716
        %718 = vrot.lane.b32.xlu0 %v635, 48
        %v719 = vpop.permute.xlu0 %718
        %720 = vrot.lane.b32.xlu0 %v631, 32
        %v721 = vpop.permute.xlu0 %720
        %722 = vrot.lane.b32.xlu0 %v635, 32
        %v723 = vpop.permute.xlu0 %722
        %724 = vrot.lane.b32.xlu0 %v631, 16
        %v725 = vpop.permute.xlu0 %724
        %726 = vrot.lane.b32.xlu0 %v635, 16
        %v727 = vpop.permute.xlu0 %726
        %730 = vrot.lane.b32.xlu0 %v633, 112
        %v731 = vpop.permute.xlu0 %730
        %732 = vrot.lane.b32.xlu0 %v637, 112
        %v733 = vpop.permute.xlu0 %732
        %734 = vrot.lane.b32.xlu0 %v633, 96
        %v735 = vpop.permute.xlu0 %734
        %736 = vrot.lane.b32.xlu0 %v637, 96
        %v737 = vpop.permute.xlu0 %736
        %738 = vrot.lane.b32.xlu0 %v633, 80
        %v739 = vpop.permute.xlu0 %738
        %740 = vrot.lane.b32.xlu0 %v637, 80
        %v741 = vpop.permute.xlu0 %740
        %742 = vrot.lane.b32.xlu0 %v633, 64
        %v743 = vpop.permute.xlu0 %742
        %744 = vrot.lane.b32.xlu0 %v637, 64
        %v745 = vpop.permute.xlu0 %744
        %746 = vrot.lane.b32.xlu0 %v633, 48
        %v747 = vpop.permute.xlu0 %746
        %748 = vrot.lane.b32.xlu0 %v637, 48
        %v749 = vpop.permute.xlu0 %748
        %750 = vrot.lane.b32.xlu0 %v633, 32
        %v751 = vpop.permute.xlu0 %750
        %752 = vrot.lane.b32.xlu0 %v637, 32
        %v753 = vpop.permute.xlu0 %752
        %754 = vrot.lane.b32.xlu0 %v633, 16
        %v755 = vpop.permute.xlu0 %754
        %756 = vrot.lane.b32.xlu0 %v637, 16
        %v757 = vpop.permute.xlu0 %756
        %vm758 = vcmask 130048
        %v759 = vsel %vm758, %v631, 0
        %v761 = vsel %vm758, %v635, 0
        %v763 = vsel %vm758, %v701, 0
        %v765 = vsel %vm758, %v703, 0
        %v767 = vsel %vm758, %v705, 0
        %v769 = vsel %vm758, %v707, 0
        %v771 = vsel %vm758, %v709, 0
        %v773 = vsel %vm758, %v711, 0
        %v775 = vsel %vm758, %v713, 0
        %v777 = vsel %vm758, %v715, 0
        %v779 = vsel %vm758, %v717, 0
        %v781 = vsel %vm758, %v719, 0
        %v783 = vsel %vm758, %v721, 0
        %v785 = vsel %vm758, %v723, 0
        %v787 = vsel %vm758, %v725, 0
        %v789 = vsel %vm758, %v727, 0
        %v791 = vsel %vm758, %v633, 0
        %v793 = vsel %vm758, %v637, 0
        %v795 = vsel %vm758, %v731, 0
        %v797 = vsel %vm758, %v733, 0
        %v799 = vsel %vm758, %v735, 0
        %v801 = vsel %vm758, %v737, 0
        %v803 = vsel %vm758, %v739, 0
        %v805 = vsel %vm758, %v741, 0
        %v807 = vsel %vm758, %v743, 0
        %v809 = vsel %vm758, %v745, 0
        %v811 = vsel %vm758, %v747, 0
        %v813 = vsel %vm758, %v749, 0
        %v815 = vsel %vm758, %v751, 0
        %v817 = vsel %vm758, %v753, 0
        %v819 = vsel %vm758, %v755, 0
        %v821 = vsel %vm758, %v757, 0
        %823 = vmatprep.subr.mxu0 0.0
        %824 = vmatpush1.xpose.msra.mxu0 %v791
        %825 = vmatprep.subr.mxu0 0.0
        %826 = vmatpush1.xpose.msra.mxu0 %v793
        %827 = vmatprep.subr.mxu0 0.0
        %828 = vmatpush1.xpose.msra.mxu0 %v795
        %829 = vmatprep.subr.mxu0 0.0
        %830 = vmatpush1.xpose.msra.mxu0 %v797
        %831 = vmatprep.subr.mxu0 0.0
        %832 = vmatpush1.xpose.msra.mxu0 %v799
        %833 = vmatprep.subr.mxu0 0.0
        %834 = vmatpush1.xpose.msra.mxu0 %v801
        %835 = vmatprep.subr.mxu0 0.0
        %836 = vmatpush1.xpose.msra.mxu0 %v803
        %837 = vmatprep.subr.mxu0 0.0
        %838 = vmatpush1.xpose.msra.mxu0 %v805
        %839 = vmatprep.subr.mxu0 0.0
        %840 = vmatpush1.xpose.msra.mxu0 %v807
        %841 = vmatprep.subr.mxu0 0.0
        %842 = vmatpush1.xpose.msra.mxu0 %v809
        %843 = vmatprep.subr.mxu0 0.0
        %844 = vmatpush1.xpose.msra.mxu0 %v811
        %845 = vmatprep.subr.mxu0 0.0
        %846 = vmatpush1.xpose.msra.mxu0 %v813
        %847 = vmatprep.subr.mxu0 0.0
        %848 = vmatpush1.xpose.msra.mxu0 %v815
        %849 = vmatprep.subr.mxu0 0.0
        %850 = vmatpush1.xpose.msra.mxu0 %v817
        %851 = vmatprep.subr.mxu0 0.0
        %852 = vmatpush1.xpose.msra.mxu0 %v819
        %853 = vmatprep.subr.mxu0 0.0
        %854 = vmatpush1.xpose.msra.mxu0 %v821
        %855 = vmatprep.subr.mxu0 0.0
        %856 = vmatpush1.xpose.msra.mxu0 0.0
        %857 = vmatprep.subr.mxu0 0.0
        %858 = vmatpush1.xpose.msra.mxu0 0.0
        %859 = vmatprep.subr.mxu0 0.0
        %860 = vmatpush1.xpose.msra.mxu0 0.0
        %861 = vmatprep.subr.mxu0 0.0
        %862 = vmatpush1.xpose.msra.mxu0 0.0
        %863 = vmatprep.subr.mxu0 0.0
        %864 = vmatpush1.xpose.msra.mxu0 0.0
        %865 = vmatprep.subr.mxu0 0.0
        %866 = vmatpush1.xpose.msra.mxu0 0.0
        %867 = vmatprep.subr.mxu0 0.0
        %868 = vmatpush1.xpose.msra.mxu0 0.0
        %869 = vmatprep.subr.mxu0 0.0
        %870 = vmatpush1.xpose.msra.mxu0 0.0
        %871 = vmatprep.subr.mxu0 0.0
        %872 = vmatpush1.xpose.msra.mxu0 0.0
        %873 = vmatprep.subr.mxu0 0.0
        %874 = vmatpush1.xpose.msra.mxu0 0.0
        %875 = vmatprep.subr.mxu0 0.0
        %876 = vmatpush1.xpose.msra.mxu0 0.0
        %877 = vmatprep.subr.mxu0 0.0
        %878 = vmatpush1.xpose.msra.mxu0 0.0
        %879 = vmatprep.subr.mxu0 0.0
        %880 = vmatpush1.xpose.msra.mxu0 0.0
        %881 = vmatprep.subr.mxu0 0.0
        %882 = vmatpush1.xpose.msra.mxu0 0.0
        %883 = vmatprep.subr.mxu0 0.0
        %884 = vmatpush1.xpose.msra.mxu0 0.0
        %885 = vmatprep.subr.mxu0 0.0
        %886 = vmatpush1.xpose.msra.mxu0 0.0
        %887 = vmatprep.mubr.f32.mxu0 0.0
        %888 = vmatmul.mubr.f32.gmra.mrb[0].mxu0 %v759
        %v889 = vpop.f32.mrb[0].mxu0
        %v890 = vadd.f32 0.0, %v889
        %v891 = vpop.f32.mrb[0].mxu0
        %892 = vmatprep.mubr.f32.mxu0 0.0
        %893 = vmatmul.mubr.f32.gmra.mrb[0].mxu0 %v761
        %v894 = vpop.f32.mrb[0].mxu0
        %v895 = vadd.f32 0.0, %v894
        %v896 = vpop.f32.mrb[0].mxu0
        %897 = vmatprep.mubr.f32.mxu0 0.0
        %898 = vmatmul.mubr.f32.gmra.mrb[0].mxu0 %v763
        %v899 = vpop.f32.mrb[0].mxu0
        %v900 = vadd.f32 0.0, %v899
        %v901 = vpop.f32.mrb[0].mxu0
        %902 = vmatprep.mubr.f32.mxu0 0.0
        %903 = vmatmul.mubr.f32.gmra.mrb[0].mxu0 %v765
        %v904 = vpop.f32.mrb[0].mxu0
        %v905 = vadd.f32 0.0, %v904
        %v906 = vpop.f32.mrb[0].mxu0
        %907 = vmatprep.mubr.f32.mxu0 0.0
        %908 = vmatmul.mubr.f32.gmra.mrb[0].mxu0 %v767
        %v909 = vpop.f32.mrb[0].mxu0
        %v910 = vadd.f32 0.0, %v909
        %v911 = vpop.f32.mrb[0].mxu0
        %912 = vmatprep.mubr.f32.mxu0 0.0
        %913 = vmatmul.mubr.f32.gmra.mrb[0].mxu0 %v769
        %v914 = vpop.f32.mrb[0].mxu0
        %v915 = vadd.f32 0.0, %v914
        %v916 = vpop.f32.mrb[0].mxu0
        %917 = vmatprep.mubr.f32.mxu0 0.0
        %918 = vmatmul.mubr.f32.gmra.mrb[0].mxu0 %v771
        %v919 = vpop.f32.mrb[0].mxu0
        %v920 = vadd.f32 0.0, %v919
        %v921 = vpop.f32.mrb[0].mxu0
        %922 = vmatprep.mubr.f32.mxu0 0.0
        %923 = vmatmul.mubr.f32.gmra.mrb[0].mxu0 %v773
        %v924 = vpop.f32.mrb[0].mxu0
        %v925 = vadd.f32 0.0, %v924
        %v926 = vpop.f32.mrb[0].mxu0
        %927 = vmatprep.mubr.f32.mxu0 0.0
        %928 = vmatmul.mubr.f32.gmra.mrb[0].mxu0 %v775
        %v929 = vpop.f32.mrb[0].mxu0
        %v930 = vadd.f32 0.0, %v929
        %v931 = vpop.f32.mrb[0].mxu0
        %932 = vmatprep.mubr.f32.mxu0 0.0
        %933 = vmatmul.mubr.f32.gmra.mrb[0].mxu0 %v777
        %v934 = vpop.f32.mrb[0].mxu0
        %v935 = vadd.f32 0.0, %v934
        %v936 = vpop.f32.mrb[0].mxu0
        %937 = vmatprep.mubr.f32.mxu0 0.0
        %938 = vmatmul.mubr.f32.gmra.mrb[0].mxu0 %v779
        %v939 = vpop.f32.mrb[0].mxu0
        %v940 = vadd.f32 0.0, %v939
        %v941 = vpop.f32.mrb[0].mxu0
        %942 = vmatprep.mubr.f32.mxu0 0.0
        %943 = vmatmul.mubr.f32.gmra.mrb[0].mxu0 %v781
        %v944 = vpop.f32.mrb[0].mxu0
        %v945 = vadd.f32 0.0, %v944
        %v946 = vpop.f32.mrb[0].mxu0
        %947 = vmatprep.mubr.f32.mxu0 0.0
        %948 = vmatmul.mubr.f32.gmra.mrb[0].mxu0 %v783
        %v949 = vpop.f32.mrb[0].mxu0
        %v950 = vadd.f32 0.0, %v949
        %v951 = vpop.f32.mrb[0].mxu0
        %952 = vmatprep.mubr.f32.mxu0 0.0
        %953 = vmatmul.mubr.f32.gmra.mrb[0].mxu0 %v785
        %v954 = vpop.f32.mrb[0].mxu0
        %v955 = vadd.f32 0.0, %v954
        %v956 = vpop.f32.mrb[0].mxu0
        %957 = vmatprep.mubr.f32.mxu0 0.0
        %958 = vmatmul.mubr.f32.gmra.mrb[0].mxu0 %v787
        %v959 = vpop.f32.mrb[0].mxu0
        %v960 = vadd.f32 0.0, %v959
        %v961 = vpop.f32.mrb[0].mxu0
        %962 = vmatprep.mubr.f32.mxu0 0.0
        %963 = vmatmul.mubr.f32.gmra.mrb[0].mxu0 %v789
        %v964 = vpop.f32.mrb[0].mxu0
        %v965 = vadd.f32 0.0, %v964
        %v966 = vpop.f32.mrb[0].mxu0
        %967 = vdwg.mxu0
        %v968 = vld [vmem:[%s1] sm:$0xff]
        %v969 = vld [vmem:[%s1 + $0x8] sm:$0xff]
        %v970 = vld [vmem:[%s1 + $0x10] sm:$0xff]
        %v971 = vld [vmem:[%s1 + $0x18] sm:$0xff]
        %v972 = vld [vmem:[%s1 + $0x20] sm:$0xff]
        %v973 = vld [vmem:[%s1 + $0x28] sm:$0xff]
        %v974 = vld [vmem:[%s1 + $0x30] sm:$0xff]
        %v975 = vld [vmem:[%s1 + $0x38] sm:$0xff]
        %v976 = vld [vmem:[%s1 + $0x40] sm:$0xff]
        %v977 = vld [vmem:[%s1 + $0x48] sm:$0xff]
        %v978 = vld [vmem:[%s1 + $0x50] sm:$0xff]
        %v979 = vld [vmem:[%s1 + $0x58] sm:$0xff]
        %v980 = vld [vmem:[%s1 + $0x60] sm:$0xff]
        %v981 = vld [vmem:[%s1 + $0x68] sm:$0xff]
        %v982 = vld [vmem:[%s1 + $0x70] sm:$0xff]
        %v983 = vld [vmem:[%s1 + $0x78] sm:$0xff]
        %v984 = vmul.f32 %v890, %v968
        %v985 = vmul.f32 %v895, %v969
        %v986 = vmul.f32 %v900, %v970
        %v987 = vmul.f32 %v905, %v971
        %v988 = vmul.f32 %v910, %v972
        %v989 = vmul.f32 %v915, %v973
        %v990 = vmul.f32 %v920, %v974
        %v991 = vmul.f32 %v925, %v975
        %v992 = vmul.f32 %v930, %v976
        %v993 = vmul.f32 %v935, %v977
        %v994 = vmul.f32 %v940, %v978
        %v995 = vmul.f32 %v945, %v979
        %v996 = vmul.f32 %v950, %v980
        %v997 = vmul.f32 %v955, %v981
        %v998 = vmul.f32 %v960, %v982
        %v999 = vmul.f32 %v965, %v983
        %v1000 = vld [vmem:[%s2] sm:$0xff]
        %v1001 = vld [vmem:[%s2 + $0x8] sm:$0xff]
        %v1002 = vld [vmem:[%s2 + $0x10] sm:$0xff]
        %v1003 = vld [vmem:[%s2 + $0x18] sm:$0xff]
        %v1004 = vld [vmem:[%s2 + $0x20] sm:$0xff]
        %v1005 = vld [vmem:[%s2 + $0x28] sm:$0xff]
        %v1006 = vld [vmem:[%s2 + $0x30] sm:$0xff]
        %v1007 = vld [vmem:[%s2 + $0x38] sm:$0xff]
        %v1008 = vld [vmem:[%s2 + $0x40] sm:$0xff]
        %v1009 = vld [vmem:[%s2 + $0x48] sm:$0xff]
        %v1010 = vld [vmem:[%s2 + $0x50] sm:$0xff]
        %v1011 = vld [vmem:[%s2 + $0x58] sm:$0xff]
        %v1012 = vld [vmem:[%s2 + $0x60] sm:$0xff]
        %v1013 = vld [vmem:[%s2 + $0x68] sm:$0xff]
        %v1014 = vld [vmem:[%s2 + $0x70] sm:$0xff]
        %v1015 = vld [vmem:[%s2 + $0x78] sm:$0xff]
        %1016 = vmatprep.subr.mxu0 0.0
        %1017 = vmatpush1.msra.mxu0 %v1000
        %1018 = vmatprep.subr.mxu0 0.0
        %1019 = vmatpush1.msra.mxu0 %v1001
        %1020 = vmatprep.subr.mxu0 0.0
        %1021 = vmatpush1.msra.mxu0 %v1002
        %1022 = vmatprep.subr.mxu0 0.0
        %1023 = vmatpush1.msra.mxu0 %v1003
        %1024 = vmatprep.subr.mxu0 0.0
        %1025 = vmatpush1.msra.mxu0 %v1004
        %1026 = vmatprep.subr.mxu0 0.0
        %1027 = vmatpush1.msra.mxu0 %v1005
        %1028 = vmatprep.subr.mxu0 0.0
        %1029 = vmatpush1.msra.mxu0 %v1006
        %1030 = vmatprep.subr.mxu0 0.0
        %1031 = vmatpush1.msra.mxu0 %v1007
        %1032 = vmatprep.subr.mxu0 0.0
        %1033 = vmatpush1.msra.mxu0 %v1008
        %1034 = vmatprep.subr.mxu0 0.0
        %1035 = vmatpush1.msra.mxu0 %v1009
        %1036 = vmatprep.subr.mxu0 0.0
        %1037 = vmatpush1.msra.mxu0 %v1010
        %1038 = vmatprep.subr.mxu0 0.0
        %1039 = vmatpush1.msra.mxu0 %v1011
        %1040 = vmatprep.subr.mxu0 0.0
        %1041 = vmatpush1.msra.mxu0 %v1012
        %1042 = vmatprep.subr.mxu0 0.0
        %1043 = vmatpush1.msra.mxu0 %v1013
        %1044 = vmatprep.subr.mxu0 0.0
        %1045 = vmatpush1.msra.mxu0 %v1014
        %1046 = vmatprep.subr.mxu0 0.0
        %1047 = vmatpush1.msra.mxu0 %v1015
        %1048 = vmatprep.subr.mxu0 0.0
        %1049 = vmatpush1.msra.mxu0 0.0
        %1050 = vmatprep.subr.mxu0 0.0
        %1051 = vmatpush1.msra.mxu0 0.0
        %1052 = vmatprep.subr.mxu0 0.0
        %1053 = vmatpush1.msra.mxu0 0.0
        %1054 = vmatprep.subr.mxu0 0.0
        %1055 = vmatpush1.msra.mxu0 0.0
        %1056 = vmatprep.subr.mxu0 0.0
        %1057 = vmatpush1.msra.mxu0 0.0
        %1058 = vmatprep.subr.mxu0 0.0
        %1059 = vmatpush1.msra.mxu0 0.0
        %1060 = vmatprep.subr.mxu0 0.0
        %1061 = vmatpush1.msra.mxu0 0.0
        %1062 = vmatprep.subr.mxu0 0.0
        %1063 = vmatpush1.msra.mxu0 0.0
        %1064 = vmatprep.subr.mxu0 0.0
        %1065 = vmatpush1.msra.mxu0 0.0
        %1066 = vmatprep.subr.mxu0 0.0
        %1067 = vmatpush1.msra.mxu0 0.0
        %1068 = vmatprep.subr.mxu0 0.0
        %1069 = vmatpush1.msra.mxu0 0.0
        %1070 = vmatprep.subr.mxu0 0.0
        %1071 = vmatpush1.msra.mxu0 0.0
        %1072 = vmatprep.subr.mxu0 0.0
        %1073 = vmatpush1.msra.mxu0 0.0
        %1074 = vmatprep.subr.mxu0 0.0
        %1075 = vmatpush1.msra.mxu0 0.0
        %1076 = vmatprep.subr.mxu0 0.0
        %1077 = vmatpush1.msra.mxu0 0.0
        %1078 = vmatprep.subr.mxu0 0.0
        %1079 = vmatpush1.msra.mxu0 0.0
        %1080 = vmatprep.mubr.f32.mxu0 0.0
        %1081 = vmatmul.mubr.f32.gmra.mrb[0].mxu0 %v984
        %v1082 = vpop.f32.mrb[0].mxu0
        %v1083 = vadd.f32 0.0, %v1082
        %v1084 = vpop.f32.mrb[0].mxu0
        %1085 = vmatprep.mubr.f32.mxu0 0.0
        %1086 = vmatmul.mubr.f32.gmra.mrb[0].mxu0 %v985
        %v1087 = vpop.f32.mrb[0].mxu0
        %v1088 = vadd.f32 0.0, %v1087
        %v1089 = vpop.f32.mrb[0].mxu0
        %1090 = vmatprep.mubr.f32.mxu0 0.0
        %1091 = vmatmul.mubr.f32.gmra.mrb[0].mxu0 %v986
        %v1092 = vpop.f32.mrb[0].mxu0
        %v1093 = vadd.f32 0.0, %v1092
        %v1094 = vpop.f32.mrb[0].mxu0
        %1095 = vmatprep.mubr.f32.mxu0 0.0
        %1096 = vmatmul.mubr.f32.gmra.mrb[0].mxu0 %v987
        %v1097 = vpop.f32.mrb[0].mxu0
        %v1098 = vadd.f32 0.0, %v1097
        %v1099 = vpop.f32.mrb[0].mxu0
        %1100 = vmatprep.mubr.f32.mxu0 0.0
        %1101 = vmatmul.mubr.f32.gmra.mrb[0].mxu0 %v988
        %v1102 = vpop.f32.mrb[0].mxu0
        %v1103 = vadd.f32 0.0, %v1102
        %v1104 = vpop.f32.mrb[0].mxu0
        %1105 = vmatprep.mubr.f32.mxu0 0.0
        %1106 = vmatmul.mubr.f32.gmra.mrb[0].mxu0 %v989
        %v1107 = vpop.f32.mrb[0].mxu0
        %v1108 = vadd.f32 0.0, %v1107
        %v1109 = vpop.f32.mrb[0].mxu0
        %1110 = vmatprep.mubr.f32.mxu0 0.0
        %1111 = vmatmul.mubr.f32.gmra.mrb[0].mxu0 %v990
        %v1112 = vpop.f32.mrb[0].mxu0
        %v1113 = vadd.f32 0.0, %v1112
        %v1114 = vpop.f32.mrb[0].mxu0
        %1115 = vmatprep.mubr.f32.mxu0 0.0
        %1116 = vmatmul.mubr.f32.gmra.mrb[0].mxu0 %v991
        %v1117 = vpop.f32.mrb[0].mxu0
        %v1118 = vadd.f32 0.0, %v1117
        %v1119 = vpop.f32.mrb[0].mxu0
        %1120 = vmatprep.mubr.f32.mxu0 0.0
        %1121 = vmatmul.mubr.f32.gmra.mrb[0].mxu0 %v992
        %v1122 = vpop.f32.mrb[0].mxu0
        %v1123 = vadd.f32 0.0, %v1122
        %v1124 = vpop.f32.mrb[0].mxu0
        %1125 = vmatprep.mubr.f32.mxu0 0.0
        %1126 = vmatmul.mubr.f32.gmra.mrb[0].mxu0 %v993
        %v1127 = vpop.f32.mrb[0].mxu0
        %v1128 = vadd.f32 0.0, %v1127
        %v1129 = vpop.f32.mrb[0].mxu0
        %1130 = vmatprep.mubr.f32.mxu0 0.0
        %1131 = vmatmul.mubr.f32.gmra.mrb[0].mxu0 %v994
        %v1132 = vpop.f32.mrb[0].mxu0
        %v1133 = vadd.f32 0.0, %v1132
        %v1134 = vpop.f32.mrb[0].mxu0
        %1135 = vmatprep.mubr.f32.mxu0 0.0
        %1136 = vmatmul.mubr.f32.gmra.mrb[0].mxu0 %v995
        %v1137 = vpop.f32.mrb[0].mxu0
        %v1138 = vadd.f32 0.0, %v1137
        %v1139 = vpop.f32.mrb[0].mxu0
        %1140 = vmatprep.mubr.f32.mxu0 0.0
        %1141 = vmatmul.mubr.f32.gmra.mrb[0].mxu0 %v996
        %v1142 = vpop.f32.mrb[0].mxu0
        %v1143 = vadd.f32 0.0, %v1142
        %v1144 = vpop.f32.mrb[0].mxu0
        %1145 = vmatprep.mubr.f32.mxu0 0.0
        %1146 = vmatmul.mubr.f32.gmra.mrb[0].mxu0 %v997
        %v1147 = vpop.f32.mrb[0].mxu0
        %v1148 = vadd.f32 0.0, %v1147
        %v1149 = vpop.f32.mrb[0].mxu0
        %1150 = vmatprep.mubr.f32.mxu0 0.0
        %1151 = vmatmul.mubr.f32.gmra.mrb[0].mxu0 %v998
        %v1152 = vpop.f32.mrb[0].mxu0
        %v1153 = vadd.f32 0.0, %v1152
        %v1154 = vpop.f32.mrb[0].mxu0
        %1155 = vmatprep.mubr.f32.mxu0 0.0
        %1156 = vmatmul.mubr.f32.gmra.mrb[0].mxu0 %v999
        %v1157 = vpop.f32.mrb[0].mxu0
        %v1158 = vadd.f32 0.0, %v1157
        %v1159 = vpop.f32.mrb[0].mxu0
        %1160 = vdwg.mxu0
        %v1161 = vsel %vm758, %v1083, -inf
        %1162 = vmax.xlane.f32.xlu0 %v1161
        %v1163 = vpop.xlane.xlu0 %1162
        %v1164 = vsel %vm758, %v1088, -inf
        %1165 = vmax.xlane.f32.xlu0 %v1164
        %v1166 = vpop.xlane.xlu0 %1165
        %v1167 = vsel %vm758, %v1093, -inf
        %1168 = vmax.xlane.f32.xlu0 %v1167
        %v1169 = vpop.xlane.xlu0 %1168
        %v1170 = vsel %vm758, %v1098, -inf
        %1171 = vmax.xlane.f32.xlu0 %v1170
        %v1172 = vpop.xlane.xlu0 %1171
        %v1173 = vsel %vm758, %v1103, -inf
        %1174 = vmax.xlane.f32.xlu0 %v1173
        %v1175 = vpop.xlane.xlu0 %1174
        %v1176 = vsel %vm758, %v1108, -inf
        %1177 = vmax.xlane.f32.xlu0 %v1176
        %v1178 = vpop.xlane.xlu0 %1177
        %v1179 = vsel %vm758, %v1113, -inf
        %1180 = vmax.xlane.f32.xlu0 %v1179
        %v1181 = vpop.xlane.xlu0 %1180
        %v1182 = vsel %vm758, %v1118, -inf
        %1183 = vmax.xlane.f32.xlu0 %v1182
        %v1184 = vpop.xlane.xlu0 %1183
        %v1185 = vsel %vm758, %v1123, -inf
        %1186 = vmax.xlane.f32.xlu0 %v1185
        %v1187 = vpop.xlane.xlu0 %1186
        %v1188 = vsel %vm758, %v1128, -inf
        %1189 = vmax.xlane.f32.xlu0 %v1188
        %v1190 = vpop.xlane.xlu0 %1189
        %v1191 = vsel %vm758, %v1133, -inf
        %1192 = vmax.xlane.f32.xlu0 %v1191
        %v1193 = vpop.xlane.xlu0 %1192
        %v1194 = vsel %vm758, %v1138, -inf
        %1195 = vmax.xlane.f32.xlu0 %v1194
        %v1196 = vpop.xlane.xlu0 %1195
        %v1197 = vsel %vm758, %v1143, -inf
        %1198 = vmax.xlane.f32.xlu0 %v1197
        %v1199 = vpop.xlane.xlu0 %1198
        %v1200 = vsel %vm758, %v1148, -inf
        %1201 = vmax.xlane.f32.xlu0 %v1200
        %v1202 = vpop.xlane.xlu0 %1201
        %v1203 = vsel %vm758, %v1153, -inf
        %1204 = vmax.xlane.f32.xlu0 %v1203
        %v1205 = vpop.xlane.xlu0 %1204
        %v1206 = vsel %vm758, %v1158, -inf
        %1207 = vmax.xlane.f32.xlu0 %v1206
        %v1208 = vpop.xlane.xlu0 %1207
        %v1209 = vsub.f32 %v1083, %v1163
        %v1210 = vsub.f32 %v1088, %v1166
        %v1211 = vsub.f32 %v1093, %v1169
        %v1212 = vsub.f32 %v1098, %v1172
        %v1213 = vsub.f32 %v1103, %v1175
        %v1214 = vsub.f32 %v1108, %v1178
        %v1215 = vsub.f32 %v1113, %v1181
        %v1216 = vsub.f32 %v1118, %v1184
        %v1217 = vsub.f32 %v1123, %v1187
        %v1218 = vsub.f32 %v1128, %v1190
        %v1219 = vsub.f32 %v1133, %v1193
        %v1220 = vsub.f32 %v1138, %v1196
        %v1221 = vsub.f32 %v1143, %v1199
        %v1222 = vsub.f32 %v1148, %v1202
        %v1223 = vsub.f32 %v1153, %v1205
        %v1224 = vsub.f32 %v1158, %v1208
        %v1225 = vmul.f32 %v1209, 1.442695
        %v1226 = vpow.pop %v1225
        %v1227 = vmul.f32 %v1210, 1.442695
        %v1228 = vpow.pop %v1227
        %v1229 = vmul.f32 %v1211, 1.442695
        %v1230 = vpow.pop %v1229
        %v1231 = vmul.f32 %v1212, 1.442695
        %v1232 = vpow.pop %v1231
        %v1233 = vmul.f32 %v1213, 1.442695
        %v1234 = vpow.pop %v1233
        %v1235 = vmul.f32 %v1214, 1.442695
        %v1236 = vpow.pop %v1235
        %v1237 = vmul.f32 %v1215, 1.442695
        %v1238 = vpow.pop %v1237
        %v1239 = vmul.f32 %v1216, 1.442695
        %v1240 = vpow.pop %v1239
        %v1241 = vmul.f32 %v1217, 1.442695
        %v1242 = vpow.pop %v1241
        %v1243 = vmul.f32 %v1218, 1.442695
        %v1244 = vpow.pop %v1243
        %v1245 = vmul.f32 %v1219, 1.442695
        %v1246 = vpow.pop %v1245
        %v1247 = vmul.f32 %v1220, 1.442695
        %v1248 = vpow.pop %v1247
        %v1249 = vmul.f32 %v1221, 1.442695
        %v1250 = vpow.pop %v1249
        %v1251 = vmul.f32 %v1222, 1.442695
        %v1252 = vpow.pop %v1251
        %v1253 = vmul.f32 %v1223, 1.442695
        %v1254 = vpow.pop %v1253
        %v1255 = vmul.f32 %v1224, 1.442695
        %v1256 = vpow.pop %v1255
        %v1257 = vsel %vm758, %v1226, 0.0
        %1258 = vadd.xlane.f32.xlu0 %v1257
        %v1259 = vpop.xlane.xlu0 %1258
        %v1260 = vsel %vm758, %v1228, 0.0
        %1261 = vadd.xlane.f32.xlu0 %v1260
        %v1262 = vpop.xlane.xlu0 %1261
        %v1263 = vsel %vm758, %v1230, 0.0
        %1264 = vadd.xlane.f32.xlu0 %v1263
        %v1265 = vpop.xlane.xlu0 %1264
        %v1266 = vsel %vm758, %v1232, 0.0
        %1267 = vadd.xlane.f32.xlu0 %v1266
        %v1268 = vpop.xlane.xlu0 %1267
        %v1269 = vsel %vm758, %v1234, 0.0
        %1270 = vadd.xlane.f32.xlu0 %v1269
        %v1271 = vpop.xlane.xlu0 %1270
        %v1272 = vsel %vm758, %v1236, 0.0
        %1273 = vadd.xlane.f32.xlu0 %v1272
        %v1274 = vpop.xlane.xlu0 %1273
        %v1275 = vsel %vm758, %v1238, 0.0
        %1276 = vadd.xlane.f32.xlu0 %v1275
        %v1277 = vpop.xlane.xlu0 %1276
        %v1278 = vsel %vm758, %v1240, 0.0
        %1279 = vadd.xlane.f32.xlu0 %v1278
        %v1280 = vpop.xlane.xlu0 %1279
        %v1281 = vsel %vm758, %v1242, 0.0
        %1282 = vadd.xlane.f32.xlu0 %v1281
        %v1283 = vpop.xlane.xlu0 %1282
        %v1284 = vsel %vm758, %v1244, 0.0
        %1285 = vadd.xlane.f32.xlu0 %v1284
        %v1286 = vpop.xlane.xlu0 %1285
        %v1287 = vsel %vm758, %v1246, 0.0
        %1288 = vadd.xlane.f32.xlu0 %v1287
        %v1289 = vpop.xlane.xlu0 %1288
        %v1290 = vsel %vm758, %v1248, 0.0
        %1291 = vadd.xlane.f32.xlu0 %v1290
        %v1292 = vpop.xlane.xlu0 %1291
        %v1293 = vsel %vm758, %v1250, 0.0
        %1294 = vadd.xlane.f32.xlu0 %v1293
        %v1295 = vpop.xlane.xlu0 %1294
        %v1296 = vsel %vm758, %v1252, 0.0
        %1297 = vadd.xlane.f32.xlu0 %v1296
        %v1298 = vpop.xlane.xlu0 %1297
        %v1299 = vsel %vm758, %v1254, 0.0
        %1300 = vadd.xlane.f32.xlu0 %v1299
        %v1301 = vpop.xlane.xlu0 %1300
        %v1302 = vsel %vm758, %v1256, 0.0
        %1303 = vadd.xlane.f32.xlu0 %v1302
        %v1304 = vpop.xlane.xlu0 %1303
        %v1305 = vrcp.pop %v1259
        %v1306 = vrcp.pop %v1262
        %v1307 = vrcp.pop %v1265
        %v1308 = vrcp.pop %v1268
        %v1309 = vrcp.pop %v1271
        %v1310 = vrcp.pop %v1274
        %v1311 = vrcp.pop %v1277
        %v1312 = vrcp.pop %v1280
        %v1313 = vrcp.pop %v1283
        %v1314 = vrcp.pop %v1286
        %v1315 = vrcp.pop %v1289
        %v1316 = vrcp.pop %v1292
        %v1317 = vrcp.pop %v1295
        %v1318 = vrcp.pop %v1298
        %v1319 = vrcp.pop %v1301
        %v1320 = vrcp.pop %v1304
        %v1321 = vmul.f32 %v1226, %v1305
        %v1322 = vmul.f32 %v1228, %v1306
        %v1323 = vmul.f32 %v1230, %v1307
        %v1324 = vmul.f32 %v1232, %v1308
        %v1325 = vmul.f32 %v1234, %v1309
        %v1326 = vmul.f32 %v1236, %v1310
        %v1327 = vmul.f32 %v1238, %v1311
        %v1328 = vmul.f32 %v1240, %v1312
        %v1329 = vmul.f32 %v1242, %v1313
        %v1330 = vmul.f32 %v1244, %v1314
        %v1331 = vmul.f32 %v1246, %v1315
        %v1332 = vmul.f32 %v1248, %v1316
        %v1333 = vmul.f32 %v1250, %v1317
        %v1334 = vmul.f32 %v1252, %v1318
        %v1335 = vmul.f32 %v1254, %v1319
        %v1336 = vmul.f32 %v1256, %v1320
        %v1338 = vsel %vm758, %v1321, 0
        %v1341 = vsel %vm758, %v1322, 0
        %v1344 = vsel %vm758, %v1323, 0
        %v1347 = vsel %vm758, %v1324, 0
        %v1350 = vsel %vm758, %v1325, 0
        %v1353 = vsel %vm758, %v1326, 0
        %v1356 = vsel %vm758, %v1327, 0
        %v1359 = vsel %vm758, %v1328, 0
        %v1362 = vsel %vm758, %v1329, 0
        %v1365 = vsel %vm758, %v1330, 0
        %v1368 = vsel %vm758, %v1331, 0
        %v1371 = vsel %vm758, %v1332, 0
        %v1374 = vsel %vm758, %v1333, 0
        %v1377 = vsel %vm758, %v1334, 0
        %v1380 = vsel %vm758, %v1335, 0
        %v1383 = vsel %vm758, %v1336, 0
        %v1386 = vsel %vm758, %v1000, 0
        %v1389 = vsel %vm758, %v1001, 0
        %v1392 = vsel %vm758, %v1002, 0
        %v1395 = vsel %vm758, %v1003, 0
        %v1398 = vsel %vm758, %v1004, 0
        %v1401 = vsel %vm758, %v1005, 0
        %v1404 = vsel %vm758, %v1006, 0
        %v1407 = vsel %vm758, %v1007, 0
        %v1410 = vsel %vm758, %v1008, 0
        %v1413 = vsel %vm758, %v1009, 0
        %v1416 = vsel %vm758, %v1010, 0
        %v1419 = vsel %vm758, %v1011, 0
        %v1422 = vsel %vm758, %v1012, 0
        %v1425 = vsel %vm758, %v1013, 0
        %v1428 = vsel %vm758, %v1014, 0
        %v1431 = vsel %vm758, %v1015, 0
        %1433 = vmatprep.subr.mxu0 0.0
        %1434 = vmatpush1.xpose.msra.mxu0 %v1386
        %1435 = vmatprep.subr.mxu0 0.0
        %1436 = vmatpush1.xpose.msra.mxu0 %v1389
        %1437 = vmatprep.subr.mxu0 0.0
        %1438 = vmatpush1.xpose.msra.mxu0 %v1392
        %1439 = vmatprep.subr.mxu0 0.0
        %1440 = vmatpush1.xpose.msra.mxu0 %v1395
        %1441 = vmatprep.subr.mxu0 0.0
        %1442 = vmatpush1.xpose.msra.mxu0 %v1398
        %1443 = vmatprep.subr.mxu0 0.0
        %1444 = vmatpush1.xpose.msra.mxu0 %v1401
        %1445 = vmatprep.subr.mxu0 0.0
        %1446 = vmatpush1.xpose.msra.mxu0 %v1404
        %1447 = vmatprep.subr.mxu0 0.0
        %1448 = vmatpush1.xpose.msra.mxu0 %v1407
        %1449 = vmatprep.subr.mxu0 0.0
        %1450 = vmatpush1.xpose.msra.mxu0 %v1410
        %1451 = vmatprep.subr.mxu0 0.0
        %1452 = vmatpush1.xpose.msra.mxu0 %v1413
        %1453 = vmatprep.subr.mxu0 0.0
        %1454 = vmatpush1.xpose.msra.mxu0 %v1416
        %1455 = vmatprep.subr.mxu0 0.0
        %1456 = vmatpush1.xpose.msra.mxu0 %v1419
        %1457 = vmatprep.subr.mxu0 0.0
        %1458 = vmatpush1.xpose.msra.mxu0 %v1422
        %1459 = vmatprep.subr.mxu0 0.0
        %1460 = vmatpush1.xpose.msra.mxu0 %v1425
        %1461 = vmatprep.subr.mxu0 0.0
        %1462 = vmatpush1.xpose.msra.mxu0 %v1428
        %1463 = vmatprep.subr.mxu0 0.0
        %1464 = vmatpush1.xpose.msra.mxu0 %v1431
        %1465 = vmatprep.subr.mxu0 0.0
        %1466 = vmatpush1.xpose.msra.mxu0 0.0
        %1467 = vmatprep.subr.mxu0 0.0
        %1468 = vmatpush1.xpose.msra.mxu0 0.0
        %1469 = vmatprep.subr.mxu0 0.0
        %1470 = vmatpush1.xpose.msra.mxu0 0.0
        %1471 = vmatprep.subr.mxu0 0.0
        %1472 = vmatpush1.xpose.msra.mxu0 0.0
        %1473 = vmatprep.subr.mxu0 0.0
        %1474 = vmatpush1.xpose.msra.mxu0 0.0
        %1475 = vmatprep.subr.mxu0 0.0
        %1476 = vmatpush1.xpose.msra.mxu0 0.0
        %1477 = vmatprep.subr.mxu0 0.0
        %1478 = vmatpush1.xpose.msra.mxu0 0.0
        %1479 = vmatprep.subr.mxu0 0.0
        %1480 = vmatpush1.xpose.msra.mxu0 0.0
        %1481 = vmatprep.subr.mxu0 0.0
        %1482 = vmatpush1.xpose.msra.mxu0 0.0
        %1483 = vmatprep.subr.mxu0 0.0
        %1484 = vmatpush1.xpose.msra.mxu0 0.0
        %1485 = vmatprep.subr.mxu0 0.0
        %1486 = vmatpush1.xpose.msra.mxu0 0.0
        %1487 = vmatprep.subr.mxu0 0.0
        %1488 = vmatpush1.xpose.msra.mxu0 0.0
        %1489 = vmatprep.subr.mxu0 0.0
        %1490 = vmatpush1.xpose.msra.mxu0 0.0
        %1491 = vmatprep.subr.mxu0 0.0
        %1492 = vmatpush1.xpose.msra.mxu0 0.0
        %1493 = vmatprep.subr.mxu0 0.0
        %1494 = vmatpush1.xpose.msra.mxu0 0.0
        %1495 = vmatprep.subr.mxu0 0.0
        %1496 = vmatpush1.xpose.msra.mxu0 0.0
        %1497 = vmatprep.mubr.f32.mxu0 0.0
        %1498 = vmatmul.mubr.f32.gmra.mrb[0].mxu0 %v1338
        %v1499 = vpop.f32.mrb[0].mxu0
        %v1500 = vadd.f32 0.0, %v1499
        %v1501 = vpop.f32.mrb[0].mxu0
        %1502 = vmatprep.mubr.f32.mxu0 0.0
        %1503 = vmatmul.mubr.f32.gmra.mrb[0].mxu0 %v1341
        %v1504 = vpop.f32.mrb[0].mxu0
        %v1505 = vadd.f32 0.0, %v1504
        %v1506 = vpop.f32.mrb[0].mxu0
        %1507 = vmatprep.mubr.f32.mxu0 0.0
        %1508 = vmatmul.mubr.f32.gmra.mrb[0].mxu0 %v1344
        %v1509 = vpop.f32.mrb[0].mxu0
        %v1510 = vadd.f32 0.0, %v1509
        %v1511 = vpop.f32.mrb[0].mxu0
        %1512 = vmatprep.mubr.f32.mxu0 0.0
        %1513 = vmatmul.mubr.f32.gmra.mrb[0].mxu0 %v1347
        %v1514 = vpop.f32.mrb[0].mxu0
        %v1515 = vadd.f32 0.0, %v1514
        %v1516 = vpop.f32.mrb[0].mxu0
        %1517 = vmatprep.mubr.f32.mxu0 0.0
        %1518 = vmatmul.mubr.f32.gmra.mrb[0].mxu0 %v1350
        %v1519 = vpop.f32.mrb[0].mxu0
        %v1520 = vadd.f32 0.0, %v1519
        %v1521 = vpop.f32.mrb[0].mxu0
        %1522 = vmatprep.mubr.f32.mxu0 0.0
        %1523 = vmatmul.mubr.f32.gmra.mrb[0].mxu0 %v1353
        %v1524 = vpop.f32.mrb[0].mxu0
        %v1525 = vadd.f32 0.0, %v1524
        %v1526 = vpop.f32.mrb[0].mxu0
        %1527 = vmatprep.mubr.f32.mxu0 0.0
        %1528 = vmatmul.mubr.f32.gmra.mrb[0].mxu0 %v1356
        %v1529 = vpop.f32.mrb[0].mxu0
        %v1530 = vadd.f32 0.0, %v1529
        %v1531 = vpop.f32.mrb[0].mxu0
        %1532 = vmatprep.mubr.f32.mxu0 0.0
        %1533 = vmatmul.mubr.f32.gmra.mrb[0].mxu0 %v1359
        %v1534 = vpop.f32.mrb[0].mxu0
        %v1535 = vadd.f32 0.0, %v1534
        %v1536 = vpop.f32.mrb[0].mxu0
        %1537 = vmatprep.mubr.f32.mxu0 0.0
        %1538 = vmatmul.mubr.f32.gmra.mrb[0].mxu0 %v1362
        %v1539 = vpop.f32.mrb[0].mxu0
        %v1540 = vadd.f32 0.0, %v1539
        %v1541 = vpop.f32.mrb[0].mxu0
        %1542 = vmatprep.mubr.f32.mxu0 0.0
        %1543 = vmatmul.mubr.f32.gmra.mrb[0].mxu0 %v1365
        %v1544 = vpop.f32.mrb[0].mxu0
        %v1545 = vadd.f32 0.0, %v1544
        %v1546 = vpop.f32.mrb[0].mxu0
        %1547 = vmatprep.mubr.f32.mxu0 0.0
        %1548 = vmatmul.mubr.f32.gmra.mrb[0].mxu0 %v1368
        %v1549 = vpop.f32.mrb[0].mxu0
        %v1550 = vadd.f32 0.0, %v1549
        %v1551 = vpop.f32.mrb[0].mxu0
        %1552 = vmatprep.mubr.f32.mxu0 0.0
        %1553 = vmatmul.mubr.f32.gmra.mrb[0].mxu0 %v1371
        %v1554 = vpop.f32.mrb[0].mxu0
        %v1555 = vadd.f32 0.0, %v1554
        %v1556 = vpop.f32.mrb[0].mxu0
        %1557 = vmatprep.mubr.f32.mxu0 0.0
        %1558 = vmatmul.mubr.f32.gmra.mrb[0].mxu0 %v1374
        %v1559 = vpop.f32.mrb[0].mxu0
        %v1560 = vadd.f32 0.0, %v1559
        %v1561 = vpop.f32.mrb[0].mxu0
        %1562 = vmatprep.mubr.f32.mxu0 0.0
        %1563 = vmatmul.mubr.f32.gmra.mrb[0].mxu0 %v1377
        %v1564 = vpop.f32.mrb[0].mxu0
        %v1565 = vadd.f32 0.0, %v1564
        %v1566 = vpop.f32.mrb[0].mxu0
        %1567 = vmatprep.mubr.f32.mxu0 0.0
        %1568 = vmatmul.mubr.f32.gmra.mrb[0].mxu0 %v1380
        %v1569 = vpop.f32.mrb[0].mxu0
        %v1570 = vadd.f32 0.0, %v1569
        %v1571 = vpop.f32.mrb[0].mxu0
        %1572 = vmatprep.mubr.f32.mxu0 0.0
        %1573 = vmatmul.mubr.f32.gmra.mrb[0].mxu0 %v1383
        %v1574 = vpop.f32.mrb[0].mxu0
        %v1575 = vadd.f32 0.0, %v1574
        %v1576 = vpop.f32.mrb[0].mxu0
        %1577 = vdwg.mxu0
        %v1578 = vld [vmem:[%s1] sm:$0xff]
        %v1579 = vld [vmem:[%s1 + $0x8] sm:$0xff]
        %v1580 = vld [vmem:[%s1 + $0x10] sm:$0xff]
        %v1581 = vld [vmem:[%s1 + $0x18] sm:$0xff]
        %v1582 = vld [vmem:[%s1 + $0x20] sm:$0xff]
        %v1583 = vld [vmem:[%s1 + $0x28] sm:$0xff]
        %v1584 = vld [vmem:[%s1 + $0x30] sm:$0xff]
        %v1585 = vld [vmem:[%s1 + $0x38] sm:$0xff]
        %v1586 = vld [vmem:[%s1 + $0x40] sm:$0xff]
        %v1587 = vld [vmem:[%s1 + $0x48] sm:$0xff]
        %v1588 = vld [vmem:[%s1 + $0x50] sm:$0xff]
        %v1589 = vld [vmem:[%s1 + $0x58] sm:$0xff]
        %v1590 = vld [vmem:[%s1 + $0x60] sm:$0xff]
        %v1591 = vld [vmem:[%s1 + $0x68] sm:$0xff]
        %v1592 = vld [vmem:[%s1 + $0x70] sm:$0xff]
        %v1593 = vld [vmem:[%s1 + $0x78] sm:$0xff]
        %v1594 = vmul.f32 %v1500, %v1578
        %v1595 = vmul.f32 %v1505, %v1579
        %v1596 = vmul.f32 %v1510, %v1580
        %v1597 = vmul.f32 %v1515, %v1581
        %v1598 = vmul.f32 %v1520, %v1582
        %v1599 = vmul.f32 %v1525, %v1583
        %v1600 = vmul.f32 %v1530, %v1584
        %v1601 = vmul.f32 %v1535, %v1585
        %v1602 = vmul.f32 %v1540, %v1586
        %v1603 = vmul.f32 %v1545, %v1587
        %v1604 = vmul.f32 %v1550, %v1588
        %v1605 = vmul.f32 %v1555, %v1589
        %v1606 = vmul.f32 %v1560, %v1590
        %v1607 = vmul.f32 %v1565, %v1591
        %v1608 = vmul.f32 %v1570, %v1592
        %v1609 = vmul.f32 %v1575, %v1593
        %1612 = vrot.lane.b32.xlu0 %v684, 112
        %v1613 = vpop.permute.xlu0 %1612
        %1614 = vrot.lane.b32.xlu0 %v687, 112
        %v1615 = vpop.permute.xlu0 %1614
        %1618 = vrot.lane.b32.xlu0 %v684, 96
        %v1619 = vpop.permute.xlu0 %1618
        %1620 = vrot.lane.b32.xlu0 %v687, 96
        %v1621 = vpop.permute.xlu0 %1620
        %1624 = vrot.lane.b32.xlu0 %v684, 80
        %v1625 = vpop.permute.xlu0 %1624
        %1626 = vrot.lane.b32.xlu0 %v687, 80
        %v1627 = vpop.permute.xlu0 %1626
        %1630 = vrot.lane.b32.xlu0 %v684, 64
        %v1631 = vpop.permute.xlu0 %1630
        %1632 = vrot.lane.b32.xlu0 %v687, 64
        %v1633 = vpop.permute.xlu0 %1632
        %1636 = vrot.lane.b32.xlu0 %v684, 48
        %v1637 = vpop.permute.xlu0 %1636
        %1638 = vrot.lane.b32.xlu0 %v687, 48
        %v1639 = vpop.permute.xlu0 %1638
        %1642 = vrot.lane.b32.xlu0 %v684, 32
        %v1643 = vpop.permute.xlu0 %1642
        %1644 = vrot.lane.b32.xlu0 %v687, 32
        %v1645 = vpop.permute.xlu0 %1644
        %1648 = vrot.lane.b32.xlu0 %v684, 16
        %v1649 = vpop.permute.xlu0 %1648
        %1650 = vrot.lane.b32.xlu0 %v687, 16
        %v1651 = vpop.permute.xlu0 %1650
        %1654 = vmatprep.subr.mxu0 0.0
        %1655 = vmatpush1.msra.mxu0 %v684
        %1656 = vmatprep.subr.mxu0 0.0
        %1657 = vmatpush1.msra.mxu0 %v687
        %1658 = vmatprep.subr.mxu0 0.0
        %1659 = vmatpush1.msra.mxu0 %v1613
        %1660 = vmatprep.subr.mxu0 0.0
        %1661 = vmatpush1.msra.mxu0 %v1615
        %1662 = vmatprep.subr.mxu0 0.0
        %1663 = vmatpush1.msra.mxu0 %v1619
        %1664 = vmatprep.subr.mxu0 0.0
        %1665 = vmatpush1.msra.mxu0 %v1621
        %1666 = vmatprep.subr.mxu0 0.0
        %1667 = vmatpush1.msra.mxu0 %v1625
        %1668 = vmatprep.subr.mxu0 0.0
        %1669 = vmatpush1.msra.mxu0 %v1627
        %1670 = vmatprep.subr.mxu0 0.0
        %1671 = vmatpush1.msra.mxu0 %v1631
        %1672 = vmatprep.subr.mxu0 0.0
        %1673 = vmatpush1.msra.mxu0 %v1633
        %1674 = vmatprep.subr.mxu0 0.0
        %1675 = vmatpush1.msra.mxu0 %v1637
        %1676 = vmatprep.subr.mxu0 0.0
        %1677 = vmatpush1.msra.mxu0 %v1639
        %1678 = vmatprep.subr.mxu0 0.0
        %1679 = vmatpush1.msra.mxu0 %v1643
        %1680 = vmatprep.subr.mxu0 0.0
        %1681 = vmatpush1.msra.mxu0 %v1645
        %1682 = vmatprep.subr.mxu0 0.0
        %1683 = vmatpush1.msra.mxu0 %v1649
        %1684 = vmatprep.subr.mxu0 0.0
        %1685 = vmatpush1.msra.mxu0 %v1651
        %1686 = vmatprep.subr.mxu0 0.0
        %1687 = vmatpush1.msra.mxu0 0.0
        %1688 = vmatprep.subr.mxu0 0.0
        %1689 = vmatpush1.msra.mxu0 0.0
        %1690 = vmatprep.subr.mxu0 0.0
        %1691 = vmatpush1.msra.mxu0 0.0
        %1692 = vmatprep.subr.mxu0 0.0
        %1693 = vmatpush1.msra.mxu0 0.0
        %1694 = vmatprep.subr.mxu0 0.0
        %1695 = vmatpush1.msra.mxu0 0.0
        %1696 = vmatprep.subr.mxu0 0.0
        %1697 = vmatpush1.msra.mxu0 0.0
        %1698 = vmatprep.subr.mxu0 0.0
        %1699 = vmatpush1.msra.mxu0 0.0
        %1700 = vmatprep.subr.mxu0 0.0
        %1701 = vmatpush1.msra.mxu0 0.0
        %1702 = vmatprep.subr.mxu0 0.0
        %1703 = vmatpush1.msra.mxu0 0.0
        %1704 = vmatprep.subr.mxu0 0.0
        %1705 = vmatpush1.msra.mxu0 0.0
        %1706 = vmatprep.subr.mxu0 0.0
        %1707 = vmatpush1.msra.mxu0 0.0
        %1708 = vmatprep.subr.mxu0 0.0
        %1709 = vmatpush1.msra.mxu0 0.0
        %1710 = vmatprep.subr.mxu0 0.0
        %1711 = vmatpush1.msra.mxu0 0.0
        %1712 = vmatprep.subr.mxu0 0.0
        %1713 = vmatpush1.msra.mxu0 0.0
        %1714 = vmatprep.subr.mxu0 0.0
        %1715 = vmatpush1.msra.mxu0 0.0
        %1716 = vmatprep.subr.mxu0 0.0
        %1717 = vmatpush1.msra.mxu0 0.0
        %1718 = vmatprep.mubr.f32.mxu0 0.0
        %1719 = vmatmul.mubr.f32.gmra.mrb[0].mxu0 %v1594
        %v1720 = vpop.f32.mrb[0].mxu0
        %v1721 = vadd.f32 0.0, %v1720
        %v1722 = vpop.f32.mrb[0].mxu0
        %1723 = vmatprep.mubr.f32.mxu0 0.0
        %1724 = vmatmul.mubr.f32.gmra.mrb[0].mxu0 %v1595
        %v1725 = vpop.f32.mrb[0].mxu0
        %v1726 = vadd.f32 0.0, %v1725
        %v1727 = vpop.f32.mrb[0].mxu0
        %1728 = vmatprep.mubr.f32.mxu0 0.0
        %1729 = vmatmul.mubr.f32.gmra.mrb[0].mxu0 %v1596
        %v1730 = vpop.f32.mrb[0].mxu0
        %v1731 = vadd.f32 0.0, %v1730
        %v1732 = vpop.f32.mrb[0].mxu0
        %1733 = vmatprep.mubr.f32.mxu0 0.0
        %1734 = vmatmul.mubr.f32.gmra.mrb[0].mxu0 %v1597
        %v1735 = vpop.f32.mrb[0].mxu0
        %v1736 = vadd.f32 0.0, %v1735
        %v1737 = vpop.f32.mrb[0].mxu0
        %1738 = vmatprep.mubr.f32.mxu0 0.0
        %1739 = vmatmul.mubr.f32.gmra.mrb[0].mxu0 %v1598
        %v1740 = vpop.f32.mrb[0].mxu0
        %v1741 = vadd.f32 0.0, %v1740
        %v1742 = vpop.f32.mrb[0].mxu0
        %1743 = vmatprep.mubr.f32.mxu0 0.0
        %1744 = vmatmul.mubr.f32.gmra.mrb[0].mxu0 %v1599
        %v1745 = vpop.f32.mrb[0].mxu0
        %v1746 = vadd.f32 0.0, %v1745
        %v1747 = vpop.f32.mrb[0].mxu0
        %1748 = vmatprep.mubr.f32.mxu0 0.0
        %1749 = vmatmul.mubr.f32.gmra.mrb[0].mxu0 %v1600
        %v1750 = vpop.f32.mrb[0].mxu0
        %v1751 = vadd.f32 0.0, %v1750
        %v1752 = vpop.f32.mrb[0].mxu0
        %1753 = vmatprep.mubr.f32.mxu0 0.0
        %1754 = vmatmul.mubr.f32.gmra.mrb[0].mxu0 %v1601
        %v1755 = vpop.f32.mrb[0].mxu0
        %v1756 = vadd.f32 0.0, %v1755
        %v1757 = vpop.f32.mrb[0].mxu0
        %1758 = vmatprep.mubr.f32.mxu0 0.0
        %1759 = vmatmul.mubr.f32.gmra.mrb[0].mxu0 %v1602
        %v1760 = vpop.f32.mrb[0].mxu0
        %v1761 = vadd.f32 0.0, %v1760
        %v1762 = vpop.f32.mrb[0].mxu0
        %1763 = vmatprep.mubr.f32.mxu0 0.0
        %1764 = vmatmul.mubr.f32.gmra.mrb[0].mxu0 %v1603
        %v1765 = vpop.f32.mrb[0].mxu0
        %v1766 = vadd.f32 0.0, %v1765
        %v1767 = vpop.f32.mrb[0].mxu0
        %1768 = vmatprep.mubr.f32.mxu0 0.0
        %1769 = vmatmul.mubr.f32.gmra.mrb[0].mxu0 %v1604
        %v1770 = vpop.f32.mrb[0].mxu0
        %v1771 = vadd.f32 0.0, %v1770
        %v1772 = vpop.f32.mrb[0].mxu0
        %1773 = vmatprep.mubr.f32.mxu0 0.0
        %1774 = vmatmul.mubr.f32.gmra.mrb[0].mxu0 %v1605
        %v1775 = vpop.f32.mrb[0].mxu0
        %v1776 = vadd.f32 0.0, %v1775
        %v1777 = vpop.f32.mrb[0].mxu0
        %1778 = vmatprep.mubr.f32.mxu0 0.0
        %1779 = vmatmul.mubr.f32.gmra.mrb[0].mxu0 %v1606
        %v1780 = vpop.f32.mrb[0].mxu0
        %v1781 = vadd.f32 0.0, %v1780
        %v1782 = vpop.f32.mrb[0].mxu0
        %1783 = vmatprep.mubr.f32.mxu0 0.0
        %1784 = vmatmul.mubr.f32.gmra.mrb[0].mxu0 %v1607
        %v1785 = vpop.f32.mrb[0].mxu0
        %v1786 = vadd.f32 0.0, %v1785
        %v1787 = vpop.f32.mrb[0].mxu0
        %1788 = vmatprep.mubr.f32.mxu0 0.0
        %1789 = vmatmul.mubr.f32.gmra.mrb[0].mxu0 %v1608
        %v1790 = vpop.f32.mrb[0].mxu0
        %v1791 = vadd.f32 0.0, %v1790
        %v1792 = vpop.f32.mrb[0].mxu0
        %1793 = vmatprep.mubr.f32.mxu0 0.0
        %1794 = vmatmul.mubr.f32.gmra.mrb[0].mxu0 %v1609
        %v1795 = vpop.f32.mrb[0].mxu0
        %v1796 = vadd.f32 0.0, %v1795
        %v1797 = vpop.f32.mrb[0].mxu0
        %1798 = vdwg.mxu0
        %1801 = vrot.lane.b32.xlu0 %v1731, 16
        %v1802 = vpop.permute.xlu0 %1801
        %1803 = vrot.lane.b32.xlu0 %v1736, 16
        %v1804 = vpop.permute.xlu0 %1803
        %1809 = vrot.lane.b32.xlu0 %v1741, 32
        %v1810 = vpop.permute.xlu0 %1809
        %1811 = vrot.lane.b32.xlu0 %v1746, 32
        %v1812 = vpop.permute.xlu0 %1811
        %1817 = vrot.lane.b32.xlu0 %v1751, 48
        %v1818 = vpop.permute.xlu0 %1817
        %1819 = vrot.lane.b32.xlu0 %v1756, 48
        %v1820 = vpop.permute.xlu0 %1819
        %1825 = vrot.lane.b32.xlu0 %v1761, 64
        %v1826 = vpop.permute.xlu0 %1825
        %1827 = vrot.lane.b32.xlu0 %v1766, 64
        %v1828 = vpop.permute.xlu0 %1827
        %1833 = vrot.lane.b32.xlu0 %v1771, 80
        %v1834 = vpop.permute.xlu0 %1833
        %1835 = vrot.lane.b32.xlu0 %v1776, 80
        %v1836 = vpop.permute.xlu0 %1835
        %1841 = vrot.lane.b32.xlu0 %v1781, 96
        %v1842 = vpop.permute.xlu0 %1841
        %1843 = vrot.lane.b32.xlu0 %v1786, 96
        %v1844 = vpop.permute.xlu0 %1843
        %1849 = vrot.lane.b32.xlu0 %v1791, 112
        %v1850 = vpop.permute.xlu0 %1849
        %1851 = vrot.lane.b32.xlu0 %v1796, 112
        %v1852 = vpop.permute.xlu0 %1851
        %v1855 = vsel %vm758, %v1721, %v1802
        %v1856 = vsel %vm758, %v1726, %v1804
        %vm1857 = vcmask 261120
        %v1858 = vsel %vm1857, %v1855, %v1810
        %v1859 = vsel %vm1857, %v1856, %v1812
        %vm1860 = vcmask 392192
        %v1861 = vsel %vm1860, %v1858, %v1818
        %v1862 = vsel %vm1860, %v1859, %v1820
        %vm1863 = vcmask 523264
        %v1864 = vsel %vm1863, %v1861, %v1826
        %v1865 = vsel %vm1863, %v1862, %v1828
        %vm1866 = vcmask 654336
        %v1867 = vsel %vm1866, %v1864, %v1834
        %v1868 = vsel %vm1866, %v1865, %v1836
        %vm1869 = vcmask 785408
        %v1870 = vsel %vm1869, %v1867, %v1842
        %v1871 = vsel %vm1869, %v1868, %v1844
        %vm1872 = vcmask 916480
        %v1873 = vsel %vm1872, %v1870, %v1850
        %v1874 = vsel %vm1872, %v1871, %v1852
        %1877 = vrot.lane.b32.xlu0 %v641, 112
        %v1878 = vpop.permute.xlu0 %1877
        %1879 = vrot.lane.b32.xlu0 %v645, 112
        %v1880 = vpop.permute.xlu0 %1879
        %1881 = vrot.lane.b32.xlu0 %v641, 96
        %v1882 = vpop.permute.xlu0 %1881
        %1883 = vrot.lane.b32.xlu0 %v645, 96
        %v1884 = vpop.permute.xlu0 %1883
        %1885 = vrot.lane.b32.xlu0 %v641, 80
        %v1886 = vpop.permute.xlu0 %1885
        %1887 = vrot.lane.b32.xlu0 %v645, 80
        %v1888 = vpop.permute.xlu0 %1887
        %1889 = vrot.lane.b32.xlu0 %v641, 64
        %v1890 = vpop.permute.xlu0 %1889
        %1891 = vrot.lane.b32.xlu0 %v645, 64
        %v1892 = vpop.permute.xlu0 %1891
        %1893 = vrot.lane.b32.xlu0 %v641, 48
        %v1894 = vpop.permute.xlu0 %1893
        %1895 = vrot.lane.b32.xlu0 %v645, 48
        %v1896 = vpop.permute.xlu0 %1895
        %1897 = vrot.lane.b32.xlu0 %v641, 32
        %v1898 = vpop.permute.xlu0 %1897
        %1899 = vrot.lane.b32.xlu0 %v645, 32
        %v1900 = vpop.permute.xlu0 %1899
        %1901 = vrot.lane.b32.xlu0 %v641, 16
        %v1902 = vpop.permute.xlu0 %1901
        %1903 = vrot.lane.b32.xlu0 %v645, 16
        %v1904 = vpop.permute.xlu0 %1903
        %1907 = vrot.lane.b32.xlu0 %v643, 112
        %v1908 = vpop.permute.xlu0 %1907
        %1909 = vrot.lane.b32.xlu0 %v647, 112
        %v1910 = vpop.permute.xlu0 %1909
        %1911 = vrot.lane.b32.xlu0 %v643, 96
        %v1912 = vpop.permute.xlu0 %1911
        %1913 = vrot.lane.b32.xlu0 %v647, 96
        %v1914 = vpop.permute.xlu0 %1913
        %1915 = vrot.lane.b32.xlu0 %v643, 80
        %v1916 = vpop.permute.xlu0 %1915
        %1917 = vrot.lane.b32.xlu0 %v647, 80
        %v1918 = vpop.permute.xlu0 %1917
        %1919 = vrot.lane.b32.xlu0 %v643, 64
        %v1920 = vpop.permute.xlu0 %1919
        %1921 = vrot.lane.b32.xlu0 %v647, 64
        %v1922 = vpop.permute.xlu0 %1921
        %1923 = vrot.lane.b32.xlu0 %v643, 48
        %v1924 = vpop.permute.xlu0 %1923
        %1925 = vrot.lane.b32.xlu0 %v647, 48
        %v1926 = vpop.permute.xlu0 %1925
        %1927 = vrot.lane.b32.xlu0 %v643, 32
        %v1928 = vpop.permute.xlu0 %1927
        %1929 = vrot.lane.b32.xlu0 %v647, 32
        %v1930 = vpop.permute.xlu0 %1929
        %1931 = vrot.lane.b32.xlu0 %v643, 16
        %v1932 = vpop.permute.xlu0 %1931
        %1933 = vrot.lane.b32.xlu0 %v647, 16
        %v1934 = vpop.permute.xlu0 %1933
        %v1935 = vsel %vm758, %v641, 0
        %v1937 = vsel %vm758, %v645, 0
        %v1939 = vsel %vm758, %v1878, 0
        %v1941 = vsel %vm758, %v1880, 0
        %v1943 = vsel %vm758, %v1882, 0
        %v1945 = vsel %vm758, %v1884, 0
        %v1947 = vsel %vm758, %v1886, 0
        %v1949 = vsel %vm758, %v1888, 0
        %v1951 = vsel %vm758, %v1890, 0
        %v1953 = vsel %vm758, %v1892, 0
        %v1955 = vsel %vm758, %v1894, 0
        %v1957 = vsel %vm758, %v1896, 0
        %v1959 = vsel %vm758, %v1898, 0
        %v1961 = vsel %vm758, %v1900, 0
        %v1963 = vsel %vm758, %v1902, 0
        %v1965 = vsel %vm758, %v1904, 0
        %v1967 = vsel %vm758, %v643, 0
        %v1969 = vsel %vm758, %v647, 0
        %v1971 = vsel %vm758, %v1908, 0
        %v1973 = vsel %vm758, %v1910, 0
        %v1975 = vsel %vm758, %v1912, 0
        %v1977 = vsel %vm758, %v1914, 0
        %v1979 = vsel %vm758, %v1916, 0
        %v1981 = vsel %vm758, %v1918, 0
        %v1983 = vsel %vm758, %v1920, 0
        %v1985 = vsel %vm758, %v1922, 0
        %v1987 = vsel %vm758, %v1924, 0
        %v1989 = vsel %vm758, %v1926, 0
        %v1991 = vsel %vm758, %v1928, 0
        %v1993 = vsel %vm758, %v1930, 0
        %v1995 = vsel %vm758, %v1932, 0
        %v1997 = vsel %vm758, %v1934, 0
        %1999 = vmatprep.subr.mxu0 0.0
        %2000 = vmatpush1.xpose.msra.mxu0 %v1967
        %2001 = vmatprep.subr.mxu0 0.0
        %2002 = vmatpush1.xpose.msra.mxu0 %v1969
        %2003 = vmatprep.subr.mxu0 0.0
        %2004 = vmatpush1.xpose.msra.mxu0 %v1971
        %2005 = vmatprep.subr.mxu0 0.0
        %2006 = vmatpush1.xpose.msra.mxu0 %v1973
        %2007 = vmatprep.subr.mxu0 0.0
        %2008 = vmatpush1.xpose.msra.mxu0 %v1975
        %2009 = vmatprep.subr.mxu0 0.0
        %2010 = vmatpush1.xpose.msra.mxu0 %v1977
        %2011 = vmatprep.subr.mxu0 0.0
        %2012 = vmatpush1.xpose.msra.mxu0 %v1979
        %2013 = vmatprep.subr.mxu0 0.0
        %2014 = vmatpush1.xpose.msra.mxu0 %v1981
        %2015 = vmatprep.subr.mxu0 0.0
        %2016 = vmatpush1.xpose.msra.mxu0 %v1983
        %2017 = vmatprep.subr.mxu0 0.0
        %2018 = vmatpush1.xpose.msra.mxu0 %v1985
        %2019 = vmatprep.subr.mxu0 0.0
        %2020 = vmatpush1.xpose.msra.mxu0 %v1987
        %2021 = vmatprep.subr.mxu0 0.0
        %2022 = vmatpush1.xpose.msra.mxu0 %v1989
        %2023 = vmatprep.subr.mxu0 0.0
        %2024 = vmatpush1.xpose.msra.mxu0 %v1991
        %2025 = vmatprep.subr.mxu0 0.0
        %2026 = vmatpush1.xpose.msra.mxu0 %v1993
        %2027 = vmatprep.subr.mxu0 0.0
        %2028 = vmatpush1.xpose.msra.mxu0 %v1995
        %2029 = vmatprep.subr.mxu0 0.0
        %2030 = vmatpush1.xpose.msra.mxu0 %v1997
        %2031 = vmatprep.subr.mxu0 0.0
        %2032 = vmatpush1.xpose.msra.mxu0 0.0
        %2033 = vmatprep.subr.mxu0 0.0
        %2034 = vmatpush1.xpose.msra.mxu0 0.0
        %2035 = vmatprep.subr.mxu0 0.0
        %2036 = vmatpush1.xpose.msra.mxu0 0.0
        %2037 = vmatprep.subr.mxu0 0.0
        %2038 = vmatpush1.xpose.msra.mxu0 0.0
        %2039 = vmatprep.subr.mxu0 0.0
        %2040 = vmatpush1.xpose.msra.mxu0 0.0
        %2041 = vmatprep.subr.mxu0 0.0
        %2042 = vmatpush1.xpose.msra.mxu0 0.0
        %2043 = vmatprep.subr.mxu0 0.0
        %2044 = vmatpush1.xpose.msra.mxu0 0.0
        %2045 = vmatprep.subr.mxu0 0.0
        %2046 = vmatpush1.xpose.msra.mxu0 0.0
        %2047 = vmatprep.subr.mxu0 0.0
        %2048 = vmatpush1.xpose.msra.mxu0 0.0
        %2049 = vmatprep.subr.mxu0 0.0
        %2050 = vmatpush1.xpose.msra.mxu0 0.0
        %2051 = vmatprep.subr.mxu0 0.0
        %2052 = vmatpush1.xpose.msra.mxu0 0.0
        %2053 = vmatprep.subr.mxu0 0.0
        %2054 = vmatpush1.xpose.msra.mxu0 0.0
        %2055 = vmatprep.subr.mxu0 0.0
        %2056 = vmatpush1.xpose.msra.mxu0 0.0
        %2057 = vmatprep.subr.mxu0 0.0
        %2058 = vmatpush1.xpose.msra.mxu0 0.0
        %2059 = vmatprep.subr.mxu0 0.0
        %2060 = vmatpush1.xpose.msra.mxu0 0.0
        %2061 = vmatprep.subr.mxu0 0.0
        %2062 = vmatpush1.xpose.msra.mxu0 0.0
        %2063 = vmatprep.mubr.f32.mxu0 0.0
        %2064 = vmatmul.mubr.f32.gmra.mrb[0].mxu0 %v1935
        %v2065 = vpop.f32.mrb[0].mxu0
        %v2066 = vadd.f32 0.0, %v2065
        %v2067 = vpop.f32.mrb[0].mxu0
        %2068 = vmatprep.mubr.f32.mxu0 0.0
        %2069 = vmatmul.mubr.f32.gmra.mrb[0].mxu0 %v1937
        %v2070 = vpop.f32.mrb[0].mxu0
        %v2071 = vadd.f32 0.0, %v2070
        %v2072 = vpop.f32.mrb[0].mxu0
        %2073 = vmatprep.mubr.f32.mxu0 0.0
        %2074 = vmatmul.mubr.f32.gmra.mrb[0].mxu0 %v1939
        %v2075 = vpop.f32.mrb[0].mxu0
        %v2076 = vadd.f32 0.0, %v2075
        %v2077 = vpop.f32.mrb[0].mxu0
        %2078 = vmatprep.mubr.f32.mxu0 0.0
        %2079 = vmatmul.mubr.f32.gmra.mrb[0].mxu0 %v1941
        %v2080 = vpop.f32.mrb[0].mxu0
        %v2081 = vadd.f32 0.0, %v2080
        %v2082 = vpop.f32.mrb[0].mxu0
        %2083 = vmatprep.mubr.f32.mxu0 0.0
        %2084 = vmatmul.mubr.f32.gmra.mrb[0].mxu0 %v1943
        %v2085 = vpop.f32.mrb[0].mxu0
        %v2086 = vadd.f32 0.0, %v2085
        %v2087 = vpop.f32.mrb[0].mxu0
        %2088 = vmatprep.mubr.f32.mxu0 0.0
        %2089 = vmatmul.mubr.f32.gmra.mrb[0].mxu0 %v1945
        %v2090 = vpop.f32.mrb[0].mxu0
        %v2091 = vadd.f32 0.0, %v2090
        %v2092 = vpop.f32.mrb[0].mxu0
        %2093 = vmatprep.mubr.f32.mxu0 0.0
        %2094 = vmatmul.mubr.f32.gmra.mrb[0].mxu0 %v1947
        %v2095 = vpop.f32.mrb[0].mxu0
        %v2096 = vadd.f32 0.0, %v2095
        %v2097 = vpop.f32.mrb[0].mxu0
        %2098 = vmatprep.mubr.f32.mxu0 0.0
        %2099 = vmatmul.mubr.f32.gmra.mrb[0].mxu0 %v1949
        %v2100 = vpop.f32.mrb[0].mxu0
        %v2101 = vadd.f32 0.0, %v2100
        %v2102 = vpop.f32.mrb[0].mxu0
        %2103 = vmatprep.mubr.f32.mxu0 0.0
        %2104 = vmatmul.mubr.f32.gmra.mrb[0].mxu0 %v1951
        %v2105 = vpop.f32.mrb[0].mxu0
        %v2106 = vadd.f32 0.0, %v2105
        %v2107 = vpop.f32.mrb[0].mxu0
        %2108 = vmatprep.mubr.f32.mxu0 0.0
        %2109 = vmatmul.mubr.f32.gmra.mrb[0].mxu0 %v1953
        %v2110 = vpop.f32.mrb[0].mxu0
        %v2111 = vadd.f32 0.0, %v2110
        %v2112 = vpop.f32.mrb[0].mxu0
        %2113 = vmatprep.mubr.f32.mxu0 0.0
        %2114 = vmatmul.mubr.f32.gmra.mrb[0].mxu0 %v1955
        %v2115 = vpop.f32.mrb[0].mxu0
        %v2116 = vadd.f32 0.0, %v2115
        %v2117 = vpop.f32.mrb[0].mxu0
        %2118 = vmatprep.mubr.f32.mxu0 0.0
        %2119 = vmatmul.mubr.f32.gmra.mrb[0].mxu0 %v1957
        %v2120 = vpop.f32.mrb[0].mxu0
        %v2121 = vadd.f32 0.0, %v2120
        %v2122 = vpop.f32.mrb[0].mxu0
        %2123 = vmatprep.mubr.f32.mxu0 0.0
        %2124 = vmatmul.mubr.f32.gmra.mrb[0].mxu0 %v1959
        %v2125 = vpop.f32.mrb[0].mxu0
        %v2126 = vadd.f32 0.0, %v2125
        %v2127 = vpop.f32.mrb[0].mxu0
        %2128 = vmatprep.mubr.f32.mxu0 0.0
        %2129 = vmatmul.mubr.f32.gmra.mrb[0].mxu0 %v1961
        %v2130 = vpop.f32.mrb[0].mxu0
        %v2131 = vadd.f32 0.0, %v2130
        %v2132 = vpop.f32.mrb[0].mxu0
        %2133 = vmatprep.mubr.f32.mxu0 0.0
        %2134 = vmatmul.mubr.f32.gmra.mrb[0].mxu0 %v1963
        %v2135 = vpop.f32.mrb[0].mxu0
        %v2136 = vadd.f32 0.0, %v2135
        %v2137 = vpop.f32.mrb[0].mxu0
        %2138 = vmatprep.mubr.f32.mxu0 0.0
        %2139 = vmatmul.mubr.f32.gmra.mrb[0].mxu0 %v1965
        %v2140 = vpop.f32.mrb[0].mxu0
        %v2141 = vadd.f32 0.0, %v2140
        %v2142 = vpop.f32.mrb[0].mxu0
        %2143 = vdwg.mxu0
        %v2144 = vld [vmem:[%s1] sm:$0xff]
        %v2145 = vld [vmem:[%s1 + $0x8] sm:$0xff]
        %v2146 = vld [vmem:[%s1 + $0x10] sm:$0xff]
        %v2147 = vld [vmem:[%s1 + $0x18] sm:$0xff]
        %v2148 = vld [vmem:[%s1 + $0x20] sm:$0xff]
        %v2149 = vld [vmem:[%s1 + $0x28] sm:$0xff]
        %v2150 = vld [vmem:[%s1 + $0x30] sm:$0xff]
        %v2151 = vld [vmem:[%s1 + $0x38] sm:$0xff]
        %v2152 = vld [vmem:[%s1 + $0x40] sm:$0xff]
        %v2153 = vld [vmem:[%s1 + $0x48] sm:$0xff]
        %v2154 = vld [vmem:[%s1 + $0x50] sm:$0xff]
        %v2155 = vld [vmem:[%s1 + $0x58] sm:$0xff]
        %v2156 = vld [vmem:[%s1 + $0x60] sm:$0xff]
        %v2157 = vld [vmem:[%s1 + $0x68] sm:$0xff]
        %v2158 = vld [vmem:[%s1 + $0x70] sm:$0xff]
        %v2159 = vld [vmem:[%s1 + $0x78] sm:$0xff]
        %v2160 = vmul.f32 %v2066, %v2144
        %v2161 = vmul.f32 %v2071, %v2145
        %v2162 = vmul.f32 %v2076, %v2146
        %v2163 = vmul.f32 %v2081, %v2147
        %v2164 = vmul.f32 %v2086, %v2148
        %v2165 = vmul.f32 %v2091, %v2149
        %v2166 = vmul.f32 %v2096, %v2150
        %v2167 = vmul.f32 %v2101, %v2151
        %v2168 = vmul.f32 %v2106, %v2152
        %v2169 = vmul.f32 %v2111, %v2153
        %v2170 = vmul.f32 %v2116, %v2154
        %v2171 = vmul.f32 %v2121, %v2155
        %v2172 = vmul.f32 %v2126, %v2156
        %v2173 = vmul.f32 %v2131, %v2157
        %v2174 = vmul.f32 %v2136, %v2158
        %v2175 = vmul.f32 %v2141, %v2159
        %v2176 = vld [vmem:[%s2] sm:$0xff]
        %v2177 = vld [vmem:[%s2 + $0x8] sm:$0xff]
        %v2178 = vld [vmem:[%s2 + $0x10] sm:$0xff]
        %v2179 = vld [vmem:[%s2 + $0x18] sm:$0xff]
        %v2180 = vld [vmem:[%s2 + $0x20] sm:$0xff]
        %v2181 = vld [vmem:[%s2 + $0x28] sm:$0xff]
        %v2182 = vld [vmem:[%s2 + $0x30] sm:$0xff]
        %v2183 = vld [vmem:[%s2 + $0x38] sm:$0xff]
        %v2184 = vld [vmem:[%s2 + $0x40] sm:$0xff]
        %v2185 = vld [vmem:[%s2 + $0x48] sm:$0xff]
        %v2186 = vld [vmem:[%s2 + $0x50] sm:$0xff]
        %v2187 = vld [vmem:[%s2 + $0x58] sm:$0xff]
        %v2188 = vld [vmem:[%s2 + $0x60] sm:$0xff]
        %v2189 = vld [vmem:[%s2 + $0x68] sm:$0xff]
        %v2190 = vld [vmem:[%s2 + $0x70] sm:$0xff]
        %v2191 = vld [vmem:[%s2 + $0x78] sm:$0xff]
        %2192 = vmatprep.subr.mxu0 0.0
        %2193 = vmatpush1.msra.mxu0 %v2176
        %2194 = vmatprep.subr.mxu0 0.0
        %2195 = vmatpush1.msra.mxu0 %v2177
        %2196 = vmatprep.subr.mxu0 0.0
        %2197 = vmatpush1.msra.mxu0 %v2178
        %2198 = vmatprep.subr.mxu0 0.0
        %2199 = vmatpush1.msra.mxu0 %v2179
        %2200 = vmatprep.subr.mxu0 0.0
        %2201 = vmatpush1.msra.mxu0 %v2180
        %2202 = vmatprep.subr.mxu0 0.0
        %2203 = vmatpush1.msra.mxu0 %v2181
        %2204 = vmatprep.subr.mxu0 0.0
        %2205 = vmatpush1.msra.mxu0 %v2182
        %2206 = vmatprep.subr.mxu0 0.0
        %2207 = vmatpush1.msra.mxu0 %v2183
        %2208 = vmatprep.subr.mxu0 0.0
        %2209 = vmatpush1.msra.mxu0 %v2184
        %2210 = vmatprep.subr.mxu0 0.0
        %2211 = vmatpush1.msra.mxu0 %v2185
        %2212 = vmatprep.subr.mxu0 0.0
        %2213 = vmatpush1.msra.mxu0 %v2186
        %2214 = vmatprep.subr.mxu0 0.0
        %2215 = vmatpush1.msra.mxu0 %v2187
        %2216 = vmatprep.subr.mxu0 0.0
        %2217 = vmatpush1.msra.mxu0 %v2188
        %2218 = vmatprep.subr.mxu0 0.0
        %2219 = vmatpush1.msra.mxu0 %v2189
        %2220 = vmatprep.subr.mxu0 0.0
        %2221 = vmatpush1.msra.mxu0 %v2190
        %2222 = vmatprep.subr.mxu0 0.0
        %2223 = vmatpush1.msra.mxu0 %v2191
        %2224 = vmatprep.subr.mxu0 0.0
        %2225 = vmatpush1.msra.mxu0 0.0
        %2226 = vmatprep.subr.mxu0 0.0
        %2227 = vmatpush1.msra.mxu0 0.0
        %2228 = vmatprep.subr.mxu0 0.0
        %2229 = vmatpush1.msra.mxu0 0.0
        %2230 = vmatprep.subr.mxu0 0.0
        %2231 = vmatpush1.msra.mxu0 0.0
        %2232 = vmatprep.subr.mxu0 0.0
        %2233 = vmatpush1.msra.mxu0 0.0
        %2234 = vmatprep.subr.mxu0 0.0
        %2235 = vmatpush1.msra.mxu0 0.0
        %2236 = vmatprep.subr.mxu0 0.0
        %2237 = vmatpush1.msra.mxu0 0.0
        %2238 = vmatprep.subr.mxu0 0.0
        %2239 = vmatpush1.msra.mxu0 0.0
        %2240 = vmatprep.subr.mxu0 0.0
        %2241 = vmatpush1.msra.mxu0 0.0
        %2242 = vmatprep.subr.mxu0 0.0
        %2243 = vmatpush1.msra.mxu0 0.0
        %2244 = vmatprep.subr.mxu0 0.0
        %2245 = vmatpush1.msra.mxu0 0.0
        %2246 = vmatprep.subr.mxu0 0.0
        %2247 = vmatpush1.msra.mxu0 0.0
        %2248 = vmatprep.subr.mxu0 0.0
        %2249 = vmatpush1.msra.mxu0 0.0
        %2250 = vmatprep.subr.mxu0 0.0
        %2251 = vmatpush1.msra.mxu0 0.0
        %2252 = vmatprep.subr.mxu0 0.0
        %2253 = vmatpush1.msra.mxu0 0.0
        %2254 = vmatprep.subr.mxu0 0.0
        %2255 = vmatpush1.msra.mxu0 0.0
        %2256 = vmatprep.mubr.f32.mxu0 0.0
        %2257 = vmatmul.mubr.f32.gmra.mrb[0].mxu0 %v2160
        %v2258 = vpop.f32.mrb[0].mxu0
        %v2259 = vadd.f32 0.0, %v2258
        %v2260 = vpop.f32.mrb[0].mxu0
        %2261 = vmatprep.mubr.f32.mxu0 0.0
        %2262 = vmatmul.mubr.f32.gmra.mrb[0].mxu0 %v2161
        %v2263 = vpop.f32.mrb[0].mxu0
        %v2264 = vadd.f32 0.0, %v2263
        %v2265 = vpop.f32.mrb[0].mxu0
        %2266 = vmatprep.mubr.f32.mxu0 0.0
        %2267 = vmatmul.mubr.f32.gmra.mrb[0].mxu0 %v2162
        %v2268 = vpop.f32.mrb[0].mxu0
        %v2269 = vadd.f32 0.0, %v2268
        %v2270 = vpop.f32.mrb[0].mxu0
        %2271 = vmatprep.mubr.f32.mxu0 0.0
        %2272 = vmatmul.mubr.f32.gmra.mrb[0].mxu0 %v2163
        %v2273 = vpop.f32.mrb[0].mxu0
        %v2274 = vadd.f32 0.0, %v2273
        %v2275 = vpop.f32.mrb[0].mxu0
        %2276 = vmatprep.mubr.f32.mxu0 0.0
        %2277 = vmatmul.mubr.f32.gmra.mrb[0].mxu0 %v2164
        %v2278 = vpop.f32.mrb[0].mxu0
        %v2279 = vadd.f32 0.0, %v2278
        %v2280 = vpop.f32.mrb[0].mxu0
        %2281 = vmatprep.mubr.f32.mxu0 0.0
        %2282 = vmatmul.mubr.f32.gmra.mrb[0].mxu0 %v2165
        %v2283 = vpop.f32.mrb[0].mxu0
        %v2284 = vadd.f32 0.0, %v2283
        %v2285 = vpop.f32.mrb[0].mxu0
        %2286 = vmatprep.mubr.f32.mxu0 0.0
        %2287 = vmatmul.mubr.f32.gmra.mrb[0].mxu0 %v2166
        %v2288 = vpop.f32.mrb[0].mxu0
        %v2289 = vadd.f32 0.0, %v2288
        %v2290 = vpop.f32.mrb[0].mxu0
        %2291 = vmatprep.mubr.f32.mxu0 0.0
        %2292 = vmatmul.mubr.f32.gmra.mrb[0].mxu0 %v2167
        %v2293 = vpop.f32.mrb[0].mxu0
        %v2294 = vadd.f32 0.0, %v2293
        %v2295 = vpop.f32.mrb[0].mxu0
        %2296 = vmatprep.mubr.f32.mxu0 0.0
        %2297 = vmatmul.mubr.f32.gmra.mrb[0].mxu0 %v2168
        %v2298 = vpop.f32.mrb[0].mxu0
        %v2299 = vadd.f32 0.0, %v2298
        %v2300 = vpop.f32.mrb[0].mxu0
        %2301 = vmatprep.mubr.f32.mxu0 0.0
        %2302 = vmatmul.mubr.f32.gmra.mrb[0].mxu0 %v2169
        %v2303 = vpop.f32.mrb[0].mxu0
        %v2304 = vadd.f32 0.0, %v2303
        %v2305 = vpop.f32.mrb[0].mxu0
        %2306 = vmatprep.mubr.f32.mxu0 0.0
        %2307 = vmatmul.mubr.f32.gmra.mrb[0].mxu0 %v2170
        %v2308 = vpop.f32.mrb[0].mxu0
        %v2309 = vadd.f32 0.0, %v2308
        %v2310 = vpop.f32.mrb[0].mxu0
        %2311 = vmatprep.mubr.f32.mxu0 0.0
        %2312 = vmatmul.mubr.f32.gmra.mrb[0].mxu0 %v2171
        %v2313 = vpop.f32.mrb[0].mxu0
        %v2314 = vadd.f32 0.0, %v2313
        %v2315 = vpop.f32.mrb[0].mxu0
        %2316 = vmatprep.mubr.f32.mxu0 0.0
        %2317 = vmatmul.mubr.f32.gmra.mrb[0].mxu0 %v2172
        %v2318 = vpop.f32.mrb[0].mxu0
        %v2319 = vadd.f32 0.0, %v2318
        %v2320 = vpop.f32.mrb[0].mxu0
        %2321 = vmatprep.mubr.f32.mxu0 0.0
        %2322 = vmatmul.mubr.f32.gmra.mrb[0].mxu0 %v2173
        %v2323 = vpop.f32.mrb[0].mxu0
        %v2324 = vadd.f32 0.0, %v2323
        %v2325 = vpop.f32.mrb[0].mxu0
        %2326 = vmatprep.mubr.f32.mxu0 0.0
        %2327 = vmatmul.mubr.f32.gmra.mrb[0].mxu0 %v2174
        %v2328 = vpop.f32.mrb[0].mxu0
        %v2329 = vadd.f32 0.0, %v2328
        %v2330 = vpop.f32.mrb[0].mxu0
        %2331 = vmatprep.mubr.f32.mxu0 0.0
        %2332 = vmatmul.mubr.f32.gmra.mrb[0].mxu0 %v2175
        %v2333 = vpop.f32.mrb[0].mxu0
        %v2334 = vadd.f32 0.0, %v2333
        %v2335 = vpop.f32.mrb[0].mxu0
        %2336 = vdwg.mxu0
        %v2337 = vsel %vm758, %v2259, -inf
        %2338 = vmax.xlane.f32.xlu0 %v2337
        %v2339 = vpop.xlane.xlu0 %2338
        %v2340 = vsel %vm758, %v2264, -inf
        %2341 = vmax.xlane.f32.xlu0 %v2340
        %v2342 = vpop.xlane.xlu0 %2341
        %v2343 = vsel %vm758, %v2269, -inf
        %2344 = vmax.xlane.f32.xlu0 %v2343
        %v2345 = vpop.xlane.xlu0 %2344
        %v2346 = vsel %vm758, %v2274, -inf
        %2347 = vmax.xlane.f32.xlu0 %v2346
        %v2348 = vpop.xlane.xlu0 %2347
        %v2349 = vsel %vm758, %v2279, -inf
        %2350 = vmax.xlane.f32.xlu0 %v2349
        %v2351 = vpop.xlane.xlu0 %2350
        %v2352 = vsel %vm758, %v2284, -inf
        %2353 = vmax.xlane.f32.xlu0 %v2352
        %v2354 = vpop.xlane.xlu0 %2353
        %v2355 = vsel %vm758, %v2289, -inf
        %2356 = vmax.xlane.f32.xlu0 %v2355
        %v2357 = vpop.xlane.xlu0 %2356
        %v2358 = vsel %vm758, %v2294, -inf
        %2359 = vmax.xlane.f32.xlu0 %v2358
        %v2360 = vpop.xlane.xlu0 %2359
        %v2361 = vsel %vm758, %v2299, -inf
        %2362 = vmax.xlane.f32.xlu0 %v2361
        %v2363 = vpop.xlane.xlu0 %2362
        %v2364 = vsel %vm758, %v2304, -inf
        %2365 = vmax.xlane.f32.xlu0 %v2364
        %v2366 = vpop.xlane.xlu0 %2365
        %v2367 = vsel %vm758, %v2309, -inf
        %2368 = vmax.xlane.f32.xlu0 %v2367
        %v2369 = vpop.xlane.xlu0 %2368
        %v2370 = vsel %vm758, %v2314, -inf
        %2371 = vmax.xlane.f32.xlu0 %v2370
        %v2372 = vpop.xlane.xlu0 %2371
        %v2373 = vsel %vm758, %v2319, -inf
        %2374 = vmax.xlane.f32.xlu0 %v2373
        %v2375 = vpop.xlane.xlu0 %2374
        %v2376 = vsel %vm758, %v2324, -inf
        %2377 = vmax.xlane.f32.xlu0 %v2376
        %v2378 = vpop.xlane.xlu0 %2377
        %v2379 = vsel %vm758, %v2329, -inf
        %2380 = vmax.xlane.f32.xlu0 %v2379
        %v2381 = vpop.xlane.xlu0 %2380
        %v2382 = vsel %vm758, %v2334, -inf
        %2383 = vmax.xlane.f32.xlu0 %v2382
        %v2384 = vpop.xlane.xlu0 %2383
        %v2385 = vsub.f32 %v2259, %v2339
        %v2386 = vsub.f32 %v2264, %v2342
        %v2387 = vsub.f32 %v2269, %v2345
        %v2388 = vsub.f32 %v2274, %v2348
        %v2389 = vsub.f32 %v2279, %v2351
        %v2390 = vsub.f32 %v2284, %v2354
        %v2391 = vsub.f32 %v2289, %v2357
        %v2392 = vsub.f32 %v2294, %v2360
        %v2393 = vsub.f32 %v2299, %v2363
        %v2394 = vsub.f32 %v2304, %v2366
        %v2395 = vsub.f32 %v2309, %v2369
        %v2396 = vsub.f32 %v2314, %v2372
        %v2397 = vsub.f32 %v2319, %v2375
        %v2398 = vsub.f32 %v2324, %v2378
        %v2399 = vsub.f32 %v2329, %v2381
        %v2400 = vsub.f32 %v2334, %v2384
        %v2401 = vmul.f32 %v2385, 1.442695
        %v2402 = vpow.pop %v2401
        %v2403 = vmul.f32 %v2386, 1.442695
        %v2404 = vpow.pop %v2403
        %v2405 = vmul.f32 %v2387, 1.442695
        %v2406 = vpow.pop %v2405
        %v2407 = vmul.f32 %v2388, 1.442695
        %v2408 = vpow.pop %v2407
        %v2409 = vmul.f32 %v2389, 1.442695
        %v2410 = vpow.pop %v2409
        %v2411 = vmul.f32 %v2390, 1.442695
        %v2412 = vpow.pop %v2411
        %v2413 = vmul.f32 %v2391, 1.442695
        %v2414 = vpow.pop %v2413
        %v2415 = vmul.f32 %v2392, 1.442695
        %v2416 = vpow.pop %v2415
        %v2417 = vmul.f32 %v2393, 1.442695
        %v2418 = vpow.pop %v2417
        %v2419 = vmul.f32 %v2394, 1.442695
        %v2420 = vpow.pop %v2419
        %v2421 = vmul.f32 %v2395, 1.442695
        %v2422 = vpow.pop %v2421
        %v2423 = vmul.f32 %v2396, 1.442695
        %v2424 = vpow.pop %v2423
        %v2425 = vmul.f32 %v2397, 1.442695
        %v2426 = vpow.pop %v2425
        %v2427 = vmul.f32 %v2398, 1.442695
        %v2428 = vpow.pop %v2427
        %v2429 = vmul.f32 %v2399, 1.442695
        %v2430 = vpow.pop %v2429
        %v2431 = vmul.f32 %v2400, 1.442695
        %v2432 = vpow.pop %v2431
        %v2433 = vsel %vm758, %v2402, 0.0
        %2434 = vadd.xlane.f32.xlu0 %v2433
        %v2435 = vpop.xlane.xlu0 %2434
        %v2436 = vsel %vm758, %v2404, 0.0
        %2437 = vadd.xlane.f32.xlu0 %v2436
        %v2438 = vpop.xlane.xlu0 %2437
        %v2439 = vsel %vm758, %v2406, 0.0
        %2440 = vadd.xlane.f32.xlu0 %v2439
        %v2441 = vpop.xlane.xlu0 %2440
        %v2442 = vsel %vm758, %v2408, 0.0
        %2443 = vadd.xlane.f32.xlu0 %v2442
        %v2444 = vpop.xlane.xlu0 %2443
        %v2445 = vsel %vm758, %v2410, 0.0
        %2446 = vadd.xlane.f32.xlu0 %v2445
        %v2447 = vpop.xlane.xlu0 %2446
        %v2448 = vsel %vm758, %v2412, 0.0
        %2449 = vadd.xlane.f32.xlu0 %v2448
        %v2450 = vpop.xlane.xlu0 %2449
        %v2451 = vsel %vm758, %v2414, 0.0
        %2452 = vadd.xlane.f32.xlu0 %v2451
        %v2453 = vpop.xlane.xlu0 %2452
        %v2454 = vsel %vm758, %v2416, 0.0
        %2455 = vadd.xlane.f32.xlu0 %v2454
        %v2456 = vpop.xlane.xlu0 %2455
        %v2457 = vsel %vm758, %v2418, 0.0
        %2458 = vadd.xlane.f32.xlu0 %v2457
        %v2459 = vpop.xlane.xlu0 %2458
        %v2460 = vsel %vm758, %v2420, 0.0
        %2461 = vadd.xlane.f32.xlu0 %v2460
        %v2462 = vpop.xlane.xlu0 %2461
        %v2463 = vsel %vm758, %v2422, 0.0
        %2464 = vadd.xlane.f32.xlu0 %v2463
        %v2465 = vpop.xlane.xlu0 %2464
        %v2466 = vsel %vm758, %v2424, 0.0
        %2467 = vadd.xlane.f32.xlu0 %v2466
        %v2468 = vpop.xlane.xlu0 %2467
        %v2469 = vsel %vm758, %v2426, 0.0
        %2470 = vadd.xlane.f32.xlu0 %v2469
        %v2471 = vpop.xlane.xlu0 %2470
        %v2472 = vsel %vm758, %v2428, 0.0
        %2473 = vadd.xlane.f32.xlu0 %v2472
        %v2474 = vpop.xlane.xlu0 %2473
        %v2475 = vsel %vm758, %v2430, 0.0
        %2476 = vadd.xlane.f32.xlu0 %v2475
        %v2477 = vpop.xlane.xlu0 %2476
        %v2478 = vsel %vm758, %v2432, 0.0
        %2479 = vadd.xlane.f32.xlu0 %v2478
        %v2480 = vpop.xlane.xlu0 %2479
        %v2481 = vrcp.pop %v2435
        %v2482 = vrcp.pop %v2438
        %v2483 = vrcp.pop %v2441
        %v2484 = vrcp.pop %v2444
        %v2485 = vrcp.pop %v2447
        %v2486 = vrcp.pop %v2450
        %v2487 = vrcp.pop %v2453
        %v2488 = vrcp.pop %v2456
        %v2489 = vrcp.pop %v2459
        %v2490 = vrcp.pop %v2462
        %v2491 = vrcp.pop %v2465
        %v2492 = vrcp.pop %v2468
        %v2493 = vrcp.pop %v2471
        %v2494 = vrcp.pop %v2474
        %v2495 = vrcp.pop %v2477
        %v2496 = vrcp.pop %v2480
        %v2497 = vmul.f32 %v2402, %v2481
        %v2498 = vmul.f32 %v2404, %v2482
        %v2499 = vmul.f32 %v2406, %v2483
        %v2500 = vmul.f32 %v2408, %v2484
        %v2501 = vmul.f32 %v2410, %v2485
        %v2502 = vmul.f32 %v2412, %v2486
        %v2503 = vmul.f32 %v2414, %v2487
        %v2504 = vmul.f32 %v2416, %v2488
        %v2505 = vmul.f32 %v2418, %v2489
        %v2506 = vmul.f32 %v2420, %v2490
        %v2507 = vmul.f32 %v2422, %v2491
        %v2508 = vmul.f32 %v2424, %v2492
        %v2509 = vmul.f32 %v2426, %v2493
        %v2510 = vmul.f32 %v2428, %v2494
        %v2511 = vmul.f32 %v2430, %v2495
        %v2512 = vmul.f32 %v2432, %v2496
        %v2514 = vsel %vm758, %v2497, 0
        %v2517 = vsel %vm758, %v2498, 0
        %v2520 = vsel %vm758, %v2499, 0
        %v2523 = vsel %vm758, %v2500, 0
        %v2526 = vsel %vm758, %v2501, 0
        %v2529 = vsel %vm758, %v2502, 0
        %v2532 = vsel %vm758, %v2503, 0
        %v2535 = vsel %vm758, %v2504, 0
        %v2538 = vsel %vm758, %v2505, 0
        %v2541 = vsel %vm758, %v2506, 0
        %v2544 = vsel %vm758, %v2507, 0
        %v2547 = vsel %vm758, %v2508, 0
        %v2550 = vsel %vm758, %v2509, 0
        %v2553 = vsel %vm758, %v2510, 0
        %v2556 = vsel %vm758, %v2511, 0
        %v2559 = vsel %vm758, %v2512, 0
        %v2562 = vsel %vm758, %v2176, 0
        %v2565 = vsel %vm758, %v2177, 0
        %v2568 = vsel %vm758, %v2178, 0
        %v2571 = vsel %vm758, %v2179, 0
        %v2574 = vsel %vm758, %v2180, 0
        %v2577 = vsel %vm758, %v2181, 0
        %v2580 = vsel %vm758, %v2182, 0
        %v2583 = vsel %vm758, %v2183, 0
        %v2586 = vsel %vm758, %v2184, 0
        %v2589 = vsel %vm758, %v2185, 0
        %v2592 = vsel %vm758, %v2186, 0
        %v2595 = vsel %vm758, %v2187, 0
        %v2598 = vsel %vm758, %v2188, 0
        %v2601 = vsel %vm758, %v2189, 0
        %v2604 = vsel %vm758, %v2190, 0
        %v2607 = vsel %vm758, %v2191, 0
        %2609 = vmatprep.subr.mxu0 0.0
        %2610 = vmatpush1.xpose.msra.mxu0 %v2562
        %2611 = vmatprep.subr.mxu0 0.0
        %2612 = vmatpush1.xpose.msra.mxu0 %v2565
        %2613 = vmatprep.subr.mxu0 0.0
        %2614 = vmatpush1.xpose.msra.mxu0 %v2568
        %2615 = vmatprep.subr.mxu0 0.0
        %2616 = vmatpush1.xpose.msra.mxu0 %v2571
        %2617 = vmatprep.subr.mxu0 0.0
        %2618 = vmatpush1.xpose.msra.mxu0 %v2574
        %2619 = vmatprep.subr.mxu0 0.0
        %2620 = vmatpush1.xpose.msra.mxu0 %v2577
        %2621 = vmatprep.subr.mxu0 0.0
        %2622 = vmatpush1.xpose.msra.mxu0 %v2580
        %2623 = vmatprep.subr.mxu0 0.0
        %2624 = vmatpush1.xpose.msra.mxu0 %v2583
        %2625 = vmatprep.subr.mxu0 0.0
        %2626 = vmatpush1.xpose.msra.mxu0 %v2586
        %2627 = vmatprep.subr.mxu0 0.0
        %2628 = vmatpush1.xpose.msra.mxu0 %v2589
        %2629 = vmatprep.subr.mxu0 0.0
        %2630 = vmatpush1.xpose.msra.mxu0 %v2592
        %2631 = vmatprep.subr.mxu0 0.0
        %2632 = vmatpush1.xpose.msra.mxu0 %v2595
        %2633 = vmatprep.subr.mxu0 0.0
        %2634 = vmatpush1.xpose.msra.mxu0 %v2598
        %2635 = vmatprep.subr.mxu0 0.0
        %2636 = vmatpush1.xpose.msra.mxu0 %v2601
        %2637 = vmatprep.subr.mxu0 0.0
        %2638 = vmatpush1.xpose.msra.mxu0 %v2604
        %2639 = vmatprep.subr.mxu0 0.0
        %2640 = vmatpush1.xpose.msra.mxu0 %v2607
        %2641 = vmatprep.subr.mxu0 0.0
        %2642 = vmatpush1.xpose.msra.mxu0 0.0
        %2643 = vmatprep.subr.mxu0 0.0
        %2644 = vmatpush1.xpose.msra.mxu0 0.0
        %2645 = vmatprep.subr.mxu0 0.0
        %2646 = vmatpush1.xpose.msra.mxu0 0.0
        %2647 = vmatprep.subr.mxu0 0.0
        %2648 = vmatpush1.xpose.msra.mxu0 0.0
        %2649 = vmatprep.subr.mxu0 0.0
        %2650 = vmatpush1.xpose.msra.mxu0 0.0
        %2651 = vmatprep.subr.mxu0 0.0
        %2652 = vmatpush1.xpose.msra.mxu0 0.0
        %2653 = vmatprep.subr.mxu0 0.0
        %2654 = vmatpush1.xpose.msra.mxu0 0.0
        %2655 = vmatprep.subr.mxu0 0.0
        %2656 = vmatpush1.xpose.msra.mxu0 0.0
        %2657 = vmatprep.subr.mxu0 0.0
        %2658 = vmatpush1.xpose.msra.mxu0 0.0
        %2659 = vmatprep.subr.mxu0 0.0
        %2660 = vmatpush1.xpose.msra.mxu0 0.0
        %2661 = vmatprep.subr.mxu0 0.0
        %2662 = vmatpush1.xpose.msra.mxu0 0.0
        %2663 = vmatprep.subr.mxu0 0.0
        %2664 = vmatpush1.xpose.msra.mxu0 0.0
        %2665 = vmatprep.subr.mxu0 0.0
        %2666 = vmatpush1.xpose.msra.mxu0 0.0
        %2667 = vmatprep.subr.mxu0 0.0
        %2668 = vmatpush1.xpose.msra.mxu0 0.0
        %2669 = vmatprep.subr.mxu0 0.0
        %2670 = vmatpush1.xpose.msra.mxu0 0.0
        %2671 = vmatprep.subr.mxu0 0.0
        %2672 = vmatpush1.xpose.msra.mxu0 0.0
        %2673 = vmatprep.mubr.f32.mxu0 0.0
        %2674 = vmatmul.mubr.f32.gmra.mrb[0].mxu0 %v2514
        %v2675 = vpop.f32.mrb[0].mxu0
        %v2676 = vadd.f32 0.0, %v2675
        %v2677 = vpop.f32.mrb[0].mxu0
        %2678 = vmatprep.mubr.f32.mxu0 0.0
        %2679 = vmatmul.mubr.f32.gmra.mrb[0].mxu0 %v2517
        %v2680 = vpop.f32.mrb[0].mxu0
        %v2681 = vadd.f32 0.0, %v2680
        %v2682 = vpop.f32.mrb[0].mxu0
        %2683 = vmatprep.mubr.f32.mxu0 0.0
        %2684 = vmatmul.mubr.f32.gmra.mrb[0].mxu0 %v2520
        %v2685 = vpop.f32.mrb[0].mxu0
        %v2686 = vadd.f32 0.0, %v2685
        %v2687 = vpop.f32.mrb[0].mxu0
        %2688 = vmatprep.mubr.f32.mxu0 0.0
        %2689 = vmatmul.mubr.f32.gmra.mrb[0].mxu0 %v2523
        %v2690 = vpop.f32.mrb[0].mxu0
        %v2691 = vadd.f32 0.0, %v2690
        %v2692 = vpop.f32.mrb[0].mxu0
        %2693 = vmatprep.mubr.f32.mxu0 0.0
        %2694 = vmatmul.mubr.f32.gmra.mrb[0].mxu0 %v2526
        %v2695 = vpop.f32.mrb[0].mxu0
        %v2696 = vadd.f32 0.0, %v2695
        %v2697 = vpop.f32.mrb[0].mxu0
        %2698 = vmatprep.mubr.f32.mxu0 0.0
        %2699 = vmatmul.mubr.f32.gmra.mrb[0].mxu0 %v2529
        %v2700 = vpop.f32.mrb[0].mxu0
        %v2701 = vadd.f32 0.0, %v2700
        %v2702 = vpop.f32.mrb[0].mxu0
        %2703 = vmatprep.mubr.f32.mxu0 0.0
        %2704 = vmatmul.mubr.f32.gmra.mrb[0].mxu0 %v2532
        %v2705 = vpop.f32.mrb[0].mxu0
        %v2706 = vadd.f32 0.0, %v2705
        %v2707 = vpop.f32.mrb[0].mxu0
        %2708 = vmatprep.mubr.f32.mxu0 0.0
        %2709 = vmatmul.mubr.f32.gmra.mrb[0].mxu0 %v2535
        %v2710 = vpop.f32.mrb[0].mxu0
        %v2711 = vadd.f32 0.0, %v2710
        %v2712 = vpop.f32.mrb[0].mxu0
        %2713 = vmatprep.mubr.f32.mxu0 0.0
        %2714 = vmatmul.mubr.f32.gmra.mrb[0].mxu0 %v2538
        %v2715 = vpop.f32.mrb[0].mxu0
        %v2716 = vadd.f32 0.0, %v2715
        %v2717 = vpop.f32.mrb[0].mxu0
        %2718 = vmatprep.mubr.f32.mxu0 0.0
        %2719 = vmatmul.mubr.f32.gmra.mrb[0].mxu0 %v2541
        %v2720 = vpop.f32.mrb[0].mxu0
        %v2721 = vadd.f32 0.0, %v2720
        %v2722 = vpop.f32.mrb[0].mxu0
        %2723 = vmatprep.mubr.f32.mxu0 0.0
        %2724 = vmatmul.mubr.f32.gmra.mrb[0].mxu0 %v2544
        %v2725 = vpop.f32.mrb[0].mxu0
        %v2726 = vadd.f32 0.0, %v2725
        %v2727 = vpop.f32.mrb[0].mxu0
        %2728 = vmatprep.mubr.f32.mxu0 0.0
        %2729 = vmatmul.mubr.f32.gmra.mrb[0].mxu0 %v2547
        %v2730 = vpop.f32.mrb[0].mxu0
        %v2731 = vadd.f32 0.0, %v2730
        %v2732 = vpop.f32.mrb[0].mxu0
        %2733 = vmatprep.mubr.f32.mxu0 0.0
        %2734 = vmatmul.mubr.f32.gmra.mrb[0].mxu0 %v2550
        %v2735 = vpop.f32.mrb[0].mxu0
        %v2736 = vadd.f32 0.0, %v2735
        %v2737 = vpop.f32.mrb[0].mxu0
        %2738 = vmatprep.mubr.f32.mxu0 0.0
        %2739 = vmatmul.mubr.f32.gmra.mrb[0].mxu0 %v2553
        %v2740 = vpop.f32.mrb[0].mxu0
        %v2741 = vadd.f32 0.0, %v2740
        %v2742 = vpop.f32.mrb[0].mxu0
        %2743 = vmatprep.mubr.f32.mxu0 0.0
        %2744 = vmatmul.mubr.f32.gmra.mrb[0].mxu0 %v2556
        %v2745 = vpop.f32.mrb[0].mxu0
        %v2746 = vadd.f32 0.0, %v2745
        %v2747 = vpop.f32.mrb[0].mxu0
        %2748 = vmatprep.mubr.f32.mxu0 0.0
        %2749 = vmatmul.mubr.f32.gmra.mrb[0].mxu0 %v2559
        %v2750 = vpop.f32.mrb[0].mxu0
        %v2751 = vadd.f32 0.0, %v2750
        %v2752 = vpop.f32.mrb[0].mxu0
        %2753 = vdwg.mxu0
        %v2754 = vld [vmem:[%s1] sm:$0xff]
        %v2755 = vld [vmem:[%s1 + $0x8] sm:$0xff]
        %v2756 = vld [vmem:[%s1 + $0x10] sm:$0xff]
        %v2757 = vld [vmem:[%s1 + $0x18] sm:$0xff]
        %v2758 = vld [vmem:[%s1 + $0x20] sm:$0xff]
        %v2759 = vld [vmem:[%s1 + $0x28] sm:$0xff]
        %v2760 = vld [vmem:[%s1 + $0x30] sm:$0xff]
        %v2761 = vld [vmem:[%s1 + $0x38] sm:$0xff]
        %v2762 = vld [vmem:[%s1 + $0x40] sm:$0xff]
        %v2763 = vld [vmem:[%s1 + $0x48] sm:$0xff]
        %v2764 = vld [vmem:[%s1 + $0x50] sm:$0xff]
        %v2765 = vld [vmem:[%s1 + $0x58] sm:$0xff]
        %v2766 = vld [vmem:[%s1 + $0x60] sm:$0xff]
        %v2767 = vld [vmem:[%s1 + $0x68] sm:$0xff]
        %v2768 = vld [vmem:[%s1 + $0x70] sm:$0xff]
        %v2769 = vld [vmem:[%s1 + $0x78] sm:$0xff]
        %v2770 = vmul.f32 %v2676, %v2754
        %v2771 = vmul.f32 %v2681, %v2755
        %v2772 = vmul.f32 %v2686, %v2756
        %v2773 = vmul.f32 %v2691, %v2757
        %v2774 = vmul.f32 %v2696, %v2758
        %v2775 = vmul.f32 %v2701, %v2759
        %v2776 = vmul.f32 %v2706, %v2760
        %v2777 = vmul.f32 %v2711, %v2761
        %v2778 = vmul.f32 %v2716, %v2762
        %v2779 = vmul.f32 %v2721, %v2763
        %v2780 = vmul.f32 %v2726, %v2764
        %v2781 = vmul.f32 %v2731, %v2765
        %v2782 = vmul.f32 %v2736, %v2766
        %v2783 = vmul.f32 %v2741, %v2767
        %v2784 = vmul.f32 %v2746, %v2768
        %v2785 = vmul.f32 %v2751, %v2769
        %2788 = vrot.lane.b32.xlu0 %v692, 112
        %v2789 = vpop.permute.xlu0 %2788
        %2790 = vrot.lane.b32.xlu0 %v695, 112
        %v2791 = vpop.permute.xlu0 %2790
        %2794 = vrot.lane.b32.xlu0 %v692, 96
        %v2795 = vpop.permute.xlu0 %2794
        %2796 = vrot.lane.b32.xlu0 %v695, 96
        %v2797 = vpop.permute.xlu0 %2796
        %2800 = vrot.lane.b32.xlu0 %v692, 80
        %v2801 = vpop.permute.xlu0 %2800
        %2802 = vrot.lane.b32.xlu0 %v695, 80
        %v2803 = vpop.permute.xlu0 %2802
        %2806 = vrot.lane.b32.xlu0 %v692, 64
        %v2807 = vpop.permute.xlu0 %2806
        %2808 = vrot.lane.b32.xlu0 %v695, 64
        %v2809 = vpop.permute.xlu0 %2808
        %2812 = vrot.lane.b32.xlu0 %v692, 48
        %v2813 = vpop.permute.xlu0 %2812
        %2814 = vrot.lane.b32.xlu0 %v695, 48
        %v2815 = vpop.permute.xlu0 %2814
        %2818 = vrot.lane.b32.xlu0 %v692, 32
        %v2819 = vpop.permute.xlu0 %2818
        %2820 = vrot.lane.b32.xlu0 %v695, 32
        %v2821 = vpop.permute.xlu0 %2820
        %2824 = vrot.lane.b32.xlu0 %v692, 16
        %v2825 = vpop.permute.xlu0 %2824
        %2826 = vrot.lane.b32.xlu0 %v695, 16
        %v2827 = vpop.permute.xlu0 %2826
        %2830 = vmatprep.subr.mxu0 0.0
        %2831 = vmatpush1.msra.mxu0 %v692
        %2832 = vmatprep.subr.mxu0 0.0
        %2833 = vmatpush1.msra.mxu0 %v695
        %2834 = vmatprep.subr.mxu0 0.0
        %2835 = vmatpush1.msra.mxu0 %v2789
        %2836 = vmatprep.subr.mxu0 0.0
        %2837 = vmatpush1.msra.mxu0 %v2791
        %2838 = vmatprep.subr.mxu0 0.0
        %2839 = vmatpush1.msra.mxu0 %v2795
        %2840 = vmatprep.subr.mxu0 0.0
        %2841 = vmatpush1.msra.mxu0 %v2797
        %2842 = vmatprep.subr.mxu0 0.0
        %2843 = vmatpush1.msra.mxu0 %v2801
        %2844 = vmatprep.subr.mxu0 0.0
        %2845 = vmatpush1.msra.mxu0 %v2803
        %2846 = vmatprep.subr.mxu0 0.0
        %2847 = vmatpush1.msra.mxu0 %v2807
        %2848 = vmatprep.subr.mxu0 0.0
        %2849 = vmatpush1.msra.mxu0 %v2809
        %2850 = vmatprep.subr.mxu0 0.0
        %2851 = vmatpush1.msra.mxu0 %v2813
        %2852 = vmatprep.subr.mxu0 0.0
        %2853 = vmatpush1.msra.mxu0 %v2815
        %2854 = vmatprep.subr.mxu0 0.0
        %2855 = vmatpush1.msra.mxu0 %v2819
        %2856 = vmatprep.subr.mxu0 0.0
        %2857 = vmatpush1.msra.mxu0 %v2821
        %2858 = vmatprep.subr.mxu0 0.0
        %2859 = vmatpush1.msra.mxu0 %v2825
        %2860 = vmatprep.subr.mxu0 0.0
        %2861 = vmatpush1.msra.mxu0 %v2827
        %2862 = vmatprep.subr.mxu0 0.0
        %2863 = vmatpush1.msra.mxu0 0.0
        %2864 = vmatprep.subr.mxu0 0.0
        %2865 = vmatpush1.msra.mxu0 0.0
        %2866 = vmatprep.subr.mxu0 0.0
        %2867 = vmatpush1.msra.mxu0 0.0
        %2868 = vmatprep.subr.mxu0 0.0
        %2869 = vmatpush1.msra.mxu0 0.0
        %2870 = vmatprep.subr.mxu0 0.0
        %2871 = vmatpush1.msra.mxu0 0.0
        %2872 = vmatprep.subr.mxu0 0.0
        %2873 = vmatpush1.msra.mxu0 0.0
        %2874 = vmatprep.subr.mxu0 0.0
        %2875 = vmatpush1.msra.mxu0 0.0
        %2876 = vmatprep.subr.mxu0 0.0
        %2877 = vmatpush1.msra.mxu0 0.0
        %2878 = vmatprep.subr.mxu0 0.0
        %2879 = vmatpush1.msra.mxu0 0.0
        %2880 = vmatprep.subr.mxu0 0.0
        %2881 = vmatpush1.msra.mxu0 0.0
        %2882 = vmatprep.subr.mxu0 0.0
        %2883 = vmatpush1.msra.mxu0 0.0
        %2884 = vmatprep.subr.mxu0 0.0
        %2885 = vmatpush1.msra.mxu0 0.0
        %2886 = vmatprep.subr.mxu0 0.0
        %2887 = vmatpush1.msra.mxu0 0.0
        %2888 = vmatprep.subr.mxu0 0.0
        %2889 = vmatpush1.msra.mxu0 0.0
        %2890 = vmatprep.subr.mxu0 0.0
        %2891 = vmatpush1.msra.mxu0 0.0
        %2892 = vmatprep.subr.mxu0 0.0
        %2893 = vmatpush1.msra.mxu0 0.0
        %2894 = vmatprep.mubr.f32.mxu0 0.0
        %2895 = vmatmul.mubr.f32.gmra.mrb[0].mxu0 %v2770
        %v2896 = vpop.f32.mrb[0].mxu0
        %v2897 = vadd.f32 0.0, %v2896
        %v2898 = vpop.f32.mrb[0].mxu0
        %2899 = vmatprep.mubr.f32.mxu0 0.0
        %2900 = vmatmul.mubr.f32.gmra.mrb[0].mxu0 %v2771
        %v2901 = vpop.f32.mrb[0].mxu0
        %v2902 = vadd.f32 0.0, %v2901
        %v2903 = vpop.f32.mrb[0].mxu0
        %2904 = vmatprep.mubr.f32.mxu0 0.0
        %2905 = vmatmul.mubr.f32.gmra.mrb[0].mxu0 %v2772
        %v2906 = vpop.f32.mrb[0].mxu0
        %v2907 = vadd.f32 0.0, %v2906
        %v2908 = vpop.f32.mrb[0].mxu0
        %2909 = vmatprep.mubr.f32.mxu0 0.0
        %2910 = vmatmul.mubr.f32.gmra.mrb[0].mxu0 %v2773
        %v2911 = vpop.f32.mrb[0].mxu0
        %v2912 = vadd.f32 0.0, %v2911
        %v2913 = vpop.f32.mrb[0].mxu0
        %2914 = vmatprep.mubr.f32.mxu0 0.0
        %2915 = vmatmul.mubr.f32.gmra.mrb[0].mxu0 %v2774
        %v2916 = vpop.f32.mrb[0].mxu0
        %v2917 = vadd.f32 0.0, %v2916
        %v2918 = vpop.f32.mrb[0].mxu0
        %2919 = vmatprep.mubr.f32.mxu0 0.0
        %2920 = vmatmul.mubr.f32.gmra.mrb[0].mxu0 %v2775
        %v2921 = vpop.f32.mrb[0].mxu0
        %v2922 = vadd.f32 0.0, %v2921
        %v2923 = vpop.f32.mrb[0].mxu0
        %2924 = vmatprep.mubr.f32.mxu0 0.0
        %2925 = vmatmul.mubr.f32.gmra.mrb[0].mxu0 %v2776
        %v2926 = vpop.f32.mrb[0].mxu0
        %v2927 = vadd.f32 0.0, %v2926
        %v2928 = vpop.f32.mrb[0].mxu0
        %2929 = vmatprep.mubr.f32.mxu0 0.0
        %2930 = vmatmul.mubr.f32.gmra.mrb[0].mxu0 %v2777
        %v2931 = vpop.f32.mrb[0].mxu0
        %v2932 = vadd.f32 0.0, %v2931
        %v2933 = vpop.f32.mrb[0].mxu0
        %2934 = vmatprep.mubr.f32.mxu0 0.0
        %2935 = vmatmul.mubr.f32.gmra.mrb[0].mxu0 %v2778
        %v2936 = vpop.f32.mrb[0].mxu0
        %v2937 = vadd.f32 0.0, %v2936
        %v2938 = vpop.f32.mrb[0].mxu0
        %2939 = vmatprep.mubr.f32.mxu0 0.0
        %2940 = vmatmul.mubr.f32.gmra.mrb[0].mxu0 %v2779
        %v2941 = vpop.f32.mrb[0].mxu0
        %v2942 = vadd.f32 0.0, %v2941
        %v2943 = vpop.f32.mrb[0].mxu0
        %2944 = vmatprep.mubr.f32.mxu0 0.0
        %2945 = vmatmul.mubr.f32.gmra.mrb[0].mxu0 %v2780
        %v2946 = vpop.f32.mrb[0].mxu0
        %v2947 = vadd.f32 0.0, %v2946
        %v2948 = vpop.f32.mrb[0].mxu0
        %2949 = vmatprep.mubr.f32.mxu0 0.0
        %2950 = vmatmul.mubr.f32.gmra.mrb[0].mxu0 %v2781
        %v2951 = vpop.f32.mrb[0].mxu0
        %v2952 = vadd.f32 0.0, %v2951
        %v2953 = vpop.f32.mrb[0].mxu0
        %2954 = vmatprep.mubr.f32.mxu0 0.0
        %2955 = vmatmul.mubr.f32.gmra.mrb[0].mxu0 %v2782
        %v2956 = vpop.f32.mrb[0].mxu0
        %v2957 = vadd.f32 0.0, %v2956
        %v2958 = vpop.f32.mrb[0].mxu0
        %2959 = vmatprep.mubr.f32.mxu0 0.0
        %2960 = vmatmul.mubr.f32.gmra.mrb[0].mxu0 %v2783
        %v2961 = vpop.f32.mrb[0].mxu0
        %v2962 = vadd.f32 0.0, %v2961
        %v2963 = vpop.f32.mrb[0].mxu0
        %2964 = vmatprep.mubr.f32.mxu0 0.0
        %2965 = vmatmul.mubr.f32.gmra.mrb[0].mxu0 %v2784
        %v2966 = vpop.f32.mrb[0].mxu0
        %v2967 = vadd.f32 0.0, %v2966
        %v2968 = vpop.f32.mrb[0].mxu0
        %2969 = vmatprep.mubr.f32.mxu0 0.0
        %2970 = vmatmul.mubr.f32.gmra.mrb[0].mxu0 %v2785
        %v2971 = vpop.f32.mrb[0].mxu0
        %v2972 = vadd.f32 0.0, %v2971
        %v2973 = vpop.f32.mrb[0].mxu0
        %2974 = vdwg.mxu0
        %2977 = vrot.lane.b32.xlu0 %v2907, 16
        %v2978 = vpop.permute.xlu0 %2977
        %2979 = vrot.lane.b32.xlu0 %v2912, 16
        %v2980 = vpop.permute.xlu0 %2979
        %2985 = vrot.lane.b32.xlu0 %v2917, 32
        %v2986 = vpop.permute.xlu0 %2985
        %2987 = vrot.lane.b32.xlu0 %v2922, 32
        %v2988 = vpop.permute.xlu0 %2987
        %2993 = vrot.lane.b32.xlu0 %v2927, 48
        %v2994 = vpop.permute.xlu0 %2993
        %2995 = vrot.lane.b32.xlu0 %v2932, 48
        %v2996 = vpop.permute.xlu0 %2995
        %3001 = vrot.lane.b32.xlu0 %v2937, 64
        %v3002 = vpop.permute.xlu0 %3001
        %3003 = vrot.lane.b32.xlu0 %v2942, 64
        %v3004 = vpop.permute.xlu0 %3003
        %3009 = vrot.lane.b32.xlu0 %v2947, 80
        %v3010 = vpop.permute.xlu0 %3009
        %3011 = vrot.lane.b32.xlu0 %v2952, 80
        %v3012 = vpop.permute.xlu0 %3011
        %3017 = vrot.lane.b32.xlu0 %v2957, 96
        %v3018 = vpop.permute.xlu0 %3017
        %3019 = vrot.lane.b32.xlu0 %v2962, 96
        %v3020 = vpop.permute.xlu0 %3019
        %3025 = vrot.lane.b32.xlu0 %v2967, 112
        %v3026 = vpop.permute.xlu0 %3025
        %3027 = vrot.lane.b32.xlu0 %v2972, 112
        %v3028 = vpop.permute.xlu0 %3027
        %v3031 = vsel %vm758, %v2897, %v2978
        %v3032 = vsel %vm758, %v2902, %v2980
        %v3033 = vsel %vm1857, %v3031, %v2986
        %v3034 = vsel %vm1857, %v3032, %v2988
        %v3035 = vsel %vm1860, %v3033, %v2994
        %v3036 = vsel %vm1860, %v3034, %v2996
        %v3037 = vsel %vm1863, %v3035, %v3002
        %v3038 = vsel %vm1863, %v3036, %v3004
        %v3039 = vsel %vm1866, %v3037, %v3010
        %v3040 = vsel %vm1866, %v3038, %v3012
        %v3041 = vsel %vm1869, %v3039, %v3018
        %v3042 = vsel %vm1869, %v3040, %v3020
        %v3043 = vsel %vm1872, %v3041, %v3026
        %v3044 = vsel %vm1872, %v3042, %v3028
        %v3045 = vpack.c.bf16 %v1874, %v1873
        %v3046 = vpack.c.bf16 %v3044, %v3043
        %v3047 = vld [vmem:[%s281 + $0xc] sm:$0xf]
        %v3048 = vld [vmem:[%s281 + $0x2c] sm:$0xf]
        %v3049 = vld [vmem:[%s281 + $0x4c] sm:$0xf]
        %v3050 = vld [vmem:[%s281 + $0x6c] sm:$0xf]
        %v3051 = vld [vmem:[%s281 + $0x8c] sm:$0xf]
        %v3052 = vld [vmem:[%s281 + $0xac] sm:$0xf]
        %v3053 = vld [vmem:[%s281 + $0xcc] sm:$0xf]
        %v3054 = vld [vmem:[%s281 + $0xec] sm:$0xf]
        %v3055 = vld [vmem:[%s281 + $0x10c] sm:$0xf]
        %v3056 = vld [vmem:[%s281 + $0x12c] sm:$0xf]
        %v3057 = vld [vmem:[%s281 + $0x14c] sm:$0xf]
        %v3058 = vld [vmem:[%s281 + $0x16c] sm:$0xf]
        %v3059 = vld [vmem:[%s281 + $0x18c] sm:$0xf]
        %v3060 = vld [vmem:[%s281 + $0x1ac] sm:$0xf]
        %v3061 = vld [vmem:[%s281 + $0x1cc] sm:$0xf]
        %v3062 = vld [vmem:[%s281 + $0x1ec] sm:$0xf]
        %v3079 = vunpack.c.l.b16 %v3047
        %v3080 = vunpack.c.l.b16 %v3048
        %v3081 = vunpack.c.l.b16 %v3049
        %v3082 = vunpack.c.l.b16 %v3050
        %v3083 = vunpack.c.l.b16 %v3051
        %v3084 = vunpack.c.l.b16 %v3052
        %v3085 = vunpack.c.l.b16 %v3053
        %v3086 = vunpack.c.l.b16 %v3054
        %v3087 = vunpack.c.l.b16 %v3055
        %v3088 = vunpack.c.l.b16 %v3056
        %v3089 = vunpack.c.l.b16 %v3057
        %v3090 = vunpack.c.l.b16 %v3058
        %v3091 = vunpack.c.l.b16 %v3059
        %v3092 = vunpack.c.l.b16 %v3060
        %v3093 = vunpack.c.l.b16 %v3061
        %v3094 = vunpack.c.l.b16 %v3062
        %v3095 = vpack.c.b16 %v3080, %v3079
        %v3096 = vpack.c.b16 %v3082, %v3081
        %v3097 = vpack.c.b16 %v3084, %v3083
        %v3098 = vpack.c.b16 %v3086, %v3085
        %v3099 = vpack.c.b16 %v3088, %v3087
        %v3100 = vpack.c.b16 %v3090, %v3089
        %v3101 = vpack.c.b16 %v3092, %v3091
        %v3102 = vpack.c.b16 %v3094, %v3093
        %3111 = vmatprep.subr.bf16.mxu0 0
        %3112 = vmatpush1.bf16.msra.mxu0 %v3095
        %3113 = vmatprep.subr.bf16.mxu0 0
        %3114 = vmatpush1.bf16.msra.mxu0 %v3096
        %3115 = vmatprep.subr.bf16.mxu0 0
        %3116 = vmatpush1.bf16.msra.mxu0 %v3097
        %3117 = vmatprep.subr.bf16.mxu0 0
        %3118 = vmatpush1.bf16.msra.mxu0 %v3098
        %3119 = vmatprep.subr.bf16.mxu0 0
        %3120 = vmatpush1.bf16.msra.mxu0 %v3099
        %3121 = vmatprep.subr.bf16.mxu0 0
        %3122 = vmatpush1.bf16.msra.mxu0 %v3100
        %3123 = vmatprep.subr.bf16.mxu0 0
        %3124 = vmatpush1.bf16.msra.mxu0 %v3101
        %3125 = vmatprep.subr.bf16.mxu0 0
        %3126 = vmatpush1.bf16.msra.mxu0 %v3102
        %3127 = vmatprep.subr.bf16.mxu0 0
        %3128 = vmatpush1.bf16.msra.mxu0 0
        %3129 = vmatprep.subr.bf16.mxu0 0
        %3130 = vmatpush1.bf16.msra.mxu0 0
        %3131 = vmatprep.subr.bf16.mxu0 0
        %3132 = vmatpush1.bf16.msra.mxu0 0
        %3133 = vmatprep.subr.bf16.mxu0 0
        %3134 = vmatpush1.bf16.msra.mxu0 0
        %3135 = vmatprep.subr.bf16.mxu0 0
        %3136 = vmatpush1.bf16.msra.mxu0 0
        %3137 = vmatprep.subr.bf16.mxu0 0
        %3138 = vmatpush1.bf16.msra.mxu0 0
        %3139 = vmatprep.subr.bf16.mxu0 0
        %3140 = vmatpush1.bf16.msra.mxu0 0
        %3141 = vmatprep.subr.bf16.mxu0 0
        %3142 = vmatpush1.bf16.msra.mxu0 0
        %3143 = vmatprep.mubr.bf16.mxu0 0
        %3144 = vmatmul.mubr.bf16.gmra.mrb[0].mxu0 %v3045
        %v3145 = vpop.f32.mrb[0].mxu0
        %v3146 = vadd.f32 0.0, %v3145
        %v3147 = vpop.f32.mrb[0].mxu0
        %v3148 = vpop.f32.mrb[0].mxu0
        %v3149 = vadd.f32 0.0, %v3148
        %v3150 = vpop.f32.mrb[0].mxu0
        %3151 = vmatprep.mubr.bf16.mxu0 0
        %3152 = vmatmul.mubr.bf16.gmra.mrb[0].mxu0 %v3046
        %v3153 = vpop.f32.mrb[0].mxu0
        %v3154 = vadd.f32 0.0, %v3153
        %v3155 = vpop.f32.mrb[0].mxu0
        %v3156 = vpop.f32.mrb[0].mxu0
        %v3157 = vadd.f32 0.0, %v3156
        %v3158 = vpop.f32.mrb[0].mxu0
        %3159 = vdwg.mxu0
        %v3160 = vadd.f32 %v346, %v3146
        %v3161 = vadd.f32 %v347, %v3149
        %v3162 = vadd.f32 %v348, %v3154
        %v3163 = vadd.f32 %v349, %v3157
        %v3164 = vld [vmem:[%s299 + $0x4] sm:$0x1]
        %v3166 = vlaneseq
        %v3167 = vshrl.u32 %v3166, 7
        %v3168 = vsub.s32 0, %v3167
        %v3169 = vrot.slane %v3164, %v3168
        %v3171 = vadd.f32 %v3160, %v3169
        %v3172 = vadd.f32 %v3161, %v3169
        %v3173 = vadd.f32 %v3162, %v3169
        %v3174 = vadd.f32 %v3163, %v3169
        %v3175 = vld [vmem:[%s299 + $0x2] sm:$0x1]
        %v3176 = vld [vmem:[%s299 + $0x3] sm:$0x1]
        %3177 = vadd.xlane.f32.xlu0 %v3171
        %v3178 = vpop.xlane.xlu0 %3177
        %3179 = vadd.xlane.f32.xlu0 %v3172
        %v3180 = vpop.xlane.xlu0 %3179
        %3181 = vadd.xlane.f32.xlu0 %v3173
        %v3182 = vpop.xlane.xlu0 %3181
        %3183 = vadd.xlane.f32.xlu0 %v3174
        %v3184 = vpop.xlane.xlu0 %3183
        %v3185 = vmul.f32 %v3178, %v360
        %v3186 = vmul.f32 %v3180, %v360
        %v3187 = vmul.f32 %v3182, %v360
        %v3188 = vmul.f32 %v3184, %v360
        %v3189 = vsub.f32 %v3171, %v3185
        %v3190 = vsub.f32 %v3172, %v3186
        %v3191 = vsub.f32 %v3173, %v3187
        %v3192 = vsub.f32 %v3174, %v3188
        %v3193 = vmul.f32 %v3189, %v3189
        %v3194 = vmul.f32 %v3190, %v3190
        %v3195 = vmul.f32 %v3191, %v3191
        %v3196 = vmul.f32 %v3192, %v3192
        %3197 = vadd.xlane.f32.xlu0 %v3193
        %v3198 = vpop.xlane.xlu0 %3197
        %3199 = vadd.xlane.f32.xlu0 %v3194
        %v3200 = vpop.xlane.xlu0 %3199
        %3201 = vadd.xlane.f32.xlu0 %v3195
        %v3202 = vpop.xlane.xlu0 %3201
        %3203 = vadd.xlane.f32.xlu0 %v3196
        %v3204 = vpop.xlane.xlu0 %3203
        %v3205 = vmul.f32 %v3198, %v360
        %v3206 = vmul.f32 %v3200, %v360
        %v3207 = vmul.f32 %v3202, %v360
        %v3208 = vmul.f32 %v3204, %v360
        %v3209 = vadd.f32 %v3205, 1e-05
        %v3210 = vadd.f32 %v3206, 1e-05
        %v3211 = vadd.f32 %v3207, 1e-05
        %v3212 = vadd.f32 %v3208, 1e-05
        %v3213 = vrsqrt.pop %v3209
        %v3214 = vrsqrt.pop %v3210
        %v3215 = vrsqrt.pop %v3211
        %v3216 = vrsqrt.pop %v3212
        %v3217 = vmul.f32 %v3189, %v3213
        %v3218 = vmul.f32 %v3190, %v3214
        %v3219 = vmul.f32 %v3191, %v3215
        %v3220 = vmul.f32 %v3192, %v3216
        %v3222 = vlaneseq
        %v3223 = vshrl.u32 %v3222, 7
        %v3224 = vsub.s32 0, %v3223
        %v3225 = vrot.slane %v3175, %v3224
        %v3227 = vmul.f32 %v3217, %v3225
        %v3228 = vmul.f32 %v3218, %v3225
        %v3229 = vmul.f32 %v3219, %v3225
        %v3230 = vmul.f32 %v3220, %v3225
        %v3232 = vlaneseq
        %v3233 = vshrl.u32 %v3232, 7
        %v3234 = vsub.s32 0, %v3233
        %v3235 = vrot.slane %v3176, %v3234
        %v3237 = vadd.f32 %v3227, %v3235
        %v3238 = vadd.f32 %v3228, %v3235
        %v3239 = vadd.f32 %v3229, %v3235
        %v3240 = vadd.f32 %v3230, %v3235
        %v3241 = vpack.c.bf16 %v3238, %v3237
        %v3242 = vpack.c.bf16 %v3240, %v3239
        %v3243 = vld [vmem:[%s281 + $0x10] sm:$0xff]
        %v3244 = vld [vmem:[%s281 + $0x18] sm:$0xff]
        %v3245 = vld [vmem:[%s281 + $0x30] sm:$0xff]
        %v3246 = vld [vmem:[%s281 + $0x38] sm:$0xff]
        %v3247 = vld [vmem:[%s281 + $0x50] sm:$0xff]
        %v3248 = vld [vmem:[%s281 + $0x58] sm:$0xff]
        %v3249 = vld [vmem:[%s281 + $0x70] sm:$0xff]
        %v3250 = vld [vmem:[%s281 + $0x78] sm:$0xff]
        %v3251 = vld [vmem:[%s281 + $0x90] sm:$0xff]
        %v3252 = vld [vmem:[%s281 + $0x98] sm:$0xff]
        %v3253 = vld [vmem:[%s281 + $0xb0] sm:$0xff]
        %v3254 = vld [vmem:[%s281 + $0xb8] sm:$0xff]
        %v3255 = vld [vmem:[%s281 + $0xd0] sm:$0xff]
        %v3256 = vld [vmem:[%s281 + $0xd8] sm:$0xff]
        %v3257 = vld [vmem:[%s281 + $0xf0] sm:$0xff]
        %v3258 = vld [vmem:[%s281 + $0xf8] sm:$0xff]
        %v3259 = vld [vmem:[%s281 + $0x110] sm:$0xff]
        %v3260 = vld [vmem:[%s281 + $0x118] sm:$0xff]
        %v3261 = vld [vmem:[%s281 + $0x130] sm:$0xff]
        %v3262 = vld [vmem:[%s281 + $0x138] sm:$0xff]
        %v3263 = vld [vmem:[%s281 + $0x150] sm:$0xff]
        %v3264 = vld [vmem:[%s281 + $0x158] sm:$0xff]
        %v3265 = vld [vmem:[%s281 + $0x170] sm:$0xff]
        %v3266 = vld [vmem:[%s281 + $0x178] sm:$0xff]
        %v3267 = vld [vmem:[%s281 + $0x190] sm:$0xff]
        %v3268 = vld [vmem:[%s281 + $0x198] sm:$0xff]
        %v3269 = vld [vmem:[%s281 + $0x1b0] sm:$0xff]
        %v3270 = vld [vmem:[%s281 + $0x1b8] sm:$0xff]
        %v3271 = vld [vmem:[%s281 + $0x1d0] sm:$0xff]
        %v3272 = vld [vmem:[%s281 + $0x1d8] sm:$0xff]
        %v3273 = vld [vmem:[%s281 + $0x1f0] sm:$0xff]
        %v3274 = vld [vmem:[%s281 + $0x1f8] sm:$0xff]
        %v3275 = vld [vmem:[%s299 + $0x9] sm:$0xf]
        %v3277 = vlaneseq
        %v3278 = vshrl.u32 %v3277, 7
        %v3279 = vsub.s32 0, %v3278
        %v3280 = vrot.slane %v3275, %v3279
        %v3281 = vlaneseq
        %v3282 = vshrl.u32 %v3281, 7
        %v3283 = vsub.s32 1, %v3282
        %v3284 = vrot.slane %v3275, %v3283
        %v3285 = vlaneseq
        %v3286 = vshrl.u32 %v3285, 7
        %v3287 = vsub.s32 2, %v3286
        %v3288 = vrot.slane %v3275, %v3287
        %v3289 = vlaneseq
        %v3290 = vshrl.u32 %v3289, 7
        %v3291 = vsub.s32 3, %v3290
        %v3292 = vrot.slane %v3275, %v3291
        %v3329 = vunpack.c.l.b16 %v3243
        %v3330 = vunpack.c.h.b16 %v3243
        %v3331 = vunpack.c.l.b16 %v3244
        %v3332 = vunpack.c.h.b16 %v3244
        %v3333 = vunpack.c.l.b16 %v3245
        %v3334 = vunpack.c.h.b16 %v3245
        %v3335 = vunpack.c.l.b16 %v3246
        %v3336 = vunpack.c.h.b16 %v3246
        %v3337 = vunpack.c.l.b16 %v3247
        %v3338 = vunpack.c.h.b16 %v3247
        %v3339 = vunpack.c.l.b16 %v3248
        %v3340 = vunpack.c.h.b16 %v3248
        %v3341 = vunpack.c.l.b16 %v3249
        %v3342 = vunpack.c.h.b16 %v3249
        %v3343 = vunpack.c.l.b16 %v3250
        %v3344 = vunpack.c.h.b16 %v3250
        %v3345 = vunpack.c.l.b16 %v3251
        %v3346 = vunpack.c.h.b16 %v3251
        %v3347 = vunpack.c.l.b16 %v3252
        %v3348 = vunpack.c.h.b16 %v3252
        %v3349 = vunpack.c.l.b16 %v3253
        %v3350 = vunpack.c.h.b16 %v3253
        %v3351 = vunpack.c.l.b16 %v3254
        %v3352 = vunpack.c.h.b16 %v3254
        %v3353 = vunpack.c.l.b16 %v3255
        %v3354 = vunpack.c.h.b16 %v3255
        %v3355 = vunpack.c.l.b16 %v3256
        %v3356 = vunpack.c.h.b16 %v3256
        %v3357 = vunpack.c.l.b16 %v3257
        %v3358 = vunpack.c.h.b16 %v3257
        %v3359 = vunpack.c.l.b16 %v3258
        %v3360 = vunpack.c.h.b16 %v3258
        %v3361 = vunpack.c.l.b16 %v3259
        %v3362 = vunpack.c.h.b16 %v3259
        %v3363 = vunpack.c.l.b16 %v3260
        %v3364 = vunpack.c.h.b16 %v3260
        %v3365 = vunpack.c.l.b16 %v3261
        %v3366 = vunpack.c.h.b16 %v3261
        %v3367 = vunpack.c.l.b16 %v3262
        %v3368 = vunpack.c.h.b16 %v3262
        %v3369 = vunpack.c.l.b16 %v3263
        %v3370 = vunpack.c.h.b16 %v3263
        %v3371 = vunpack.c.l.b16 %v3264
        %v3372 = vunpack.c.h.b16 %v3264
        %v3373 = vunpack.c.l.b16 %v3265
        %v3374 = vunpack.c.h.b16 %v3265
        %v3375 = vunpack.c.l.b16 %v3266
        %v3376 = vunpack.c.h.b16 %v3266
        %v3377 = vunpack.c.l.b16 %v3267
        %v3378 = vunpack.c.h.b16 %v3267
        %v3379 = vunpack.c.l.b16 %v3268
        %v3380 = vunpack.c.h.b16 %v3268
        %v3381 = vunpack.c.l.b16 %v3269
        %v3382 = vunpack.c.h.b16 %v3269
        %v3383 = vunpack.c.l.b16 %v3270
        %v3384 = vunpack.c.h.b16 %v3270
        %v3385 = vunpack.c.l.b16 %v3271
        %v3386 = vunpack.c.h.b16 %v3271
        %v3387 = vunpack.c.l.b16 %v3272
        %v3388 = vunpack.c.h.b16 %v3272
        %v3389 = vunpack.c.l.b16 %v3273
        %v3390 = vunpack.c.h.b16 %v3273
        %v3391 = vunpack.c.l.b16 %v3274
        %v3392 = vunpack.c.h.b16 %v3274
        %v3393 = vpack.c.b16 %v3333, %v3329
        %v3394 = vpack.c.b16 %v3334, %v3330
        %v3395 = vpack.c.b16 %v3335, %v3331
        %v3396 = vpack.c.b16 %v3336, %v3332
        %v3397 = vpack.c.b16 %v3341, %v3337
        %v3398 = vpack.c.b16 %v3342, %v3338
        %v3399 = vpack.c.b16 %v3343, %v3339
        %v3400 = vpack.c.b16 %v3344, %v3340
        %v3401 = vpack.c.b16 %v3349, %v3345
        %v3402 = vpack.c.b16 %v3350, %v3346
        %v3403 = vpack.c.b16 %v3351, %v3347
        %v3404 = vpack.c.b16 %v3352, %v3348
        %v3405 = vpack.c.b16 %v3357, %v3353
        %v3406 = vpack.c.b16 %v3358, %v3354
        %v3407 = vpack.c.b16 %v3359, %v3355
        %v3408 = vpack.c.b16 %v3360, %v3356
        %v3409 = vpack.c.b16 %v3365, %v3361
        %v3410 = vpack.c.b16 %v3366, %v3362
        %v3411 = vpack.c.b16 %v3367, %v3363
        %v3412 = vpack.c.b16 %v3368, %v3364
        %v3413 = vpack.c.b16 %v3373, %v3369
        %v3414 = vpack.c.b16 %v3374, %v3370
        %v3415 = vpack.c.b16 %v3375, %v3371
        %v3416 = vpack.c.b16 %v3376, %v3372
        %v3417 = vpack.c.b16 %v3381, %v3377
        %v3418 = vpack.c.b16 %v3382, %v3378
        %v3419 = vpack.c.b16 %v3383, %v3379
        %v3420 = vpack.c.b16 %v3384, %v3380
        %v3421 = vpack.c.b16 %v3389, %v3385
        %v3422 = vpack.c.b16 %v3390, %v3386
        %v3423 = vpack.c.b16 %v3391, %v3387
        %v3424 = vpack.c.b16 %v3392, %v3388
        %3457 = vmatprep.subr.bf16.mxu0 %v3394
        %3458 = vmatpush1.bf16.msra.mxu0 %v3393
        %3459 = vmatprep.subr.bf16.mxu0 %v3398
        %3460 = vmatpush1.bf16.msra.mxu0 %v3397
        %3461 = vmatprep.subr.bf16.mxu0 %v3402
        %3462 = vmatpush1.bf16.msra.mxu0 %v3401
        %3463 = vmatprep.subr.bf16.mxu0 %v3406
        %3464 = vmatpush1.bf16.msra.mxu0 %v3405
        %3465 = vmatprep.subr.bf16.mxu0 %v3410
        %3466 = vmatpush1.bf16.msra.mxu0 %v3409
        %3467 = vmatprep.subr.bf16.mxu0 %v3414
        %3468 = vmatpush1.bf16.msra.mxu0 %v3413
        %3469 = vmatprep.subr.bf16.mxu0 %v3418
        %3470 = vmatpush1.bf16.msra.mxu0 %v3417
        %3471 = vmatprep.subr.bf16.mxu0 %v3422
        %3472 = vmatpush1.bf16.msra.mxu0 %v3421
        %3473 = vmatprep.subr.bf16.mxu0 0
        %3474 = vmatpush1.bf16.msra.mxu0 0
        %3475 = vmatprep.subr.bf16.mxu0 0
        %3476 = vmatpush1.bf16.msra.mxu0 0
        %3477 = vmatprep.subr.bf16.mxu0 0
        %3478 = vmatpush1.bf16.msra.mxu0 0
        %3479 = vmatprep.subr.bf16.mxu0 0
        %3480 = vmatpush1.bf16.msra.mxu0 0
        %3481 = vmatprep.subr.bf16.mxu0 0
        %3482 = vmatpush1.bf16.msra.mxu0 0
        %3483 = vmatprep.subr.bf16.mxu0 0
        %3484 = vmatpush1.bf16.msra.mxu0 0
        %3485 = vmatprep.subr.bf16.mxu0 0
        %3486 = vmatpush1.bf16.msra.mxu0 0
        %3487 = vmatprep.subr.bf16.mxu0 0
        %3488 = vmatpush1.bf16.msra.mxu0 0
        %3489 = vmatprep.mubr.bf16.mxu0 0
        %3490 = vmatmul.mubr.bf16.gmra.mrb[0].mxu0 %v3241
        %v3491 = vpop.f32.mrb[0].mxu0
        %v3492 = vadd.f32 %v3280, %v3491
        %v3493 = vpop.f32.mrb[0].mxu0
        %v3494 = vadd.f32 %v3284, %v3493
        %v3495 = vpop.f32.mrb[0].mxu0
        %v3496 = vadd.f32 %v3280, %v3495
        %v3497 = vpop.f32.mrb[0].mxu0
        %v3498 = vadd.f32 %v3284, %v3497
        %3499 = vmatprep.mubr.bf16.mxu0 0
        %3500 = vmatmul.mubr.bf16.gmra.mrb[0].mxu0 %v3242
        %v3501 = vpop.f32.mrb[0].mxu0
        %v3502 = vadd.f32 %v3280, %v3501
        %v3503 = vpop.f32.mrb[0].mxu0
        %v3504 = vadd.f32 %v3284, %v3503
        %v3505 = vpop.f32.mrb[0].mxu0
        %v3506 = vadd.f32 %v3280, %v3505
        %v3507 = vpop.f32.mrb[0].mxu0
        %v3508 = vadd.f32 %v3284, %v3507
        %3509 = vdwg.mxu0
        %3510 = vmatprep.subr.bf16.mxu0 %v3396
        %3511 = vmatpush1.bf16.msra.mxu0 %v3395
        %3512 = vmatprep.subr.bf16.mxu0 %v3400
        %3513 = vmatpush1.bf16.msra.mxu0 %v3399
        %3514 = vmatprep.subr.bf16.mxu0 %v3404
        %3515 = vmatpush1.bf16.msra.mxu0 %v3403
        %3516 = vmatprep.subr.bf16.mxu0 %v3408
        %3517 = vmatpush1.bf16.msra.mxu0 %v3407
        %3518 = vmatprep.subr.bf16.mxu0 %v3412
        %3519 = vmatpush1.bf16.msra.mxu0 %v3411
        %3520 = vmatprep.subr.bf16.mxu0 %v3416
        %3521 = vmatpush1.bf16.msra.mxu0 %v3415
        %3522 = vmatprep.subr.bf16.mxu0 %v3420
        %3523 = vmatpush1.bf16.msra.mxu0 %v3419
        %3524 = vmatprep.subr.bf16.mxu0 %v3424
        %3525 = vmatpush1.bf16.msra.mxu0 %v3423
        %3526 = vmatprep.subr.bf16.mxu0 0
        %3527 = vmatpush1.bf16.msra.mxu0 0
        %3528 = vmatprep.subr.bf16.mxu0 0
        %3529 = vmatpush1.bf16.msra.mxu0 0
        %3530 = vmatprep.subr.bf16.mxu0 0
        %3531 = vmatpush1.bf16.msra.mxu0 0
        %3532 = vmatprep.subr.bf16.mxu0 0
        %3533 = vmatpush1.bf16.msra.mxu0 0
        %3534 = vmatprep.subr.bf16.mxu0 0
        %3535 = vmatpush1.bf16.msra.mxu0 0
        %3536 = vmatprep.subr.bf16.mxu0 0
        %3537 = vmatpush1.bf16.msra.mxu0 0
        %3538 = vmatprep.subr.bf16.mxu0 0
        %3539 = vmatpush1.bf16.msra.mxu0 0
        %3540 = vmatprep.subr.bf16.mxu0 0
        %3541 = vmatpush1.bf16.msra.mxu0 0
        %3542 = vmatprep.mubr.bf16.mxu0 0
        %3543 = vmatmul.mubr.bf16.gmra.mrb[0].mxu0 %v3241
        %v3544 = vpop.f32.mrb[0].mxu0
        %v3545 = vadd.f32 %v3288, %v3544
        %v3546 = vpop.f32.mrb[0].mxu0
        %v3547 = vadd.f32 %v3292, %v3546
        %v3548 = vpop.f32.mrb[0].mxu0
        %v3549 = vadd.f32 %v3288, %v3548
        %v3550 = vpop.f32.mrb[0].mxu0
        %v3551 = vadd.f32 %v3292, %v3550
        %3552 = vmatprep.mubr.bf16.mxu0 0
        %3553 = vmatmul.mubr.bf16.gmra.mrb[0].mxu0 %v3242
        %v3554 = vpop.f32.mrb[0].mxu0
        %v3555 = vadd.f32 %v3288, %v3554
        %v3556 = vpop.f32.mrb[0].mxu0
        %v3557 = vadd.f32 %v3292, %v3556
        %v3558 = vpop.f32.mrb[0].mxu0
        %v3559 = vadd.f32 %v3288, %v3558
        %v3560 = vpop.f32.mrb[0].mxu0
        %v3561 = vadd.f32 %v3292, %v3560
        %3562 = vdwg.mxu0
        %v3563 = vmul.f32 %v3492, 0.5
        %v3564 = vmul.f32 %v3494, 0.5
        %v3565 = vmul.f32 %v3545, 0.5
        %v3566 = vmul.f32 %v3547, 0.5
        %v3567 = vmul.f32 %v3496, 0.5
        %v3568 = vmul.f32 %v3498, 0.5
        %v3569 = vmul.f32 %v3549, 0.5
        %v3570 = vmul.f32 %v3551, 0.5
        %v3571 = vmul.f32 %v3502, 0.5
        %v3572 = vmul.f32 %v3504, 0.5
        %v3573 = vmul.f32 %v3555, 0.5
        %v3574 = vmul.f32 %v3557, 0.5
        %v3575 = vmul.f32 %v3506, 0.5
        %v3576 = vmul.f32 %v3508, 0.5
        %v3577 = vmul.f32 %v3559, 0.5
        %v3578 = vmul.f32 %v3561, 0.5
        %v3579 = vmul.f32 %v3492, 0.70710677
        %v3580 = vmul.f32 %v3494, 0.70710677
        %v3581 = vmul.f32 %v3545, 0.70710677
        %v3582 = vmul.f32 %v3547, 0.70710677
        %v3583 = vmul.f32 %v3496, 0.70710677
        %v3584 = vmul.f32 %v3498, 0.70710677
        %v3585 = vmul.f32 %v3549, 0.70710677
        %v3586 = vmul.f32 %v3551, 0.70710677
        %v3587 = vmul.f32 %v3502, 0.70710677
        %v3588 = vmul.f32 %v3504, 0.70710677
        %v3589 = vmul.f32 %v3555, 0.70710677
        %v3590 = vmul.f32 %v3557, 0.70710677
        %v3591 = vmul.f32 %v3506, 0.70710677
        %v3592 = vmul.f32 %v3508, 0.70710677
        %v3593 = vmul.f32 %v3559, 0.70710677
        %v3594 = vmul.f32 %v3561, 0.70710677
        %vm3595 = vcmp.ge.f32.partialorder %v3579, 0.0
        %vm3596 = vcmp.ge.f32.partialorder %v3580, 0.0
        %vm3597 = vcmp.ge.f32.partialorder %v3581, 0.0
        %vm3598 = vcmp.ge.f32.partialorder %v3582, 0.0
        %vm3599 = vcmp.ge.f32.partialorder %v3583, 0.0
        %vm3600 = vcmp.ge.f32.partialorder %v3584, 0.0
        %vm3601 = vcmp.ge.f32.partialorder %v3585, 0.0
        %vm3602 = vcmp.ge.f32.partialorder %v3586, 0.0
        %vm3603 = vcmp.ge.f32.partialorder %v3587, 0.0
        %vm3604 = vcmp.ge.f32.partialorder %v3588, 0.0
        %vm3605 = vcmp.ge.f32.partialorder %v3589, 0.0
        %vm3606 = vcmp.ge.f32.partialorder %v3590, 0.0
        %vm3607 = vcmp.ge.f32.partialorder %v3591, 0.0
        %vm3608 = vcmp.ge.f32.partialorder %v3592, 0.0
        %vm3609 = vcmp.ge.f32.partialorder %v3593, 0.0
        %vm3610 = vcmp.ge.f32.partialorder %v3594, 0.0
        %v3611 = vsel %vm3595, 1.0, -1.0
        %v3612 = vsel %vm3596, 1.0, -1.0
        %v3613 = vsel %vm3597, 1.0, -1.0
        %v3614 = vsel %vm3598, 1.0, -1.0
        %v3615 = vsel %vm3599, 1.0, -1.0
        %v3616 = vsel %vm3600, 1.0, -1.0
        %v3617 = vsel %vm3601, 1.0, -1.0
        %v3618 = vsel %vm3602, 1.0, -1.0
        %v3619 = vsel %vm3603, 1.0, -1.0
        %v3620 = vsel %vm3604, 1.0, -1.0
        %v3621 = vsel %vm3605, 1.0, -1.0
        %v3622 = vsel %vm3606, 1.0, -1.0
        %v3623 = vsel %vm3607, 1.0, -1.0
        %v3624 = vsel %vm3608, 1.0, -1.0
        %v3625 = vsel %vm3609, 1.0, -1.0
        %v3626 = vsel %vm3610, 1.0, -1.0
        %v3627 = vand.u32 2147483647, %v3579
        %v3628 = vand.u32 2147483647, %v3580
        %v3629 = vand.u32 2147483647, %v3581
        %v3630 = vand.u32 2147483647, %v3582
        %v3631 = vand.u32 2147483647, %v3583
        %v3632 = vand.u32 2147483647, %v3584
        %v3633 = vand.u32 2147483647, %v3585
        %v3634 = vand.u32 2147483647, %v3586
        %v3635 = vand.u32 2147483647, %v3587
        %v3636 = vand.u32 2147483647, %v3588
        %v3637 = vand.u32 2147483647, %v3589
        %v3638 = vand.u32 2147483647, %v3590
        %v3639 = vand.u32 2147483647, %v3591
        %v3640 = vand.u32 2147483647, %v3592
        %v3641 = vand.u32 2147483647, %v3593
        %v3642 = vand.u32 2147483647, %v3594
        %v3643 = vmul.f32 %v3627, 0.3275911
        %v3644 = vmul.f32 %v3628, 0.3275911
        %v3645 = vmul.f32 %v3629, 0.3275911
        %v3646 = vmul.f32 %v3630, 0.3275911
        %v3647 = vmul.f32 %v3631, 0.3275911
        %v3648 = vmul.f32 %v3632, 0.3275911
        %v3649 = vmul.f32 %v3633, 0.3275911
        %v3650 = vmul.f32 %v3634, 0.3275911
        %v3651 = vmul.f32 %v3635, 0.3275911
        %v3652 = vmul.f32 %v3636, 0.3275911
        %v3653 = vmul.f32 %v3637, 0.3275911
        %v3654 = vmul.f32 %v3638, 0.3275911
        %v3655 = vmul.f32 %v3639, 0.3275911
        %v3656 = vmul.f32 %v3640, 0.3275911
        %v3657 = vmul.f32 %v3641, 0.3275911
        %v3658 = vmul.f32 %v3642, 0.3275911
        %v3659 = vadd.f32 %v3643, 1.0
        %v3660 = vadd.f32 %v3644, 1.0
        %v3661 = vadd.f32 %v3645, 1.0
        %v3662 = vadd.f32 %v3646, 1.0
        %v3663 = vadd.f32 %v3647, 1.0
        %v3664 = vadd.f32 %v3648, 1.0
        %v3665 = vadd.f32 %v3649, 1.0
        %v3666 = vadd.f32 %v3650, 1.0
        %v3667 = vadd.f32 %v3651, 1.0
        %v3668 = vadd.f32 %v3652, 1.0
        %v3669 = vadd.f32 %v3653, 1.0
        %v3670 = vadd.f32 %v3654, 1.0
        %v3671 = vadd.f32 %v3655, 1.0
        %v3672 = vadd.f32 %v3656, 1.0
        %v3673 = vadd.f32 %v3657, 1.0
        %v3674 = vadd.f32 %v3658, 1.0
        %v3675 = vrcp.pop %v3659
        %v3676 = vrcp.pop %v3660
        %v3677 = vrcp.pop %v3661
        %v3678 = vrcp.pop %v3662
        %v3679 = vrcp.pop %v3663
        %v3680 = vrcp.pop %v3664
        %v3681 = vrcp.pop %v3665
        %v3682 = vrcp.pop %v3666
        %v3683 = vrcp.pop %v3667
        %v3684 = vrcp.pop %v3668
        %v3685 = vrcp.pop %v3669
        %v3686 = vrcp.pop %v3670
        %v3687 = vrcp.pop %v3671
        %v3688 = vrcp.pop %v3672
        %v3689 = vrcp.pop %v3673
        %v3690 = vrcp.pop %v3674
        %v3691 = vmul.f32 %v3675, 1.0614054
        %v3692 = vmul.f32 %v3676, 1.0614054
        %v3693 = vmul.f32 %v3677, 1.0614054
        %v3694 = vmul.f32 %v3678, 1.0614054
        %v3695 = vmul.f32 %v3679, 1.0614054
        %v3696 = vmul.f32 %v3680, 1.0614054
        %v3697 = vmul.f32 %v3681, 1.0614054
        %v3698 = vmul.f32 %v3682, 1.0614054
        %v3699 = vmul.f32 %v3683, 1.0614054
        %v3700 = vmul.f32 %v3684, 1.0614054
        %v3701 = vmul.f32 %v3685, 1.0614054
        %v3702 = vmul.f32 %v3686, 1.0614054
        %v3703 = vmul.f32 %v3687, 1.0614054
        %v3704 = vmul.f32 %v3688, 1.0614054
        %v3705 = vmul.f32 %v3689, 1.0614054
        %v3706 = vmul.f32 %v3690, 1.0614054
        %v3707 = vadd.f32 %v3691, -1.4531521
        %v3708 = vadd.f32 %v3692, -1.4531521
        %v3709 = vadd.f32 %v3693, -1.4531521
        %v3710 = vadd.f32 %v3694, -1.4531521
        %v3711 = vadd.f32 %v3695, -1.4531521
        %v3712 = vadd.f32 %v3696, -1.4531521
        %v3713 = vadd.f32 %v3697, -1.4531521
        %v3714 = vadd.f32 %v3698, -1.4531521
        %v3715 = vadd.f32 %v3699, -1.4531521
        %v3716 = vadd.f32 %v3700, -1.4531521
        %v3717 = vadd.f32 %v3701, -1.4531521
        %v3718 = vadd.f32 %v3702, -1.4531521
        %v3719 = vadd.f32 %v3703, -1.4531521
        %v3720 = vadd.f32 %v3704, -1.4531521
        %v3721 = vadd.f32 %v3705, -1.4531521
        %v3722 = vadd.f32 %v3706, -1.4531521
        %v3723 = vmul.f32 %v3707, %v3675
        %v3724 = vmul.f32 %v3708, %v3676
        %v3725 = vmul.f32 %v3709, %v3677
        %v3726 = vmul.f32 %v3710, %v3678
        %v3727 = vmul.f32 %v3711, %v3679
        %v3728 = vmul.f32 %v3712, %v3680
        %v3729 = vmul.f32 %v3713, %v3681
        %v3730 = vmul.f32 %v3714, %v3682
        %v3731 = vmul.f32 %v3715, %v3683
        %v3732 = vmul.f32 %v3716, %v3684
        %v3733 = vmul.f32 %v3717, %v3685
        %v3734 = vmul.f32 %v3718, %v3686
        %v3735 = vmul.f32 %v3719, %v3687
        %v3736 = vmul.f32 %v3720, %v3688
        %v3737 = vmul.f32 %v3721, %v3689
        %v3738 = vmul.f32 %v3722, %v3690
        %v3739 = vadd.f32 %v3723, 1.4214138
        %v3740 = vadd.f32 %v3724, 1.4214138
        %v3741 = vadd.f32 %v3725, 1.4214138
        %v3742 = vadd.f32 %v3726, 1.4214138
        %v3743 = vadd.f32 %v3727, 1.4214138
        %v3744 = vadd.f32 %v3728, 1.4214138
        %v3745 = vadd.f32 %v3729, 1.4214138
        %v3746 = vadd.f32 %v3730, 1.4214138
        %v3747 = vadd.f32 %v3731, 1.4214138
        %v3748 = vadd.f32 %v3732, 1.4214138
        %v3749 = vadd.f32 %v3733, 1.4214138
        %v3750 = vadd.f32 %v3734, 1.4214138
        %v3751 = vadd.f32 %v3735, 1.4214138
        %v3752 = vadd.f32 %v3736, 1.4214138
        %v3753 = vadd.f32 %v3737, 1.4214138
        %v3754 = vadd.f32 %v3738, 1.4214138
        %v3755 = vmul.f32 %v3739, %v3675
        %v3756 = vmul.f32 %v3740, %v3676
        %v3757 = vmul.f32 %v3741, %v3677
        %v3758 = vmul.f32 %v3742, %v3678
        %v3759 = vmul.f32 %v3743, %v3679
        %v3760 = vmul.f32 %v3744, %v3680
        %v3761 = vmul.f32 %v3745, %v3681
        %v3762 = vmul.f32 %v3746, %v3682
        %v3763 = vmul.f32 %v3747, %v3683
        %v3764 = vmul.f32 %v3748, %v3684
        %v3765 = vmul.f32 %v3749, %v3685
        %v3766 = vmul.f32 %v3750, %v3686
        %v3767 = vmul.f32 %v3751, %v3687
        %v3768 = vmul.f32 %v3752, %v3688
        %v3769 = vmul.f32 %v3753, %v3689
        %v3770 = vmul.f32 %v3754, %v3690
        %v3771 = vadd.f32 %v3755, -0.28449672
        %v3772 = vadd.f32 %v3756, -0.28449672
        %v3773 = vadd.f32 %v3757, -0.28449672
        %v3774 = vadd.f32 %v3758, -0.28449672
        %v3775 = vadd.f32 %v3759, -0.28449672
        %v3776 = vadd.f32 %v3760, -0.28449672
        %v3777 = vadd.f32 %v3761, -0.28449672
        %v3778 = vadd.f32 %v3762, -0.28449672
        %v3779 = vadd.f32 %v3763, -0.28449672
        %v3780 = vadd.f32 %v3764, -0.28449672
        %v3781 = vadd.f32 %v3765, -0.28449672
        %v3782 = vadd.f32 %v3766, -0.28449672
        %v3783 = vadd.f32 %v3767, -0.28449672
        %v3784 = vadd.f32 %v3768, -0.28449672
        %v3785 = vadd.f32 %v3769, -0.28449672
        %v3786 = vadd.f32 %v3770, -0.28449672
        %v3787 = vmul.f32 %v3771, %v3675
        %v3788 = vmul.f32 %v3772, %v3676
        %v3789 = vmul.f32 %v3773, %v3677
        %v3790 = vmul.f32 %v3774, %v3678
        %v3791 = vmul.f32 %v3775, %v3679
        %v3792 = vmul.f32 %v3776, %v3680
        %v3793 = vmul.f32 %v3777, %v3681
        %v3794 = vmul.f32 %v3778, %v3682
        %v3795 = vmul.f32 %v3779, %v3683
        %v3796 = vmul.f32 %v3780, %v3684
        %v3797 = vmul.f32 %v3781, %v3685
        %v3798 = vmul.f32 %v3782, %v3686
        %v3799 = vmul.f32 %v3783, %v3687
        %v3800 = vmul.f32 %v3784, %v3688
        %v3801 = vmul.f32 %v3785, %v3689
        %v3802 = vmul.f32 %v3786, %v3690
        %v3803 = vadd.f32 %v3787, 0.2548296
        %v3804 = vadd.f32 %v3788, 0.2548296
        %v3805 = vadd.f32 %v3789, 0.2548296
        %v3806 = vadd.f32 %v3790, 0.2548296
        %v3807 = vadd.f32 %v3791, 0.2548296
        %v3808 = vadd.f32 %v3792, 0.2548296
        %v3809 = vadd.f32 %v3793, 0.2548296
        %v3810 = vadd.f32 %v3794, 0.2548296
        %v3811 = vadd.f32 %v3795, 0.2548296
        %v3812 = vadd.f32 %v3796, 0.2548296
        %v3813 = vadd.f32 %v3797, 0.2548296
        %v3814 = vadd.f32 %v3798, 0.2548296
        %v3815 = vadd.f32 %v3799, 0.2548296
        %v3816 = vadd.f32 %v3800, 0.2548296
        %v3817 = vadd.f32 %v3801, 0.2548296
        %v3818 = vadd.f32 %v3802, 0.2548296
        %v3819 = vmul.f32 %v3803, %v3675
        %v3820 = vmul.f32 %v3804, %v3676
        %v3821 = vmul.f32 %v3805, %v3677
        %v3822 = vmul.f32 %v3806, %v3678
        %v3823 = vmul.f32 %v3807, %v3679
        %v3824 = vmul.f32 %v3808, %v3680
        %v3825 = vmul.f32 %v3809, %v3681
        %v3826 = vmul.f32 %v3810, %v3682
        %v3827 = vmul.f32 %v3811, %v3683
        %v3828 = vmul.f32 %v3812, %v3684
        %v3829 = vmul.f32 %v3813, %v3685
        %v3830 = vmul.f32 %v3814, %v3686
        %v3831 = vmul.f32 %v3815, %v3687
        %v3832 = vmul.f32 %v3816, %v3688
        %v3833 = vmul.f32 %v3817, %v3689
        %v3834 = vmul.f32 %v3818, %v3690
        %v3835 = vsub.f32 0.0, %v3627
        %v3836 = vsub.f32 0.0, %v3628
        %v3837 = vsub.f32 0.0, %v3629
        %v3838 = vsub.f32 0.0, %v3630
        %v3839 = vsub.f32 0.0, %v3631
        %v3840 = vsub.f32 0.0, %v3632
        %v3841 = vsub.f32 0.0, %v3633
        %v3842 = vsub.f32 0.0, %v3634
        %v3843 = vsub.f32 0.0, %v3635
        %v3844 = vsub.f32 0.0, %v3636
        %v3845 = vsub.f32 0.0, %v3637
        %v3846 = vsub.f32 0.0, %v3638
        %v3847 = vsub.f32 0.0, %v3639
        %v3848 = vsub.f32 0.0, %v3640
        %v3849 = vsub.f32 0.0, %v3641
        %v3850 = vsub.f32 0.0, %v3642
        %v3851 = vmul.f32 %v3835, %v3627
        %v3852 = vmul.f32 %v3836, %v3628
        %v3853 = vmul.f32 %v3837, %v3629
        %v3854 = vmul.f32 %v3838, %v3630
        %v3855 = vmul.f32 %v3839, %v3631
        %v3856 = vmul.f32 %v3840, %v3632
        %v3857 = vmul.f32 %v3841, %v3633
        %v3858 = vmul.f32 %v3842, %v3634
        %v3859 = vmul.f32 %v3843, %v3635
        %v3860 = vmul.f32 %v3844, %v3636
        %v3861 = vmul.f32 %v3845, %v3637
        %v3862 = vmul.f32 %v3846, %v3638
        %v3863 = vmul.f32 %v3847, %v3639
        %v3864 = vmul.f32 %v3848, %v3640
        %v3865 = vmul.f32 %v3849, %v3641
        %v3866 = vmul.f32 %v3850, %v3642
        %v3867 = vmul.f32 %v3851, 1.442695
        %v3868 = vpow.pop %v3867
        %v3869 = vmul.f32 %v3852, 1.442695
        %v3870 = vpow.pop %v3869
        %v3871 = vmul.f32 %v3853, 1.442695
        %v3872 = vpow.pop %v3871
        %v3873 = vmul.f32 %v3854, 1.442695
        %v3874 = vpow.pop %v3873
        %v3875 = vmul.f32 %v3855, 1.442695
        %v3876 = vpow.pop %v3875
        %v3877 = vmul.f32 %v3856, 1.442695
        %v3878 = vpow.pop %v3877
        %v3879 = vmul.f32 %v3857, 1.442695
        %v3880 = vpow.pop %v3879
        %v3881 = vmul.f32 %v3858, 1.442695
        %v3882 = vpow.pop %v3881
        %v3883 = vmul.f32 %v3859, 1.442695
        %v3884 = vpow.pop %v3883
        %v3885 = vmul.f32 %v3860, 1.442695
        %v3886 = vpow.pop %v3885
        %v3887 = vmul.f32 %v3861, 1.442695
        %v3888 = vpow.pop %v3887
        %v3889 = vmul.f32 %v3862, 1.442695
        %v3890 = vpow.pop %v3889
        %v3891 = vmul.f32 %v3863, 1.442695
        %v3892 = vpow.pop %v3891
        %v3893 = vmul.f32 %v3864, 1.442695
        %v3894 = vpow.pop %v3893
        %v3895 = vmul.f32 %v3865, 1.442695
        %v3896 = vpow.pop %v3895
        %v3897 = vmul.f32 %v3866, 1.442695
        %v3898 = vpow.pop %v3897
        %v3899 = vmul.f32 %v3819, %v3868
        %v3900 = vmul.f32 %v3820, %v3870
        %v3901 = vmul.f32 %v3821, %v3872
        %v3902 = vmul.f32 %v3822, %v3874
        %v3903 = vmul.f32 %v3823, %v3876
        %v3904 = vmul.f32 %v3824, %v3878
        %v3905 = vmul.f32 %v3825, %v3880
        %v3906 = vmul.f32 %v3826, %v3882
        %v3907 = vmul.f32 %v3827, %v3884
        %v3908 = vmul.f32 %v3828, %v3886
        %v3909 = vmul.f32 %v3829, %v3888
        %v3910 = vmul.f32 %v3830, %v3890
        %v3911 = vmul.f32 %v3831, %v3892
        %v3912 = vmul.f32 %v3832, %v3894
        %v3913 = vmul.f32 %v3833, %v3896
        %v3914 = vmul.f32 %v3834, %v3898
        %v3915 = vsub.f32 1.0, %v3899
        %v3916 = vsub.f32 1.0, %v3900
        %v3917 = vsub.f32 1.0, %v3901
        %v3918 = vsub.f32 1.0, %v3902
        %v3919 = vsub.f32 1.0, %v3903
        %v3920 = vsub.f32 1.0, %v3904
        %v3921 = vsub.f32 1.0, %v3905
        %v3922 = vsub.f32 1.0, %v3906
        %v3923 = vsub.f32 1.0, %v3907
        %v3924 = vsub.f32 1.0, %v3908
        %v3925 = vsub.f32 1.0, %v3909
        %v3926 = vsub.f32 1.0, %v3910
        %v3927 = vsub.f32 1.0, %v3911
        %v3928 = vsub.f32 1.0, %v3912
        %v3929 = vsub.f32 1.0, %v3913
        %v3930 = vsub.f32 1.0, %v3914
        %v3931 = vmul.f32 %v3611, %v3915
        %v3932 = vmul.f32 %v3612, %v3916
        %v3933 = vmul.f32 %v3613, %v3917
        %v3934 = vmul.f32 %v3614, %v3918
        %v3935 = vmul.f32 %v3615, %v3919
        %v3936 = vmul.f32 %v3616, %v3920
        %v3937 = vmul.f32 %v3617, %v3921
        %v3938 = vmul.f32 %v3618, %v3922
        %v3939 = vmul.f32 %v3619, %v3923
        %v3940 = vmul.f32 %v3620, %v3924
        %v3941 = vmul.f32 %v3621, %v3925
        %v3942 = vmul.f32 %v3622, %v3926
        %v3943 = vmul.f32 %v3623, %v3927
        %v3944 = vmul.f32 %v3624, %v3928
        %v3945 = vmul.f32 %v3625, %v3929
        %v3946 = vmul.f32 %v3626, %v3930
        %v3947 = vadd.f32 %v3931, 1.0
        %v3948 = vadd.f32 %v3932, 1.0
        %v3949 = vadd.f32 %v3933, 1.0
        %v3950 = vadd.f32 %v3934, 1.0
        %v3951 = vadd.f32 %v3935, 1.0
        %v3952 = vadd.f32 %v3936, 1.0
        %v3953 = vadd.f32 %v3937, 1.0
        %v3954 = vadd.f32 %v3938, 1.0
        %v3955 = vadd.f32 %v3939, 1.0
        %v3956 = vadd.f32 %v3940, 1.0
        %v3957 = vadd.f32 %v3941, 1.0
        %v3958 = vadd.f32 %v3942, 1.0
        %v3959 = vadd.f32 %v3943, 1.0
        %v3960 = vadd.f32 %v3944, 1.0
        %v3961 = vadd.f32 %v3945, 1.0
        %v3962 = vadd.f32 %v3946, 1.0
        %v3963 = vmul.f32 %v3563, %v3947
        %v3964 = vmul.f32 %v3564, %v3948
        %v3965 = vmul.f32 %v3565, %v3949
        %v3966 = vmul.f32 %v3566, %v3950
        %v3967 = vmul.f32 %v3567, %v3951
        %v3968 = vmul.f32 %v3568, %v3952
        %v3969 = vmul.f32 %v3569, %v3953
        %v3970 = vmul.f32 %v3570, %v3954
        %v3971 = vmul.f32 %v3571, %v3955
        %v3972 = vmul.f32 %v3572, %v3956
        %v3973 = vmul.f32 %v3573, %v3957
        %v3974 = vmul.f32 %v3574, %v3958
        %v3975 = vmul.f32 %v3575, %v3959
        %v3976 = vmul.f32 %v3576, %v3960
        %v3977 = vmul.f32 %v3577, %v3961
        %v3978 = vmul.f32 %v3578, %v3962
        %v3979 = vpack.c.bf16 %v3967, %v3963
        %v3980 = vpack.c.bf16 %v3968, %v3964
        %v3981 = vpack.c.bf16 %v3969, %v3965
        %v3982 = vpack.c.bf16 %v3970, %v3966
        %v3983 = vpack.c.bf16 %v3975, %v3971
        %v3984 = vpack.c.bf16 %v3976, %v3972
        %v3985 = vpack.c.bf16 %v3977, %v3973
        %v3986 = vpack.c.bf16 %v3978, %v3974
        %v3987 = vld [vmem:[%s290] sm:$0xf]
        %v3988 = vld [vmem:[%s290 + $0x4] sm:$0xf]
        %v3989 = vld [vmem:[%s290 + $0x8] sm:$0xf]
        %v3990 = vld [vmem:[%s290 + $0xc] sm:$0xf]
        %v3991 = vld [vmem:[%s290 + $0x10] sm:$0xf]
        %v3992 = vld [vmem:[%s290 + $0x14] sm:$0xf]
        %v3993 = vld [vmem:[%s290 + $0x18] sm:$0xf]
        %v3994 = vld [vmem:[%s290 + $0x1c] sm:$0xf]
        %v3995 = vld [vmem:[%s290 + $0x20] sm:$0xf]
        %v3996 = vld [vmem:[%s290 + $0x24] sm:$0xf]
        %v3997 = vld [vmem:[%s290 + $0x28] sm:$0xf]
        %v3998 = vld [vmem:[%s290 + $0x2c] sm:$0xf]
        %v3999 = vld [vmem:[%s290 + $0x30] sm:$0xf]
        %v4000 = vld [vmem:[%s290 + $0x34] sm:$0xf]
        %v4001 = vld [vmem:[%s290 + $0x38] sm:$0xf]
        %v4002 = vld [vmem:[%s290 + $0x3c] sm:$0xf]
        %v4003 = vld [vmem:[%s290 + $0x40] sm:$0xf]
        %v4004 = vld [vmem:[%s290 + $0x44] sm:$0xf]
        %v4005 = vld [vmem:[%s290 + $0x48] sm:$0xf]
        %v4006 = vld [vmem:[%s290 + $0x4c] sm:$0xf]
        %v4007 = vld [vmem:[%s290 + $0x50] sm:$0xf]
        %v4008 = vld [vmem:[%s290 + $0x54] sm:$0xf]
        %v4009 = vld [vmem:[%s290 + $0x58] sm:$0xf]
        %v4010 = vld [vmem:[%s290 + $0x5c] sm:$0xf]
        %v4011 = vld [vmem:[%s290 + $0x60] sm:$0xf]
        %v4012 = vld [vmem:[%s290 + $0x64] sm:$0xf]
        %v4013 = vld [vmem:[%s290 + $0x68] sm:$0xf]
        %v4014 = vld [vmem:[%s290 + $0x6c] sm:$0xf]
        %v4015 = vld [vmem:[%s290 + $0x70] sm:$0xf]
        %v4016 = vld [vmem:[%s290 + $0x74] sm:$0xf]
        %v4017 = vld [vmem:[%s290 + $0x78] sm:$0xf]
        %v4018 = vld [vmem:[%s290 + $0x7c] sm:$0xf]
        %v4019 = vld [vmem:[%s290 + $0x80] sm:$0xf]
        %v4020 = vld [vmem:[%s290 + $0x84] sm:$0xf]
        %v4021 = vld [vmem:[%s290 + $0x88] sm:$0xf]
        %v4022 = vld [vmem:[%s290 + $0x8c] sm:$0xf]
        %v4023 = vld [vmem:[%s290 + $0x90] sm:$0xf]
        %v4024 = vld [vmem:[%s290 + $0x94] sm:$0xf]
        %v4025 = vld [vmem:[%s290 + $0x98] sm:$0xf]
        %v4026 = vld [vmem:[%s290 + $0x9c] sm:$0xf]
        %v4027 = vld [vmem:[%s290 + $0xa0] sm:$0xf]
        %v4028 = vld [vmem:[%s290 + $0xa4] sm:$0xf]
        %v4029 = vld [vmem:[%s290 + $0xa8] sm:$0xf]
        %v4030 = vld [vmem:[%s290 + $0xac] sm:$0xf]
        %v4031 = vld [vmem:[%s290 + $0xb0] sm:$0xf]
        %v4032 = vld [vmem:[%s290 + $0xb4] sm:$0xf]
        %v4033 = vld [vmem:[%s290 + $0xb8] sm:$0xf]
        %v4034 = vld [vmem:[%s290 + $0xbc] sm:$0xf]
        %v4035 = vld [vmem:[%s290 + $0xc0] sm:$0xf]
        %v4036 = vld [vmem:[%s290 + $0xc4] sm:$0xf]
        %v4037 = vld [vmem:[%s290 + $0xc8] sm:$0xf]
        %v4038 = vld [vmem:[%s290 + $0xcc] sm:$0xf]
        %v4039 = vld [vmem:[%s290 + $0xd0] sm:$0xf]
        %v4040 = vld [vmem:[%s290 + $0xd4] sm:$0xf]
        %v4041 = vld [vmem:[%s290 + $0xd8] sm:$0xf]
        %v4042 = vld [vmem:[%s290 + $0xdc] sm:$0xf]
        %v4043 = vld [vmem:[%s290 + $0xe0] sm:$0xf]
        %v4044 = vld [vmem:[%s290 + $0xe4] sm:$0xf]
        %v4045 = vld [vmem:[%s290 + $0xe8] sm:$0xf]
        %v4046 = vld [vmem:[%s290 + $0xec] sm:$0xf]
        %v4047 = vld [vmem:[%s290 + $0xf0] sm:$0xf]
        %v4048 = vld [vmem:[%s290 + $0xf4] sm:$0xf]
        %v4049 = vld [vmem:[%s290 + $0xf8] sm:$0xf]
        %v4050 = vld [vmem:[%s290 + $0xfc] sm:$0xf]
        %v4051 = vld [vmem:[%s299 + $0x5] sm:$0x1]
        %v4053 = vlaneseq
        %v4054 = vshrl.u32 %v4053, 7
        %v4055 = vsub.s32 0, %v4054
        %v4056 = vrot.slane %v4051, %v4055
        %v4122 = vunpack.c.l.b16 %v3987
        %v4123 = vunpack.c.l.b16 %v3988
        %v4124 = vunpack.c.l.b16 %v3989
        %v4125 = vunpack.c.l.b16 %v3990
        %v4126 = vunpack.c.l.b16 %v3991
        %v4127 = vunpack.c.l.b16 %v3992
        %v4128 = vunpack.c.l.b16 %v3993
        %v4129 = vunpack.c.l.b16 %v3994
        %v4130 = vunpack.c.l.b16 %v3995
        %v4131 = vunpack.c.l.b16 %v3996
        %v4132 = vunpack.c.l.b16 %v3997
        %v4133 = vunpack.c.l.b16 %v3998
        %v4134 = vunpack.c.l.b16 %v3999
        %v4135 = vunpack.c.l.b16 %v4000
        %v4136 = vunpack.c.l.b16 %v4001
        %v4137 = vunpack.c.l.b16 %v4002
        %v4138 = vunpack.c.l.b16 %v4003
        %v4139 = vunpack.c.l.b16 %v4004
        %v4140 = vunpack.c.l.b16 %v4005
        %v4141 = vunpack.c.l.b16 %v4006
        %v4142 = vunpack.c.l.b16 %v4007
        %v4143 = vunpack.c.l.b16 %v4008
        %v4144 = vunpack.c.l.b16 %v4009
        %v4145 = vunpack.c.l.b16 %v4010
        %v4146 = vunpack.c.l.b16 %v4011
        %v4147 = vunpack.c.l.b16 %v4012
        %v4148 = vunpack.c.l.b16 %v4013
        %v4149 = vunpack.c.l.b16 %v4014
        %v4150 = vunpack.c.l.b16 %v4015
        %v4151 = vunpack.c.l.b16 %v4016
        %v4152 = vunpack.c.l.b16 %v4017
        %v4153 = vunpack.c.l.b16 %v4018
        %v4154 = vunpack.c.l.b16 %v4019
        %v4155 = vunpack.c.l.b16 %v4020
        %v4156 = vunpack.c.l.b16 %v4021
        %v4157 = vunpack.c.l.b16 %v4022
        %v4158 = vunpack.c.l.b16 %v4023
        %v4159 = vunpack.c.l.b16 %v4024
        %v4160 = vunpack.c.l.b16 %v4025
        %v4161 = vunpack.c.l.b16 %v4026
        %v4162 = vunpack.c.l.b16 %v4027
        %v4163 = vunpack.c.l.b16 %v4028
        %v4164 = vunpack.c.l.b16 %v4029
        %v4165 = vunpack.c.l.b16 %v4030
        %v4166 = vunpack.c.l.b16 %v4031
        %v4167 = vunpack.c.l.b16 %v4032
        %v4168 = vunpack.c.l.b16 %v4033
        %v4169 = vunpack.c.l.b16 %v4034
        %v4170 = vunpack.c.l.b16 %v4035
        %v4171 = vunpack.c.l.b16 %v4036
        %v4172 = vunpack.c.l.b16 %v4037
        %v4173 = vunpack.c.l.b16 %v4038
        %v4174 = vunpack.c.l.b16 %v4039
        %v4175 = vunpack.c.l.b16 %v4040
        %v4176 = vunpack.c.l.b16 %v4041
        %v4177 = vunpack.c.l.b16 %v4042
        %v4178 = vunpack.c.l.b16 %v4043
        %v4179 = vunpack.c.l.b16 %v4044
        %v4180 = vunpack.c.l.b16 %v4045
        %v4181 = vunpack.c.l.b16 %v4046
        %v4182 = vunpack.c.l.b16 %v4047
        %v4183 = vunpack.c.l.b16 %v4048
        %v4184 = vunpack.c.l.b16 %v4049
        %v4185 = vunpack.c.l.b16 %v4050
        %v4186 = vpack.c.b16 %v4123, %v4122
        %v4187 = vpack.c.b16 %v4125, %v4124
        %v4188 = vpack.c.b16 %v4127, %v4126
        %v4189 = vpack.c.b16 %v4129, %v4128
        %v4190 = vpack.c.b16 %v4131, %v4130
        %v4191 = vpack.c.b16 %v4133, %v4132
        %v4192 = vpack.c.b16 %v4135, %v4134
        %v4193 = vpack.c.b16 %v4137, %v4136
        %v4194 = vpack.c.b16 %v4139, %v4138
        %v4195 = vpack.c.b16 %v4141, %v4140
        %v4196 = vpack.c.b16 %v4143, %v4142
        %v4197 = vpack.c.b16 %v4145, %v4144
        %v4198 = vpack.c.b16 %v4147, %v4146
        %v4199 = vpack.c.b16 %v4149, %v4148
        %v4200 = vpack.c.b16 %v4151, %v4150
        %v4201 = vpack.c.b16 %v4153, %v4152
        %v4202 = vpack.c.b16 %v4155, %v4154
        %v4203 = vpack.c.b16 %v4157, %v4156
        %v4204 = vpack.c.b16 %v4159, %v4158
        %v4205 = vpack.c.b16 %v4161, %v4160
        %v4206 = vpack.c.b16 %v4163, %v4162
        %v4207 = vpack.c.b16 %v4165, %v4164
        %v4208 = vpack.c.b16 %v4167, %v4166
        %v4209 = vpack.c.b16 %v4169, %v4168
        %v4210 = vpack.c.b16 %v4171, %v4170
        %v4211 = vpack.c.b16 %v4173, %v4172
        %v4212 = vpack.c.b16 %v4175, %v4174
        %v4213 = vpack.c.b16 %v4177, %v4176
        %v4214 = vpack.c.b16 %v4179, %v4178
        %v4215 = vpack.c.b16 %v4181, %v4180
        %v4216 = vpack.c.b16 %v4183, %v4182
        %v4217 = vpack.c.b16 %v4185, %v4184
        %4250 = vmatprep.subr.bf16.mxu0 0
        %4251 = vmatpush1.bf16.msra.mxu0 %v4186
        %4252 = vmatprep.subr.bf16.mxu0 0
        %4253 = vmatpush1.bf16.msra.mxu0 %v4187
        %4254 = vmatprep.subr.bf16.mxu0 0
        %4255 = vmatpush1.bf16.msra.mxu0 %v4188
        %4256 = vmatprep.subr.bf16.mxu0 0
        %4257 = vmatpush1.bf16.msra.mxu0 %v4189
        %4258 = vmatprep.subr.bf16.mxu0 0
        %4259 = vmatpush1.bf16.msra.mxu0 %v4190
        %4260 = vmatprep.subr.bf16.mxu0 0
        %4261 = vmatpush1.bf16.msra.mxu0 %v4191
        %4262 = vmatprep.subr.bf16.mxu0 0
        %4263 = vmatpush1.bf16.msra.mxu0 %v4192
        %4264 = vmatprep.subr.bf16.mxu0 0
        %4265 = vmatpush1.bf16.msra.mxu0 %v4193
        %4266 = vmatprep.subr.bf16.mxu0 0
        %4267 = vmatpush1.bf16.msra.mxu0 %v4194
        %4268 = vmatprep.subr.bf16.mxu0 0
        %4269 = vmatpush1.bf16.msra.mxu0 %v4195
        %4270 = vmatprep.subr.bf16.mxu0 0
        %4271 = vmatpush1.bf16.msra.mxu0 %v4196
        %4272 = vmatprep.subr.bf16.mxu0 0
        %4273 = vmatpush1.bf16.msra.mxu0 %v4197
        %4274 = vmatprep.subr.bf16.mxu0 0
        %4275 = vmatpush1.bf16.msra.mxu0 %v4198
        %4276 = vmatprep.subr.bf16.mxu0 0
        %4277 = vmatpush1.bf16.msra.mxu0 %v4199
        %4278 = vmatprep.subr.bf16.mxu0 0
        %4279 = vmatpush1.bf16.msra.mxu0 %v4200
        %4280 = vmatprep.subr.bf16.mxu0 0
        %4281 = vmatpush1.bf16.msra.mxu0 %v4201
        %4282 = vmatprep.mubr.bf16.mxu0 %v3980
        %4283 = vmatmul.mubr.bf16.gmra.mrb[0].mxu0 %v3979
        %v4284 = vpop.f32.mrb[0].mxu0
        %v4285 = vadd.f32 %v4056, %v4284
        %v4286 = vpop.f32.mrb[0].mxu0
        %v4287 = vpop.f32.mrb[0].mxu0
        %v4288 = vadd.f32 %v4056, %v4287
        %v4289 = vpop.f32.mrb[0].mxu0
        %4290 = vmatprep.mubr.bf16.mxu0 %v3984
        %4291 = vmatmul.mubr.bf16.gmra.mrb[0].mxu0 %v3983
        %v4292 = vpop.f32.mrb[0].mxu0
        %v4293 = vadd.f32 %v4056, %v4292
        %v4294 = vpop.f32.mrb[0].mxu0
        %v4295 = vpop.f32.mrb[0].mxu0
        %v4296 = vadd.f32 %v4056, %v4295
        %v4297 = vpop.f32.mrb[0].mxu0
        %4298 = vdwg.mxu0
        %4299 = vmatprep.subr.bf16.mxu0 0
        %4300 = vmatpush1.bf16.msra.mxu0 %v4202
        %4301 = vmatprep.subr.bf16.mxu0 0
        %4302 = vmatpush1.bf16.msra.mxu0 %v4203
        %4303 = vmatprep.subr.bf16.mxu0 0
        %4304 = vmatpush1.bf16.msra.mxu0 %v4204
        %4305 = vmatprep.subr.bf16.mxu0 0
        %4306 = vmatpush1.bf16.msra.mxu0 %v4205
        %4307 = vmatprep.subr.bf16.mxu0 0
        %4308 = vmatpush1.bf16.msra.mxu0 %v4206
        %4309 = vmatprep.subr.bf16.mxu0 0
        %4310 = vmatpush1.bf16.msra.mxu0 %v4207
        %4311 = vmatprep.subr.bf16.mxu0 0
        %4312 = vmatpush1.bf16.msra.mxu0 %v4208
        %4313 = vmatprep.subr.bf16.mxu0 0
        %4314 = vmatpush1.bf16.msra.mxu0 %v4209
        %4315 = vmatprep.subr.bf16.mxu0 0
        %4316 = vmatpush1.bf16.msra.mxu0 %v4210
        %4317 = vmatprep.subr.bf16.mxu0 0
        %4318 = vmatpush1.bf16.msra.mxu0 %v4211
        %4319 = vmatprep.subr.bf16.mxu0 0
        %4320 = vmatpush1.bf16.msra.mxu0 %v4212
        %4321 = vmatprep.subr.bf16.mxu0 0
        %4322 = vmatpush1.bf16.msra.mxu0 %v4213
        %4323 = vmatprep.subr.bf16.mxu0 0
        %4324 = vmatpush1.bf16.msra.mxu0 %v4214
        %4325 = vmatprep.subr.bf16.mxu0 0
        %4326 = vmatpush1.bf16.msra.mxu0 %v4215
        %4327 = vmatprep.subr.bf16.mxu0 0
        %4328 = vmatpush1.bf16.msra.mxu0 %v4216
        %4329 = vmatprep.subr.bf16.mxu0 0
        %4330 = vmatpush1.bf16.msra.mxu0 %v4217
        %4331 = vmatprep.mubr.bf16.mxu0 %v3982
        %4332 = vmatmul.mubr.bf16.gmra.mrb[0].mxu0 %v3981
        %v4333 = vpop.f32.mrb[0].mxu0
        %v4334 = vadd.f32 %v4285, %v4333
        %v4335 = vpop.f32.mrb[0].mxu0
        %v4336 = vpop.f32.mrb[0].mxu0
        %v4337 = vadd.f32 %v4288, %v4336
        %v4338 = vpop.f32.mrb[0].mxu0
        %4339 = vmatprep.mubr.bf16.mxu0 %v3986
        %4340 = vmatmul.mubr.bf16.gmra.mrb[0].mxu0 %v3985
        %v4341 = vpop.f32.mrb[0].mxu0
        %v4342 = vadd.f32 %v4293, %v4341
        %v4343 = vpop.f32.mrb[0].mxu0
        %v4344 = vpop.f32.mrb[0].mxu0
        %v4345 = vadd.f32 %v4296, %v4344
        %v4346 = vpop.f32.mrb[0].mxu0
        %4347 = vdwg.mxu0
        %v4348 = vadd.f32 %v3171, %v4334
        %v4349 = vadd.f32 %v3172, %v4337
        %v4350 = vadd.f32 %v3173, %v4342
        %v4351 = vadd.f32 %v3174, %v4345
        %4352 = vst [vmem:[#allocation8] sm:$0xff] %v4348
        %4353 = vst [vmem:[#allocation8 + $0x8] sm:$0xff] %v4349
        %4354 = vst [vmem:[#allocation8 + $0x10] sm:$0xff] %v4350
        %4355 = vst [vmem:[#allocation8 + $0x18] sm:$0xff] %v4351
        // Predicated region
        $region61: #{transformer_encoder.1} parent=43 // pred_check
          %p4356 = pneg %p178
        $region62: #{transformer_encoder.1} parent=43 // pred_check_branch
          %4358 = sbr.rel (%p4356) target = $region64
        $region63: #{transformer_encoder.1} parent=43 // pred_region
          %s4360 = ssub.s32 512, 512
          %4361 = vsyncadd [#allocation4], %s4360
          %s4362 = sshll.u32 [#allocation8], 4
          %s4363 = int_to_ptr.vmem [resolvable:$true] %s4362
          %4368 = dma.vmem_to_hbm [thread:$0]  %s4363, 512, %s6, [#allocation4], 128, 128, 8
        $region64: #{transformer_encoder.1} parent=43 // pred_fallthru
          _
        // Predicated region
        $region65: #{transformer_encoder.1} parent=43 // pred_check
          %p4369 = pneg %p178
        $region66: #{transformer_encoder.1} parent=43 // pred_check_branch
          %4371 = sbr.rel (%p4369) target = $region68
        $region67: #{transformer_encoder.1} parent=43 // pred_region
          %4372 = dma.done [#allocation4], 512
        $region68: #{transformer_encoder.1} parent=43 // pred_fallthru
          _
      $region44: #{transformer_encoder.1} parent=5 // pred_fallthru
        _
      %p4373 = scmp.le.s32.totalorder 2, %s19
      // Predicated region
      $region69: #{transformer_encoder.1} parent=5 // pred_check
        %p4374 = pneg %p4373
      $region70: #{transformer_encoder.1} parent=5 // pred_check_branch
        %4376 = sbr.rel (%p4374) target = $region72
      $region71: #{transformer_encoder.1} parent=5 // pred_region
        %s4377 = ssub.s32 %s19, 2
      $region72: #{transformer_encoder.1} parent=5 // pred_fallthru
        _
    $region6: #{transformer_encoder.1} parent=1 // loop_footer
      %s23 = sadd.s32 1, %s19
    $region7: #{transformer_encoder.1} parent=1 // loop_footer_branch
      %18 = sbr.rel target = $region3
    $region8: #{transformer_encoder.1} parent=1 // loop_exit
      _
    %4378 = vsyncpa [#allocation3], 1
    %s4379 = scalar_lea.sflag [#allocation3], 1
    %4380 = vsyncpa %s4379, 1
    %4381 = vsyncpa [#allocation6], 1
    %s4382 = scalar_lea.sflag [#allocation6], 1
    %4383 = vsyncpa %s4382, 1
    %4384 = vsyncpa [#allocation4], 1
    %s4385 = scalar_lea.sflag [#allocation4], 1
    %4386 = vsyncpa %s4385, 1

</llo_original>
